<compile_context>
chip_gen: v6e
topology: v6e:2x2x1
jax: 0.10.0
libtpu: 0.0.40
codegen_flags: <defaults>
</compile_context>

<pallas_src>
import functools

import jax
import jax.numpy as jnp
from jax.experimental import pallas as pl
from jax.experimental.pallas import tpu as pltpu


def sgcn_bottleneck_kernel(x_ref, a2_ref, wd_ref, bd_ref, wg_ref, tg_ref,
                           wu_ref, bu_ref, out_ref, s1_ref, s2_ref):
    CIN, V, TM = x_ref.shape
    INTER = wd_ref.shape[0]
    COUT = wu_ref.shape[0]
    K = a2_ref.shape[1] // V

    # ---- conv_down (1x1) + folded bn_down + ReLU ---------------------------------
    x2 = x_ref[...].reshape(CIN, V * TM)                        # aligned merge (TM % 128 == 0)
    y = jnp.dot(wd_ref[...], x2, preferred_element_type=jnp.float32) + bd_ref[...]
    y = jnp.maximum(y, 0.0)                                     # (INTER, V*TM) f32

    # ---- SpatialGraphConv: K*INTER-wide 1x1 conv (bn scale folded, bias in tg) ---
    z = jnp.dot(wg_ref[...], y.astype(jnp.bfloat16),
                preferred_element_type=jnp.float32)             # (K*INTER, V*TM)
    zb = z.astype(jnp.bfloat16)

    # explicit relayout: joint index v moves from the lane side to the contraction
    # rows.  Done with 128-aligned lane-block slices + scratch stores (portable).
    for v in range(V):
        blk = zb[:, v * TM:(v + 1) * TM].reshape(K, INTER, TM)  # (K, INTER, TM)
        s1_ref[:, v, :, :] = blk
    rhs = s1_ref[...].reshape(K * V, INTER * TM)                # rows = (k, v)

    # graph mixing over joints: ONE 2-D MXU matmul, contraction length K*V.
    g = jnp.dot(a2_ref[...], rhs, preferred_element_type=jnp.float32)   # (V, INTER*TM)
    g3 = g.reshape(V, INTER, TM) + tg_ref[...][:, :, None]      # folded bn + gcn bias
    g3 = jnp.maximum(g3, 0.0)                                   # (V, INTER, TM) f32

    # second relayout: put the INTER channels back on the contraction rows.
    for v in range(V):
        s2_ref[:, v, :] = g3[v]                                 # (INTER, TM)
    g2 = s2_ref[...].reshape(INTER, V * TM).astype(jnp.bfloat16)

    # ---- conv_up (1x1) + folded bn_up + ReLU (residual branch == 0) --------------
    o = jnp.dot(wu_ref[...], g2, preferred_element_type=jnp.float32) + bu_ref[...]
    o = jnp.maximum(o, 0.0)
    out_ref[...] = o.reshape(COUT, V, TM).astype(out_ref.dtype)


def _fold_bn(gamma, beta, mean, var, eps=1e-5):
    s = gamma / jnp.sqrt(var + eps)
    return s, beta - mean * s


def _const_spec(shape):
    idx = (0,) * len(shape)
    return pl.BlockSpec(shape, lambda i, _idx=idx: _idx)


def spatial_bottleneck_block(x_nctv, A, params, *, tm=128):
    """x_nctv: (N, C_in, T, V) f32; A: (K, V, V) f32.  Returns (N, C_out, T, V) f32."""
    N, CIN, T, V = x_nctv.shape
    K = A.shape[0]
    M = N * T
    assert tm % 128 == 0, "tm must be a multiple of 128 (lane-aligned token tile)"
    M_pad = -(-M // tm) * tm

    # NCHW -> (C, V, M): channels on rows, tokens (joint-major) on lanes.
    x_t = jnp.transpose(x_nctv, (1, 3, 0, 2)).reshape(CIN, V, M)
    if M_pad != M:
        x_t = jnp.pad(x_t, ((0, 0), (0, 0), (0, M_pad - M)))
    x_t = x_t.astype(jnp.bfloat16)

    # fold eval-mode BatchNorm into the 1x1 conv weights / biases
    sd, td = _fold_bn(*params['bn_down'])
    sg, tg = _fold_bn(*params['bn'])
    su, tu = _fold_bn(*params['bn_up'])

    wd = (params['conv_down_w'] * sd[:, None]).astype(jnp.bfloat16)          # (INTER, CIN)
    bd = (params['conv_down_b'] * sd + td)[:, None].astype(jnp.float32)      # (INTER, 1)
    sgK = jnp.tile(sg, K)
    wg = (params['gcn_w'] * sgK[:, None]).astype(jnp.bfloat16)               # (K*INTER, INTER)
    bg_s = (params['gcn_b'] * sgK).reshape(K, -1)                            # (K, INTER)
    # gcn bias + bn shift pushed through the graph aggregation (data independent)
    tg_full = (tg[None, :] + jnp.dot(A.sum(axis=1).T, bg_s)).astype(jnp.float32)  # (V, INTER)
    wu = (params['conv_up_w'] * su[:, None]).astype(jnp.bfloat16)            # (COUT, INTER)
    bu = (params['conv_up_b'] * su + tu)[:, None].astype(jnp.float32)        # (COUT, 1)

    # A2[w, k*V + v] = A[k, v, w]
    a2 = jnp.transpose(A, (2, 0, 1)).reshape(V, K * V).astype(jnp.bfloat16)

    INTER = wd.shape[0]
    COUT = wu.shape[0]

    out = pl.pallas_call(
        sgcn_bottleneck_kernel,
        out_shape=jax.ShapeDtypeStruct((COUT, V, M_pad), jnp.float32),
        grid=(M_pad // tm,),
        in_specs=[
            pl.BlockSpec((CIN, V, tm), lambda i: (0, 0, i)),   # x tiles over tokens
            _const_spec((V, K * V)),                           # A2
            _const_spec((INTER, CIN)),                         # conv_down w (bn folded)
            _const_spec((INTER, 1)),                           # conv_down bias
            _const_spec((K * INTER, INTER)),                   # gcn w (bn scale folded)
            _const_spec((V, INTER)),                           # graph bias + bn shift
            _const_spec((COUT, INTER)),                        # conv_up w (bn folded)
            _const_spec((COUT, 1)),                            # conv_up bias
        ],
        out_specs=pl.BlockSpec((COUT, V, tm), lambda i: (0, 0, i)),
        scratch_shapes=[
            pltpu.VMEM((K, V, INTER, tm), jnp.bfloat16),       # graph-mix RHS
            pltpu.VMEM((INTER, V, tm), jnp.float32),           # conv_up LHS data
        ],
        compiler_params=pltpu.CompilerParams(
            dimension_semantics=("parallel",),
            vmem_limit_bytes=48 * 1024 * 1024,
        ),
    )(x_t, a2, wd, bd, wg, tg_full, wu, bu)

    out = out[:, :, :M].reshape(COUT, V, N, T)
    return jnp.transpose(out, (2, 0, 3, 1))                    # (N, C_out, T, V)


# ---------------- pure-JAX reference (mirrors the PyTorch forward, f32) ----------------
def reference_forward(x, A, params, K):
    def conv1x1(h, w, b):
        return jnp.einsum('nctv,oc->notv', h, w) + b[None, :, None, None]

    def bn(h, p, eps=1e-5):
        gamma, beta, mean, var = p
        s = gamma / jnp.sqrt(var + eps)
        t = beta - mean * s
        return h * s[None, :, None, None] + t[None, :, None, None]

    h = jnp.maximum(bn(conv1x1(x, params['conv_down_w'], params['conv_down_b']),
                       params['bn_down']), 0.0)
    z = conv1x1(h, params['gcn_w'], params['gcn_b'])
    n, kc, t_, v = z.shape
    z = z.reshape(n, K, kc // K, t_, v)
    g = jnp.einsum('nkctv,kvw->nctw', z, A[:K])
    g = jnp.maximum(bn(g, params['bn']), 0.0)
    o = bn(conv1x1(g, params['conv_up_w'], params['conv_up_b']), params['bn_up'])
    return jnp.maximum(o, 0.0)    # residual=False -> +0


def make_params(key, c_in, out_ch, reduction, K):
    inter = out_ch // reduction
    ks = jax.random.split(key, 20)

    def bn_params(k, c):
        k1, k2, k3, k4 = jax.random.split(k, 4)
        gamma = 1.0 + 0.1 * jax.random.normal(k1, (c,), jnp.float32)
        beta = 0.1 * jax.random.normal(k2, (c,), jnp.float32)
        mean = 0.1 * jax.random.normal(k3, (c,), jnp.float32)
        var = jax.random.uniform(k4, (c,), jnp.float32, 0.5, 1.5)
        return (gamma, beta, mean, var)

    return {
        'conv_down_w': 0.2 * jax.random.normal(ks[0], (inter, c_in), jnp.float32),
        'conv_down_b': 0.1 * jax.random.normal(ks[1], (inter,), jnp.float32),
        'gcn_w': 0.2 * jax.random.normal(ks[2], (inter * K, inter), jnp.float32),
        'gcn_b': 0.1 * jax.random.normal(ks[3], (inter * K,), jnp.float32),
        'conv_up_w': 0.2 * jax.random.normal(ks[4], (out_ch, inter), jnp.float32),
        'conv_up_b': 0.1 * jax.random.normal(ks[5], (out_ch,), jnp.float32),
        'bn_down': bn_params(ks[6], inter),
        'bn': bn_params(ks[7], inter),
        'bn_up': bn_params(ks[8], out_ch),
    }


if __name__ == "__main__":
    # Spatial_Bottleneck_Block(in=4, out=16, max_graph_distance=2, residual=False, reduction=4)
    # N*T = 256 tokens -> 2 grid steps of tm=128 (keeps both v7x TensorCores busy).
    N, C_IN, T, V = 2, 4, 128, 16
    OUT_CH, REDUCTION, MAX_DIST = 16, 4, 2
    K = MAX_DIST + 1

    root = jax.random.PRNGKey(0)
    k_params, k_x, k_A = jax.random.split(root, 3)
    params = make_params(k_params, C_IN, OUT_CH, REDUCTION, K)
    x = jax.random.normal(k_x, (N, C_IN, T, V), jnp.float32)
    A = 0.2 * jax.random.normal(k_A, (K, V, V), jnp.float32)

    fwd = jax.jit(functools.partial(spatial_bottleneck_block, tm=128))
    out = jax.block_until_ready(fwd(x, A, params))

    ref = reference_forward(x, A, params, K)
    assert out.shape == (N, OUT_CH, T, V), out.shape
    err = jnp.max(jnp.abs(out - ref))
    # bf16 matmul operands (f32 accumulation) vs. the f32 reference -> loosened tolerance
    assert jnp.allclose(out, ref, rtol=3e-2, atol=3e-2), f"max abs err = {err}"
    print("KERNEL_OK")
</pallas_src>

<mosaic_0001>
module attributes {stable_mosaic.version = 11 : i64} {
  func.func @sgcn_bottleneck_kernel(%arg0: i32, %arg1: memref<4x16x128xbf16, #tpu.memory_space<vmem>>, %arg2: memref<16x48xbf16, #tpu.memory_space<vmem>>, %arg3: memref<4x4xbf16, #tpu.memory_space<vmem>>, %arg4: memref<4x1xf32, #tpu.memory_space<vmem>>, %arg5: memref<12x4xbf16, #tpu.memory_space<vmem>>, %arg6: memref<16x4xf32, #tpu.memory_space<vmem>>, %arg7: memref<16x4xbf16, #tpu.memory_space<vmem>>, %arg8: memref<16x1xf32, #tpu.memory_space<vmem>>, %arg9: memref<16x16x128xf32, #tpu.memory_space<vmem>>, %arg10: memref<3x16x4x128xbf16, #tpu.memory_space<vmem>>, %arg11: memref<4x16x128xf32, #tpu.memory_space<vmem>>) attributes {dimension_semantics = [#tpu.dimension_semantics<parallel>], iteration_bounds = array<i64: 2>, scalar_prefetch = 0 : i64, scratch_operands = 2 : i64, tpu.core_type = #tpu.core_type<tc>, window_params = [{transform_indices = @transform_0, window_bounds = array<i64: 4, 16, 128>}, {pipeline_mode = #tpu.pipeline_mode<synchronous>, transform_indices = @transform_1, window_bounds = array<i64: 16, 48>}, {pipeline_mode = #tpu.pipeline_mode<synchronous>, transform_indices = @transform_2, window_bounds = array<i64: 4, 4>}, {pipeline_mode = #tpu.pipeline_mode<synchronous>, transform_indices = @transform_3, window_bounds = array<i64: 4, 1>}, {pipeline_mode = #tpu.pipeline_mode<synchronous>, transform_indices = @transform_4, window_bounds = array<i64: 12, 4>}, {pipeline_mode = #tpu.pipeline_mode<synchronous>, transform_indices = @transform_5, window_bounds = array<i64: 16, 4>}, {pipeline_mode = #tpu.pipeline_mode<synchronous>, transform_indices = @transform_6, window_bounds = array<i64: 16, 4>}, {pipeline_mode = #tpu.pipeline_mode<synchronous>, transform_indices = @transform_7, window_bounds = array<i64: 16, 1>}, {transform_indices = @transform_8, window_bounds = array<i64: 16, 16, 128>}]} {
    %c0 = arith.constant 0 : index
    %c0_0 = arith.constant 0 : index
    %c0_1 = arith.constant 0 : index
    %0 = vector.load %arg1[%c0, %c0_0, %c0_1] : memref<4x16x128xbf16, #tpu.memory_space<vmem>>, vector<4x16x128xbf16>
    %1 = vector.shape_cast %0 : vector<4x16x128xbf16> to vector<4x2048xbf16>
    %c0_2 = arith.constant 0 : index
    %c0_3 = arith.constant 0 : index
    %2 = vector.load %arg3[%c0_2, %c0_3] : memref<4x4xbf16, #tpu.memory_space<vmem>>, vector<4x4xbf16>
    %cst = arith.constant dense<0.000000e+00> : vector<4x2048xf32>
    %3 = tpu.matmul %2, %1, %cst {dimension_numbers = #tpu.dot_dimension_numbers<[1], [0], [0], [1], [0, 0, 1, 1], [], []>} : vector<4x4xbf16>, vector<4x2048xbf16>, vector<4x2048xf32> -> vector<4x2048xf32>
    %c0_4 = arith.constant 0 : index
    %c0_5 = arith.constant 0 : index
    %4 = vector.load %arg4[%c0_4, %c0_5] : memref<4x1xf32, #tpu.memory_space<vmem>>, vector<4x1xf32>
    %5 = vector.broadcast %4 : vector<4x1xf32> to vector<4x2048xf32>
    %6 = arith.addf %3, %5 : vector<4x2048xf32>
    %cst_6 = arith.constant 0.000000e+00 : f32
    %7 = vector.broadcast %cst_6 : f32 to vector<4x2048xf32>
    %8 = arith.maximumf %6, %7 : vector<4x2048xf32>
    %c0_7 = arith.constant 0 : index
    %c0_8 = arith.constant 0 : index
    %9 = vector.load %arg5[%c0_7, %c0_8] : memref<12x4xbf16, #tpu.memory_space<vmem>>, vector<12x4xbf16>
    %10 = arith.truncf %8 : vector<4x2048xf32> to vector<4x2048xbf16>
    %cst_9 = arith.constant dense<0.000000e+00> : vector<12x2048xf32>
    %11 = tpu.matmul %9, %10, %cst_9 {dimension_numbers = #tpu.dot_dimension_numbers<[1], [0], [0], [1], [0, 0, 1, 1], [], []>} : vector<12x4xbf16>, vector<4x2048xbf16>, vector<12x2048xf32> -> vector<12x2048xf32>
    %12 = arith.truncf %11 : vector<12x2048xf32> to vector<12x2048xbf16>
    %13 = vector.extract_strided_slice %12 {offsets = [0, 0], sizes = [12, 128], strides = [1, 1]} : vector<12x2048xbf16> to vector<12x128xbf16>
    %14 = vector.shape_cast %13 : vector<12x128xbf16> to vector<3x4x128xbf16>
    %c0_10 = arith.constant 0 : index
    %c0_11 = arith.constant 0 : index
    %c0_12 = arith.constant 0 : index
    %c0_13 = arith.constant 0 : index
    %15 = vector.load %arg10[%c0_10, %c0_11, %c0_12, %c0_13] : memref<3x16x4x128xbf16, #tpu.memory_space<vmem>>, vector<3x1x4x128xbf16>
    %16 = vector.shape_cast %15 : vector<3x1x4x128xbf16> to vector<3x4x128xbf16>
    %17 = vector.shape_cast %14 : vector<3x4x128xbf16> to vector<3x1x4x128xbf16>
    tpu.vector_store %arg10[%c0_10, %c0_11, %c0_12, %c0_13], %17 {strides = array<i32>} : memref<3x16x4x128xbf16, #tpu.memory_space<vmem>>, vector<3x1x4x128xbf16>,
    %18 = vector.extract_strided_slice %12 {offsets = [0, 128], sizes = [12, 128], strides = [1, 1]} : vector<12x2048xbf16> to vector<12x128xbf16>
    %19 = vector.shape_cast %18 : vector<12x128xbf16> to vector<3x4x128xbf16>
    %c0_14 = arith.constant 0 : index
    %c1 = arith.constant 1 : index
    %c0_15 = arith.constant 0 : index
    %c0_16 = arith.constant 0 : index
    %20 = vector.load %arg10[%c0_14, %c1, %c0_15, %c0_16] : memref<3x16x4x128xbf16, #tpu.memory_space<vmem>>, vector<3x1x4x128xbf16>
    %21 = vector.shape_cast %20 : vector<3x1x4x128xbf16> to vector<3x4x128xbf16>
    %22 = vector.shape_cast %19 : vector<3x4x128xbf16> to vector<3x1x4x128xbf16>
    tpu.vector_store %arg10[%c0_14, %c1, %c0_15, %c0_16], %22 {strides = array<i32>} : memref<3x16x4x128xbf16, #tpu.memory_space<vmem>>, vector<3x1x4x128xbf16>,
    %23 = vector.extract_strided_slice %12 {offsets = [0, 256], sizes = [12, 128], strides = [1, 1]} : vector<12x2048xbf16> to vector<12x128xbf16>
    %24 = vector.shape_cast %23 : vector<12x128xbf16> to vector<3x4x128xbf16>
    %c0_17 = arith.constant 0 : index
    %c2 = arith.constant 2 : index
    %c0_18 = arith.constant 0 : index
    %c0_19 = arith.constant 0 : index
    %25 = vector.load %arg10[%c0_17, %c2, %c0_18, %c0_19] : memref<3x16x4x128xbf16, #tpu.memory_space<vmem>>, vector<3x1x4x128xbf16>
    %26 = vector.shape_cast %25 : vector<3x1x4x128xbf16> to vector<3x4x128xbf16>
    %27 = vector.shape_cast %24 : vector<3x4x128xbf16> to vector<3x1x4x128xbf16>
    tpu.vector_store %arg10[%c0_17, %c2, %c0_18, %c0_19], %27 {strides = array<i32>} : memref<3x16x4x128xbf16, #tpu.memory_space<vmem>>, vector<3x1x4x128xbf16>,
    %28 = vector.extract_strided_slice %12 {offsets = [0, 384], sizes = [12, 128], strides = [1, 1]} : vector<12x2048xbf16> to vector<12x128xbf16>
    %29 = vector.shape_cast %28 : vector<12x128xbf16> to vector<3x4x128xbf16>
    %c0_20 = arith.constant 0 : index
    %c3 = arith.constant 3 : index
    %c0_21 = arith.constant 0 : index
    %c0_22 = arith.constant 0 : index
    %30 = vector.load %arg10[%c0_20, %c3, %c0_21, %c0_22] : memref<3x16x4x128xbf16, #tpu.memory_space<vmem>>, vector<3x1x4x128xbf16>
    %31 = vector.shape_cast %30 : vector<3x1x4x128xbf16> to vector<3x4x128xbf16>
    %32 = vector.shape_cast %29 : vector<3x4x128xbf16> to vector<3x1x4x128xbf16>
    tpu.vector_store %arg10[%c0_20, %c3, %c0_21, %c0_22], %32 {strides = array<i32>} : memref<3x16x4x128xbf16, #tpu.memory_space<vmem>>, vector<3x1x4x128xbf16>,
    %33 = vector.extract_strided_slice %12 {offsets = [0, 512], sizes = [12, 128], strides = [1, 1]} : vector<12x2048xbf16> to vector<12x128xbf16>
    %34 = vector.shape_cast %33 : vector<12x128xbf16> to vector<3x4x128xbf16>
    %c0_23 = arith.constant 0 : index
    %c4 = arith.constant 4 : index
    %c0_24 = arith.constant 0 : index
    %c0_25 = arith.constant 0 : index
    %35 = vector.load %arg10[%c0_23, %c4, %c0_24, %c0_25] : memref<3x16x4x128xbf16, #tpu.memory_space<vmem>>, vector<3x1x4x128xbf16>
    %36 = vector.shape_cast %35 : vector<3x1x4x128xbf16> to vector<3x4x128xbf16>
    %37 = vector.shape_cast %34 : vector<3x4x128xbf16> to vector<3x1x4x128xbf16>
    tpu.vector_store %arg10[%c0_23, %c4, %c0_24, %c0_25], %37 {strides = array<i32>} : memref<3x16x4x128xbf16, #tpu.memory_space<vmem>>, vector<3x1x4x128xbf16>,
    %38 = vector.extract_strided_slice %12 {offsets = [0, 640], sizes = [12, 128], strides = [1, 1]} : vector<12x2048xbf16> to vector<12x128xbf16>
    %39 = vector.shape_cast %38 : vector<12x128xbf16> to vector<3x4x128xbf16>
    %c0_26 = arith.constant 0 : index
    %c5 = arith.constant 5 : index
    %c0_27 = arith.constant 0 : index
    %c0_28 = arith.constant 0 : index
    %40 = vector.load %arg10[%c0_26, %c5, %c0_27, %c0_28] : memref<3x16x4x128xbf16, #tpu.memory_space<vmem>>, vector<3x1x4x128xbf16>
    %41 = vector.shape_cast %40 : vector<3x1x4x128xbf16> to vector<3x4x128xbf16>
    %42 = vector.shape_cast %39 : vector<3x4x128xbf16> to vector<3x1x4x128xbf16>
    tpu.vector_store %arg10[%c0_26, %c5, %c0_27, %c0_28], %42 {strides = array<i32>} : memref<3x16x4x128xbf16, #tpu.memory_space<vmem>>, vector<3x1x4x128xbf16>,
    %43 = vector.extract_strided_slice %12 {offsets = [0, 768], sizes = [12, 128], strides = [1, 1]} : vector<12x2048xbf16> to vector<12x128xbf16>
    %44 = vector.shape_cast %43 : vector<12x128xbf16> to vector<3x4x128xbf16>
    %c0_29 = arith.constant 0 : index
    %c6 = arith.constant 6 : index
    %c0_30 = arith.constant 0 : index
    %c0_31 = arith.constant 0 : index
    %45 = vector.load %arg10[%c0_29, %c6, %c0_30, %c0_31] : memref<3x16x4x128xbf16, #tpu.memory_space<vmem>>, vector<3x1x4x128xbf16>
    %46 = vector.shape_cast %45 : vector<3x1x4x128xbf16> to vector<3x4x128xbf16>
    %47 = vector.shape_cast %44 : vector<3x4x128xbf16> to vector<3x1x4x128xbf16>
    tpu.vector_store %arg10[%c0_29, %c6, %c0_30, %c0_31], %47 {strides = array<i32>} : memref<3x16x4x128xbf16, #tpu.memory_space<vmem>>, vector<3x1x4x128xbf16>,
    %48 = vector.extract_strided_slice %12 {offsets = [0, 896], sizes = [12, 128], strides = [1, 1]} : vector<12x2048xbf16> to vector<12x128xbf16>
    %49 = vector.shape_cast %48 : vector<12x128xbf16> to vector<3x4x128xbf16>
    %c0_32 = arith.constant 0 : index
    %c7 = arith.constant 7 : index
    %c0_33 = arith.constant 0 : index
    %c0_34 = arith.constant 0 : index
    %50 = vector.load %arg10[%c0_32, %c7, %c0_33, %c0_34] : memref<3x16x4x128xbf16, #tpu.memory_space<vmem>>, vector<3x1x4x128xbf16>
    %51 = vector.shape_cast %50 : vector<3x1x4x128xbf16> to vector<3x4x128xbf16>
    %52 = vector.shape_cast %49 : vector<3x4x128xbf16> to vector<3x1x4x128xbf16>
    tpu.vector_store %arg10[%c0_32, %c7, %c0_33, %c0_34], %52 {strides = array<i32>} : memref<3x16x4x128xbf16, #tpu.memory_space<vmem>>, vector<3x1x4x128xbf16>,
    %53 = vector.extract_strided_slice %12 {offsets = [0, 1024], sizes = [12, 128], strides = [1, 1]} : vector<12x2048xbf16> to vector<12x128xbf16>
    %54 = vector.shape_cast %53 : vector<12x128xbf16> to vector<3x4x128xbf16>
    %c0_35 = arith.constant 0 : index
    %c8 = arith.constant 8 : index
    %c0_36 = arith.constant 0 : index
    %c0_37 = arith.constant 0 : index
    %55 = vector.load %arg10[%c0_35, %c8, %c0_36, %c0_37] : memref<3x16x4x128xbf16, #tpu.memory_space<vmem>>, vector<3x1x4x128xbf16>
    %56 = vector.shape_cast %55 : vector<3x1x4x128xbf16> to vector<3x4x128xbf16>
    %57 = vector.shape_cast %54 : vector<3x4x128xbf16> to vector<3x1x4x128xbf16>
    tpu.vector_store %arg10[%c0_35, %c8, %c0_36, %c0_37], %57 {strides = array<i32>} : memref<3x16x4x128xbf16, #tpu.memory_space<vmem>>, vector<3x1x4x128xbf16>,
    %58 = vector.extract_strided_slice %12 {offsets = [0, 1152], sizes = [12, 128], strides = [1, 1]} : vector<12x2048xbf16> to vector<12x128xbf16>
    %59 = vector.shape_cast %58 : vector<12x128xbf16> to vector<3x4x128xbf16>
    %c0_38 = arith.constant 0 : index
    %c9 = arith.constant 9 : index
    %c0_39 = arith.constant 0 : index
    %c0_40 = arith.constant 0 : index
    %60 = vector.load %arg10[%c0_38, %c9, %c0_39, %c0_40] : memref<3x16x4x128xbf16, #tpu.memory_space<vmem>>, vector<3x1x4x128xbf16>
    %61 = vector.shape_cast %60 : vector<3x1x4x128xbf16> to vector<3x4x128xbf16>
    %62 = vector.shape_cast %59 : vector<3x4x128xbf16> to vector<3x1x4x128xbf16>
    tpu.vector_store %arg10[%c0_38, %c9, %c0_39, %c0_40], %62 {strides = array<i32>} : memref<3x16x4x128xbf16, #tpu.memory_space<vmem>>, vector<3x1x4x128xbf16>,
    %63 = vector.extract_strided_slice %12 {offsets = [0, 1280], sizes = [12, 128], strides = [1, 1]} : vector<12x2048xbf16> to vector<12x128xbf16>
    %64 = vector.shape_cast %63 : vector<12x128xbf16> to vector<3x4x128xbf16>
    %c0_41 = arith.constant 0 : index
    %c10 = arith.constant 10 : index
    %c0_42 = arith.constant 0 : index
    %c0_43 = arith.constant 0 : index
    %65 = vector.load %arg10[%c0_41, %c10, %c0_42, %c0_43] : memref<3x16x4x128xbf16, #tpu.memory_space<vmem>>, vector<3x1x4x128xbf16>
    %66 = vector.shape_cast %65 : vector<3x1x4x128xbf16> to vector<3x4x128xbf16>
    %67 = vector.shape_cast %64 : vector<3x4x128xbf16> to vector<3x1x4x128xbf16>
    tpu.vector_store %arg10[%c0_41, %c10, %c0_42, %c0_43], %67 {strides = array<i32>} : memref<3x16x4x128xbf16, #tpu.memory_space<vmem>>, vector<3x1x4x128xbf16>,
    %68 = vector.extract_strided_slice %12 {offsets = [0, 1408], sizes = [12, 128], strides = [1, 1]} : vector<12x2048xbf16> to vector<12x128xbf16>
    %69 = vector.shape_cast %68 : vector<12x128xbf16> to vector<3x4x128xbf16>
    %c0_44 = arith.constant 0 : index
    %c11 = arith.constant 11 : index
    %c0_45 = arith.constant 0 : index
    %c0_46 = arith.constant 0 : index
    %70 = vector.load %arg10[%c0_44, %c11, %c0_45, %c0_46] : memref<3x16x4x128xbf16, #tpu.memory_space<vmem>>, vector<3x1x4x128xbf16>
    %71 = vector.shape_cast %70 : vector<3x1x4x128xbf16> to vector<3x4x128xbf16>
    %72 = vector.shape_cast %69 : vector<3x4x128xbf16> to vector<3x1x4x128xbf16>
    tpu.vector_store %arg10[%c0_44, %c11, %c0_45, %c0_46], %72 {strides = array<i32>} : memref<3x16x4x128xbf16, #tpu.memory_space<vmem>>, vector<3x1x4x128xbf16>,
    %73 = vector.extract_strided_slice %12 {offsets = [0, 1536], sizes = [12, 128], strides = [1, 1]} : vector<12x2048xbf16> to vector<12x128xbf16>
    %74 = vector.shape_cast %73 : vector<12x128xbf16> to vector<3x4x128xbf16>
    %c0_47 = arith.constant 0 : index
    %c12 = arith.constant 12 : index
    %c0_48 = arith.constant 0 : index
    %c0_49 = arith.constant 0 : index
    %75 = vector.load %arg10[%c0_47, %c12, %c0_48, %c0_49] : memref<3x16x4x128xbf16, #tpu.memory_space<vmem>>, vector<3x1x4x128xbf16>
    %76 = vector.shape_cast %75 : vector<3x1x4x128xbf16> to vector<3x4x128xbf16>
    %77 = vector.shape_cast %74 : vector<3x4x128xbf16> to vector<3x1x4x128xbf16>
    tpu.vector_store %arg10[%c0_47, %c12, %c0_48, %c0_49], %77 {strides = array<i32>} : memref<3x16x4x128xbf16, #tpu.memory_space<vmem>>, vector<3x1x4x128xbf16>,
    %78 = vector.extract_strided_slice %12 {offsets = [0, 1664], sizes = [12, 128], strides = [1, 1]} : vector<12x2048xbf16> to vector<12x128xbf16>
    %79 = vector.shape_cast %78 : vector<12x128xbf16> to vector<3x4x128xbf16>
    %c0_50 = arith.constant 0 : index
    %c13 = arith.constant 13 : index
    %c0_51 = arith.constant 0 : index
    %c0_52 = arith.constant 0 : index
    %80 = vector.load %arg10[%c0_50, %c13, %c0_51, %c0_52] : memref<3x16x4x128xbf16, #tpu.memory_space<vmem>>, vector<3x1x4x128xbf16>
    %81 = vector.shape_cast %80 : vector<3x1x4x128xbf16> to vector<3x4x128xbf16>
    %82 = vector.shape_cast %79 : vector<3x4x128xbf16> to vector<3x1x4x128xbf16>
    tpu.vector_store %arg10[%c0_50, %c13, %c0_51, %c0_52], %82 {strides = array<i32>} : memref<3x16x4x128xbf16, #tpu.memory_space<vmem>>, vector<3x1x4x128xbf16>,
    %83 = vector.extract_strided_slice %12 {offsets = [0, 1792], sizes = [12, 128], strides = [1, 1]} : vector<12x2048xbf16> to vector<12x128xbf16>
    %84 = vector.shape_cast %83 : vector<12x128xbf16> to vector<3x4x128xbf16>
    %c0_53 = arith.constant 0 : index
    %c14 = arith.constant 14 : index
    %c0_54 = arith.constant 0 : index
    %c0_55 = arith.constant 0 : index
    %85 = vector.load %arg10[%c0_53, %c14, %c0_54, %c0_55] : memref<3x16x4x128xbf16, #tpu.memory_space<vmem>>, vector<3x1x4x128xbf16>
    %86 = vector.shape_cast %85 : vector<3x1x4x128xbf16> to vector<3x4x128xbf16>
    %87 = vector.shape_cast %84 : vector<3x4x128xbf16> to vector<3x1x4x128xbf16>
    tpu.vector_store %arg10[%c0_53, %c14, %c0_54, %c0_55], %87 {strides = array<i32>} : memref<3x16x4x128xbf16, #tpu.memory_space<vmem>>, vector<3x1x4x128xbf16>,
    %88 = vector.extract_strided_slice %12 {offsets = [0, 1920], sizes = [12, 128], strides = [1, 1]} : vector<12x2048xbf16> to vector<12x128xbf16>
    %89 = vector.shape_cast %88 : vector<12x128xbf16> to vector<3x4x128xbf16>
    %c0_56 = arith.constant 0 : index
    %c15 = arith.constant 15 : index
    %c0_57 = arith.constant 0 : index
    %c0_58 = arith.constant 0 : index
    %90 = vector.load %arg10[%c0_56, %c15, %c0_57, %c0_58] : memref<3x16x4x128xbf16, #tpu.memory_space<vmem>>, vector<3x1x4x128xbf16>
    %91 = vector.shape_cast %90 : vector<3x1x4x128xbf16> to vector<3x4x128xbf16>
    %92 = vector.shape_cast %89 : vector<3x4x128xbf16> to vector<3x1x4x128xbf16>
    tpu.vector_store %arg10[%c0_56, %c15, %c0_57, %c0_58], %92 {strides = array<i32>} : memref<3x16x4x128xbf16, #tpu.memory_space<vmem>>, vector<3x1x4x128xbf16>,
    %c0_59 = arith.constant 0 : index
    %c0_60 = arith.constant 0 : index
    %c0_61 = arith.constant 0 : index
    %c0_62 = arith.constant 0 : index
    %93 = vector.load %arg10[%c0_59, %c0_60, %c0_61, %c0_62] : memref<3x16x4x128xbf16, #tpu.memory_space<vmem>>, vector<3x16x4x128xbf16>
    %94 = vector.shape_cast %93 : vector<3x16x4x128xbf16> to vector<48x512xbf16>
    %c0_63 = arith.constant 0 : index
    %c0_64 = arith.constant 0 : index
    %95 = vector.load %arg2[%c0_63, %c0_64] : memref<16x48xbf16, #tpu.memory_space<vmem>>, vector<16x48xbf16>
    %cst_65 = arith.constant dense<0.000000e+00> : vector<16x512xf32>
    %96 = tpu.matmul %95, %94, %cst_65 {dimension_numbers = #tpu.dot_dimension_numbers<[1], [0], [0], [1], [0, 0, 1, 1], [], []>} : vector<16x48xbf16>, vector<48x512xbf16>, vector<16x512xf32> -> vector<16x512xf32>
    %97 = vector.shape_cast %96 : vector<16x512xf32> to vector<16x4x128xf32>
    %c0_66 = arith.constant 0 : index
    %c0_67 = arith.constant 0 : index
    %98 = vector.load %arg6[%c0_66, %c0_67] : memref<16x4xf32, #tpu.memory_space<vmem>>, vector<16x4xf32>
    %99 = vector.shape_cast %98 : vector<16x4xf32> to vector<16x4x1xf32>
    %100 = vector.broadcast %99 : vector<16x4x1xf32> to vector<16x4x128xf32>
    %101 = arith.addf %97, %100 : vector<16x4x128xf32>
    %cst_68 = arith.constant 0.000000e+00 : f32
    %102 = vector.broadcast %cst_68 : f32 to vector<16x4x128xf32>
    %103 = arith.maximumf %101, %102 : vector<16x4x128xf32>
    %104 = vector.extract_strided_slice %103 {offsets = [0, 0, 0], sizes = [1, 4, 128], strides = [1, 1, 1]} : vector<16x4x128xf32> to vector<1x4x128xf32>
    %105 = vector.shape_cast %104 : vector<1x4x128xf32> to vector<4x128xf32>
    %c0_69 = arith.constant 0 : index
    %c0_70 = arith.constant 0 : index
    %c0_71 = arith.constant 0 : index
    %106 = vector.load %arg11[%c0_69, %c0_70, %c0_71] : memref<4x16x128xf32, #tpu.memory_space<vmem>>, vector<4x1x128xf32>
    %107 = vector.shape_cast %106 : vector<4x1x128xf32> to vector<4x128xf32>
    %108 = vector.shape_cast %105 : vector<4x128xf32> to vector<4x1x128xf32>
    tpu.vector_store %arg11[%c0_69, %c0_70, %c0_71], %108 {strides = array<i32>} : memref<4x16x128xf32, #tpu.memory_space<vmem>>, vector<4x1x128xf32>,
    %109 = vector.extract_strided_slice %103 {offsets = [1, 0, 0], sizes = [1, 4, 128], strides = [1, 1, 1]} : vector<16x4x128xf32> to vector<1x4x128xf32>
    %110 = vector.shape_cast %109 : vector<1x4x128xf32> to vector<4x128xf32>
    %c0_72 = arith.constant 0 : index
    %c1_73 = arith.constant 1 : index
    %c0_74 = arith.constant 0 : index
    %111 = vector.load %arg11[%c0_72, %c1_73, %c0_74] : memref<4x16x128xf32, #tpu.memory_space<vmem>>, vector<4x1x128xf32>
    %112 = vector.shape_cast %111 : vector<4x1x128xf32> to vector<4x128xf32>
    %113 = vector.shape_cast %110 : vector<4x128xf32> to vector<4x1x128xf32>
    tpu.vector_store %arg11[%c0_72, %c1_73, %c0_74], %113 {strides = array<i32>} : memref<4x16x128xf32, #tpu.memory_space<vmem>>, vector<4x1x128xf32>,
    %114 = vector.extract_strided_slice %103 {offsets = [2, 0, 0], sizes = [1, 4, 128], strides = [1, 1, 1]} : vector<16x4x128xf32> to vector<1x4x128xf32>
    %115 = vector.shape_cast %114 : vector<1x4x128xf32> to vector<4x128xf32>
    %c0_75 = arith.constant 0 : index
    %c2_76 = arith.constant 2 : index
    %c0_77 = arith.constant 0 : index
    %116 = vector.load %arg11[%c0_75, %c2_76, %c0_77] : memref<4x16x128xf32, #tpu.memory_space<vmem>>, vector<4x1x128xf32>
    %117 = vector.shape_cast %116 : vector<4x1x128xf32> to vector<4x128xf32>
    %118 = vector.shape_cast %115 : vector<4x128xf32> to vector<4x1x128xf32>
    tpu.vector_store %arg11[%c0_75, %c2_76, %c0_77], %118 {strides = array<i32>} : memref<4x16x128xf32, #tpu.memory_space<vmem>>, vector<4x1x128xf32>,
    %119 = vector.extract_strided_slice %103 {offsets = [3, 0, 0], sizes = [1, 4, 128], strides = [1, 1, 1]} : vector<16x4x128xf32> to vector<1x4x128xf32>
    %120 = vector.shape_cast %119 : vector<1x4x128xf32> to vector<4x128xf32>
    %c0_78 = arith.constant 0 : index
    %c3_79 = arith.constant 3 : index
    %c0_80 = arith.constant 0 : index
    %121 = vector.load %arg11[%c0_78, %c3_79, %c0_80] : memref<4x16x128xf32, #tpu.memory_space<vmem>>, vector<4x1x128xf32>
    %122 = vector.shape_cast %121 : vector<4x1x128xf32> to vector<4x128xf32>
    %123 = vector.shape_cast %120 : vector<4x128xf32> to vector<4x1x128xf32>
    tpu.vector_store %arg11[%c0_78, %c3_79, %c0_80], %123 {strides = array<i32>} : memref<4x16x128xf32, #tpu.memory_space<vmem>>, vector<4x1x128xf32>,
    %124 = vector.extract_strided_slice %103 {offsets = [4, 0, 0], sizes = [1, 4, 128], strides = [1, 1, 1]} : vector<16x4x128xf32> to vector<1x4x128xf32>
    %125 = vector.shape_cast %124 : vector<1x4x128xf32> to vector<4x128xf32>
    %c0_81 = arith.constant 0 : index
    %c4_82 = arith.constant 4 : index
    %c0_83 = arith.constant 0 : index
    %126 = vector.load %arg11[%c0_81, %c4_82, %c0_83] : memref<4x16x128xf32, #tpu.memory_space<vmem>>, vector<4x1x128xf32>
    %127 = vector.shape_cast %126 : vector<4x1x128xf32> to vector<4x128xf32>
    %128 = vector.shape_cast %125 : vector<4x128xf32> to vector<4x1x128xf32>
    tpu.vector_store %arg11[%c0_81, %c4_82, %c0_83], %128 {strides = array<i32>} : memref<4x16x128xf32, #tpu.memory_space<vmem>>, vector<4x1x128xf32>,
    %129 = vector.extract_strided_slice %103 {offsets = [5, 0, 0], sizes = [1, 4, 128], strides = [1, 1, 1]} : vector<16x4x128xf32> to vector<1x4x128xf32>
    %130 = vector.shape_cast %129 : vector<1x4x128xf32> to vector<4x128xf32>
    %c0_84 = arith.constant 0 : index
    %c5_85 = arith.constant 5 : index
    %c0_86 = arith.constant 0 : index
    %131 = vector.load %arg11[%c0_84, %c5_85, %c0_86] : memref<4x16x128xf32, #tpu.memory_space<vmem>>, vector<4x1x128xf32>
    %132 = vector.shape_cast %131 : vector<4x1x128xf32> to vector<4x128xf32>
    %133 = vector.shape_cast %130 : vector<4x128xf32> to vector<4x1x128xf32>
    tpu.vector_store %arg11[%c0_84, %c5_85, %c0_86], %133 {strides = array<i32>} : memref<4x16x128xf32, #tpu.memory_space<vmem>>, vector<4x1x128xf32>,
    %134 = vector.extract_strided_slice %103 {offsets = [6, 0, 0], sizes = [1, 4, 128], strides = [1, 1, 1]} : vector<16x4x128xf32> to vector<1x4x128xf32>
    %135 = vector.shape_cast %134 : vector<1x4x128xf32> to vector<4x128xf32>
    %c0_87 = arith.constant 0 : index
    %c6_88 = arith.constant 6 : index
    %c0_89 = arith.constant 0 : index
    %136 = vector.load %arg11[%c0_87, %c6_88, %c0_89] : memref<4x16x128xf32, #tpu.memory_space<vmem>>, vector<4x1x128xf32>
    %137 = vector.shape_cast %136 : vector<4x1x128xf32> to vector<4x128xf32>
    %138 = vector.shape_cast %135 : vector<4x128xf32> to vector<4x1x128xf32>
    tpu.vector_store %arg11[%c0_87, %c6_88, %c0_89], %138 {strides = array<i32>} : memref<4x16x128xf32, #tpu.memory_space<vmem>>, vector<4x1x128xf32>,
    %139 = vector.extract_strided_slice %103 {offsets = [7, 0, 0], sizes = [1, 4, 128], strides = [1, 1, 1]} : vector<16x4x128xf32> to vector<1x4x128xf32>
    %140 = vector.shape_cast %139 : vector<1x4x128xf32> to vector<4x128xf32>
    %c0_90 = arith.constant 0 : index
    %c7_91 = arith.constant 7 : index
    %c0_92 = arith.constant 0 : index
    %141 = vector.load %arg11[%c0_90, %c7_91, %c0_92] : memref<4x16x128xf32, #tpu.memory_space<vmem>>, vector<4x1x128xf32>
    %142 = vector.shape_cast %141 : vector<4x1x128xf32> to vector<4x128xf32>
    %143 = vector.shape_cast %140 : vector<4x128xf32> to vector<4x1x128xf32>
    tpu.vector_store %arg11[%c0_90, %c7_91, %c0_92], %143 {strides = array<i32>} : memref<4x16x128xf32, #tpu.memory_space<vmem>>, vector<4x1x128xf32>,
    %144 = vector.extract_strided_slice %103 {offsets = [8, 0, 0], sizes = [1, 4, 128], strides = [1, 1, 1]} : vector<16x4x128xf32> to vector<1x4x128xf32>
    %145 = vector.shape_cast %144 : vector<1x4x128xf32> to vector<4x128xf32>
    %c0_93 = arith.constant 0 : index
    %c8_94 = arith.constant 8 : index
    %c0_95 = arith.constant 0 : index
    %146 = vector.load %arg11[%c0_93, %c8_94, %c0_95] : memref<4x16x128xf32, #tpu.memory_space<vmem>>, vector<4x1x128xf32>
    %147 = vector.shape_cast %146 : vector<4x1x128xf32> to vector<4x128xf32>
    %148 = vector.shape_cast %145 : vector<4x128xf32> to vector<4x1x128xf32>
    tpu.vector_store %arg11[%c0_93, %c8_94, %c0_95], %148 {strides = array<i32>} : memref<4x16x128xf32, #tpu.memory_space<vmem>>, vector<4x1x128xf32>,
    %149 = vector.extract_strided_slice %103 {offsets = [9, 0, 0], sizes = [1, 4, 128], strides = [1, 1, 1]} : vector<16x4x128xf32> to vector<1x4x128xf32>
    %150 = vector.shape_cast %149 : vector<1x4x128xf32> to vector<4x128xf32>
    %c0_96 = arith.constant 0 : index
    %c9_97 = arith.constant 9 : index
    %c0_98 = arith.constant 0 : index
    %151 = vector.load %arg11[%c0_96, %c9_97, %c0_98] : memref<4x16x128xf32, #tpu.memory_space<vmem>>, vector<4x1x128xf32>
    %152 = vector.shape_cast %151 : vector<4x1x128xf32> to vector<4x128xf32>
    %153 = vector.shape_cast %150 : vector<4x128xf32> to vector<4x1x128xf32>
    tpu.vector_store %arg11[%c0_96, %c9_97, %c0_98], %153 {strides = array<i32>} : memref<4x16x128xf32, #tpu.memory_space<vmem>>, vector<4x1x128xf32>,
    %154 = vector.extract_strided_slice %103 {offsets = [10, 0, 0], sizes = [1, 4, 128], strides = [1, 1, 1]} : vector<16x4x128xf32> to vector<1x4x128xf32>
    %155 = vector.shape_cast %154 : vector<1x4x128xf32> to vector<4x128xf32>
    %c0_99 = arith.constant 0 : index
    %c10_100 = arith.constant 10 : index
    %c0_101 = arith.constant 0 : index
    %156 = vector.load %arg11[%c0_99, %c10_100, %c0_101] : memref<4x16x128xf32, #tpu.memory_space<vmem>>, vector<4x1x128xf32>
    %157 = vector.shape_cast %156 : vector<4x1x128xf32> to vector<4x128xf32>
    %158 = vector.shape_cast %155 : vector<4x128xf32> to vector<4x1x128xf32>
    tpu.vector_store %arg11[%c0_99, %c10_100, %c0_101], %158 {strides = array<i32>} : memref<4x16x128xf32, #tpu.memory_space<vmem>>, vector<4x1x128xf32>,
    %159 = vector.extract_strided_slice %103 {offsets = [11, 0, 0], sizes = [1, 4, 128], strides = [1, 1, 1]} : vector<16x4x128xf32> to vector<1x4x128xf32>
    %160 = vector.shape_cast %159 : vector<1x4x128xf32> to vector<4x128xf32>
    %c0_102 = arith.constant 0 : index
    %c11_103 = arith.constant 11 : index
    %c0_104 = arith.constant 0 : index
    %161 = vector.load %arg11[%c0_102, %c11_103, %c0_104] : memref<4x16x128xf32, #tpu.memory_space<vmem>>, vector<4x1x128xf32>
    %162 = vector.shape_cast %161 : vector<4x1x128xf32> to vector<4x128xf32>
    %163 = vector.shape_cast %160 : vector<4x128xf32> to vector<4x1x128xf32>
    tpu.vector_store %arg11[%c0_102, %c11_103, %c0_104], %163 {strides = array<i32>} : memref<4x16x128xf32, #tpu.memory_space<vmem>>, vector<4x1x128xf32>,
    %164 = vector.extract_strided_slice %103 {offsets = [12, 0, 0], sizes = [1, 4, 128], strides = [1, 1, 1]} : vector<16x4x128xf32> to vector<1x4x128xf32>
    %165 = vector.shape_cast %164 : vector<1x4x128xf32> to vector<4x128xf32>
    %c0_105 = arith.constant 0 : index
    %c12_106 = arith.constant 12 : index
    %c0_107 = arith.constant 0 : index
    %166 = vector.load %arg11[%c0_105, %c12_106, %c0_107] : memref<4x16x128xf32, #tpu.memory_space<vmem>>, vector<4x1x128xf32>
    %167 = vector.shape_cast %166 : vector<4x1x128xf32> to vector<4x128xf32>
    %168 = vector.shape_cast %165 : vector<4x128xf32> to vector<4x1x128xf32>
    tpu.vector_store %arg11[%c0_105, %c12_106, %c0_107], %168 {strides = array<i32>} : memref<4x16x128xf32, #tpu.memory_space<vmem>>, vector<4x1x128xf32>,
    %169 = vector.extract_strided_slice %103 {offsets = [13, 0, 0], sizes = [1, 4, 128], strides = [1, 1, 1]} : vector<16x4x128xf32> to vector<1x4x128xf32>
    %170 = vector.shape_cast %169 : vector<1x4x128xf32> to vector<4x128xf32>
    %c0_108 = arith.constant 0 : index
    %c13_109 = arith.constant 13 : index
    %c0_110 = arith.constant 0 : index
    %171 = vector.load %arg11[%c0_108, %c13_109, %c0_110] : memref<4x16x128xf32, #tpu.memory_space<vmem>>, vector<4x1x128xf32>
    %172 = vector.shape_cast %171 : vector<4x1x128xf32> to vector<4x128xf32>
    %173 = vector.shape_cast %170 : vector<4x128xf32> to vector<4x1x128xf32>
    tpu.vector_store %arg11[%c0_108, %c13_109, %c0_110], %173 {strides = array<i32>} : memref<4x16x128xf32, #tpu.memory_space<vmem>>, vector<4x1x128xf32>,
    %174 = vector.extract_strided_slice %103 {offsets = [14, 0, 0], sizes = [1, 4, 128], strides = [1, 1, 1]} : vector<16x4x128xf32> to vector<1x4x128xf32>
    %175 = vector.shape_cast %174 : vector<1x4x128xf32> to vector<4x128xf32>
    %c0_111 = arith.constant 0 : index
    %c14_112 = arith.constant 14 : index
    %c0_113 = arith.constant 0 : index
    %176 = vector.load %arg11[%c0_111, %c14_112, %c0_113] : memref<4x16x128xf32, #tpu.memory_space<vmem>>, vector<4x1x128xf32>
    %177 = vector.shape_cast %176 : vector<4x1x128xf32> to vector<4x128xf32>
    %178 = vector.shape_cast %175 : vector<4x128xf32> to vector<4x1x128xf32>
    tpu.vector_store %arg11[%c0_111, %c14_112, %c0_113], %178 {strides = array<i32>} : memref<4x16x128xf32, #tpu.memory_space<vmem>>, vector<4x1x128xf32>,
    %179 = vector.extract_strided_slice %103 {offsets = [15, 0, 0], sizes = [1, 4, 128], strides = [1, 1, 1]} : vector<16x4x128xf32> to vector<1x4x128xf32>
    %180 = vector.shape_cast %179 : vector<1x4x128xf32> to vector<4x128xf32>
    %c0_114 = arith.constant 0 : index
    %c15_115 = arith.constant 15 : index
    %c0_116 = arith.constant 0 : index
    %181 = vector.load %arg11[%c0_114, %c15_115, %c0_116] : memref<4x16x128xf32, #tpu.memory_space<vmem>>, vector<4x1x128xf32>
    %182 = vector.shape_cast %181 : vector<4x1x128xf32> to vector<4x128xf32>
    %183 = vector.shape_cast %180 : vector<4x128xf32> to vector<4x1x128xf32>
    tpu.vector_store %arg11[%c0_114, %c15_115, %c0_116], %183 {strides = array<i32>} : memref<4x16x128xf32, #tpu.memory_space<vmem>>, vector<4x1x128xf32>,
    %c0_117 = arith.constant 0 : index
    %c0_118 = arith.constant 0 : index
    %c0_119 = arith.constant 0 : index
    %184 = vector.load %arg11[%c0_117, %c0_118, %c0_119] : memref<4x16x128xf32, #tpu.memory_space<vmem>>, vector<4x16x128xf32>
    %185 = vector.shape_cast %184 : vector<4x16x128xf32> to vector<4x2048xf32>
    %186 = arith.truncf %185 : vector<4x2048xf32> to vector<4x2048xbf16>
    %c0_120 = arith.constant 0 : index
    %c0_121 = arith.constant 0 : index
    %187 = vector.load %arg7[%c0_120, %c0_121] : memref<16x4xbf16, #tpu.memory_space<vmem>>, vector<16x4xbf16>
    %cst_122 = arith.constant dense<0.000000e+00> : vector<16x2048xf32>
    %188 = tpu.matmul %187, %186, %cst_122 {dimension_numbers = #tpu.dot_dimension_numbers<[1], [0], [0], [1], [0, 0, 1, 1], [], []>} : vector<16x4xbf16>, vector<4x2048xbf16>, vector<16x2048xf32> -> vector<16x2048xf32>
    %c0_123 = arith.constant 0 : index
    %c0_124 = arith.constant 0 : index
    %189 = vector.load %arg8[%c0_123, %c0_124] : memref<16x1xf32, #tpu.memory_space<vmem>>, vector<16x1xf32>
    %190 = vector.broadcast %189 : vector<16x1xf32> to vector<16x2048xf32>
    %191 = arith.addf %188, %190 : vector<16x2048xf32>
    %cst_125 = arith.constant 0.000000e+00 : f32
    %192 = vector.broadcast %cst_125 : f32 to vector<16x2048xf32>
    %193 = arith.maximumf %191, %192 : vector<16x2048xf32>
    %194 = vector.shape_cast %193 : vector<16x2048xf32> to vector<16x16x128xf32>
    %c0_126 = arith.constant 0 : index
    %c0_127 = arith.constant 0 : index
    %c0_128 = arith.constant 0 : index
    %195 = vector.load %arg9[%c0_126, %c0_127, %c0_128] : memref<16x16x128xf32, #tpu.memory_space<vmem>>, vector<16x16x128xf32>
    tpu.vector_store %arg9[%c0_126, %c0_127, %c0_128], %194 {strides = array<i32>} : memref<16x16x128xf32, #tpu.memory_space<vmem>>, vector<16x16x128xf32>,
    return
  }
  func.func @transform_0(%arg0: i32) -> (i32, i32, i32) {
    %c0_i32 = arith.constant 0 : i32
    %c0_i32_0 = arith.constant 0 : i32
    %c0_i32_1 = arith.constant 0 : i32
    return %c0_i32, %c0_i32_0, %arg0 : i32, i32, i32
  }
  func.func @transform_1(%arg0: i32) -> (i32, i32) {
    %c0_i32 = arith.constant 0 : i32
    %c0_i32_0 = arith.constant 0 : i32
    %c0_i32_1 = arith.constant 0 : i32
    return %c0_i32, %c0_i32_0 : i32, i32
  }
  func.func @transform_2(%arg0: i32) -> (i32, i32) {
    %c0_i32 = arith.constant 0 : i32
    %c0_i32_0 = arith.constant 0 : i32
    %c0_i32_1 = arith.constant 0 : i32
    return %c0_i32, %c0_i32_0 : i32, i32
  }
  func.func @transform_3(%arg0: i32) -> (i32, i32) {
    %c0_i32 = arith.constant 0 : i32
    %c0_i32_0 = arith.constant 0 : i32
    %c0_i32_1 = arith.constant 0 : i32
    return %c0_i32, %c0_i32_0 : i32, i32
  }
  func.func @transform_4(%arg0: i32) -> (i32, i32) {
    %c0_i32 = arith.constant 0 : i32
    %c0_i32_0 = arith.constant 0 : i32
    %c0_i32_1 = arith.constant 0 : i32
    return %c0_i32, %c0_i32_0 : i32, i32
  }
  func.func @transform_5(%arg0: i32) -> (i32, i32) {
    %c0_i32 = arith.constant 0 : i32
    %c0_i32_0 = arith.constant 0 : i32
    %c0_i32_1 = arith.constant 0 : i32
    return %c0_i32, %c0_i32_0 : i32, i32
  }
  func.func @transform_6(%arg0: i32) -> (i32, i32) {
    %c0_i32 = arith.constant 0 : i32
    %c0_i32_0 = arith.constant 0 : i32
    %c0_i32_1 = arith.constant 0 : i32
    return %c0_i32, %c0_i32_0 : i32, i32
  }
  func.func @transform_7(%arg0: i32) -> (i32, i32) {
    %c0_i32 = arith.constant 0 : i32
    %c0_i32_0 = arith.constant 0 : i32
    %c0_i32_1 = arith.constant 0 : i32
    return %c0_i32, %c0_i32_0 : i32, i32
  }
  func.func @transform_8(%arg0: i32) -> (i32, i32, i32) {
    %c0_i32 = arith.constant 0 : i32
    %c0_i32_0 = arith.constant 0 : i32
    %c0_i32_1 = arith.constant 0 : i32
    return %c0_i32, %c0_i32_0, %arg0 : i32, i32, i32
  }
}

</mosaic_0001>

<llo_original>
// kernel: mul.30
$region0: #{mul.30}
  #allocation0 [shape = 's32[1]{0}', space=sflag, size = 0x4, scoped, tag = 'scoped memory for mul.30']
  %s0 = inlined_call_operand.vmem [shape: f32[12], index: 0, kind: input, shape index: {}]
  %s1 = inlined_call_operand.vmem [shape: f32[12], index: 1, kind: input, shape index: {}]
  %s2 = inlined_call_operand.vmem [shape: bf16[12], index: 2, kind: output, shape index: {}]
  %v3 = vld [vmem:[%s0] sm:$0x1]
  %v4 = vld [vmem:[%s1] sm:$0x1]
  %5 = xla_tuple %v3, %v4
  %6 = xla_tuple %5
  %v7 = vmul.f32 %v3, %v4
  %8 = xla_tuple %v7
  %v9 = vpack.c.bf16 0.0, %v7
  %10 = vst [vmem:[%s2] sm:$0x1] %v9

// kernel: tile.9
$region0: #{tile.9}
  #allocation0 [shape = 's32[1]{0}', space=sflag, size = 0x4, scoped, tag = 'scoped memory for tile.9']
  %s0 = inlined_call_operand.vmem [shape: f32[4], index: 0, kind: input, shape index: {}]
  %s1 = inlined_call_operand.vmem [shape: f32[3,4], index: 1, kind: output, shape index: {}]
  // Predicated region
  $region2: #{tile.9} parent=0 // pred_check
    _
  $region3: #{tile.9} parent=0 // pred_check_branch
    %3 = sbr.rel (0) target = $region5
  $region4: #{tile.9} parent=0 // pred_region
    _
  $region5: #{tile.9} parent=0 // pred_fallthru
    _
  %v4 = vld [vmem:[%s0] ss:$0 sm:$0xff]
  %5 = vst [vmem:[%s1] sm:$0xf] %v4

// kernel: mul.27
$region0: #{mul.27}
  %s0 = inlined_call_operand.vmem [shape: f32[3,4], index: 0, kind: input, shape index: {}]
  %s1 = inlined_call_operand.vmem [shape: f32[12], index: 1, kind: output, shape index: {}]
  $region1: #{mul.27} parent=0
    #allocation0 [shape = 'u8[4096]{0}', space=vmem, size = 0x1000, scoped, tag = 'scoped mem for output reshape']
    #allocation1 [shape = 'u8[4096]{0}', space=vmem, size = 0x1000, scoped, tag = 'scoped mem for input reshape']
    %s3 = sshll.u32 1, 4
    %s4 = ssub.s32 %s3, 1
    %v5 = vld [vmem:[%s0] sm:%s4]
    %6 = vst [vmem:[#allocation1] sm:%s4] %v5
    %v7 = vld [vmem:[#allocation1] sm:$0x1]
    %vm8 = vcmask 31744
    %9 = vst.msk [vmem:[#allocation0] sm:$0x1] %vm8, %v7
    %s10 = scalar_lea.vmem [#allocation1], 2
    %v11 = vld [vmem:[%s10] sm:$0x1]
    %12 = vrot.lane.b32.xlu0 %v11, 8
    %v13 = vpop.permute.xlu0 %12
    %vm14 = vcmask 97344
    %15 = vst.msk [vmem:[#allocation0] sm:$0x1] %vm14, %v13
    %s16 = scalar_lea.vmem [#allocation1], 1
    %v17 = vld [vmem:[%s16] sm:$0x1]
    %18 = vrot.lane.b32.xlu0 %v17, 4
    %v19 = vpop.permute.xlu0 %18
    %vm20 = vcmask 64544
    %21 = vst.msk [vmem:[#allocation0] sm:$0x1] %vm20, %v19
    %s23 = sshll.u32 1, 1
    %s24 = ssub.s32 %s23, 1
    %v26 = vld [vmem:[#allocation0] sm:%s24]
    %s27 = sshll.u32 1, 1
    %s28 = ssub.s32 %s27, 1
    %29 = vst [vmem:[%s1] sm:%s28] %v26

// kernel: spatial_bottleneck_block.1
$region0: #{spatial_bottleneck_block.1}
  #allocation0 [shape = 'u32[]', space=smem, size = 0x4, offset = 0x4, fixed_abs, tag = 'smem constant byte address 0x4 - core index']
  #allocation1 [shape = 'u32[144,128]{1,0:T(1,128)}', space=vmem, size = 0x12000, scoped, tag = 'internal scratch']
  #allocation2 [shape = 'bf16[3,16,4,128]{3,2,1,0:T(4,128)(2,1)}', space=vmem, size = 0xc000, scoped, tag = 'scratch operand']
  #allocation3 [shape = 'f32[4,16,128]{2,1,0:T(8,128)}', space=vmem, size = 0x8000, scoped, tag = 'scratch operand']
  %s0 = inlined_call_operand.vmem [shape: bf16[4,16,256], index: 0, kind: input, shape index: {}]
  %s1 = inlined_call_operand.vmem [shape: bf16[16,48], index: 1, kind: input, shape index: {}]
  %s2 = inlined_call_operand.vmem [shape: bf16[4,4], index: 2, kind: input, shape index: {}]
  %s3 = inlined_call_operand.vmem [shape: f32[4,1], index: 3, kind: input, shape index: {}]
  %s4 = inlined_call_operand.vmem [shape: bf16[12,4], index: 4, kind: input, shape index: {}]
  %s5 = inlined_call_operand.vmem [shape: f32[16,4], index: 5, kind: input, shape index: {}]
  %s6 = inlined_call_operand.vmem [shape: bf16[16,4], index: 6, kind: input, shape index: {}]
  %s7 = inlined_call_operand.vmem [shape: f32[16,1], index: 7, kind: input, shape index: {}]
  %s8 = inlined_call_operand.vmem [shape: f32[16,16,256], index: 8, kind: output, shape index: {}]
  %s9 = sld [smem:[#allocation0]]
  $region140: #{spatial_bottleneck_block.1} parent=0
    _
  %s11 = ssub.s32 1, %s9
  %s12 = scalar_select 0, %s11, %s9
  $region1: #{spatial_bottleneck_block.1} parent=0
    #allocation4 [shape = 'u8[32768]{0}', space=vmem, size = 0x8000, scoped, tag = 'input window, operand 0']
    #allocation5 [shape = 'u8[262144]{0}', space=vmem, size = 0x40000, scoped, tag = 'output window, operand 0']
    loop: start=0, step=1, limit=4
    $region2: #{spatial_bottleneck_block.1} parent=1 // loop_pre_header
      _
    $region3: #{spatial_bottleneck_block.1} parent=1 // loop_header
      %s14 = sphi 0, %s18
      %p15 = scmp.ge.s32.totalorder %s14, 4
      %s24 = sphi 0, %s26
      %s27 = sphi 0, %s24
      %s28 = sphi 0, %s27
      %s44 = sphi 0, %s28
      %s48 = sphi 0, %s48
      %s50 = sphi 0, %s48
      %s51 = sphi 0, %s50
      %s65 = sphi 0, %s51
      %s69 = sphi 0, %s69
      %s71 = sphi 0, %s69
      %s72 = sphi 0, %s71
      %s86 = sphi 0, %s72
      %s90 = sphi 0, %s90
      %s92 = sphi 0, %s90
      %s93 = sphi 0, %s92
      %s107 = sphi 0, %s93
      %s111 = sphi 0, %s111
      %s113 = sphi 0, %s111
      %s114 = sphi 0, %s113
      %s128 = sphi 0, %s114
      %s132 = sphi 0, %s132
      %s134 = sphi 0, %s132
      %s135 = sphi 0, %s134
      %s149 = sphi 0, %s135
      %s153 = sphi 0, %s153
      %s155 = sphi 0, %s153
      %s156 = sphi 0, %s155
      %s170 = sphi 0, %s156
      %s174 = sphi 0, %s174
      %s176 = sphi 0, %s174
      %s177 = sphi 0, %s176
      %s191 = sphi 0, %s177
      %s197 = sphi 0, %s199
      %s200 = sphi 0, %s197
      %s201 = sphi 0, %s200
      %s217 = sphi 0, %s201
    $region4: #{spatial_bottleneck_block.1} parent=1 // loop_header_branch
      %17 = sbr.rel (%p15) target = $region8
    $region5: #{spatial_bottleneck_block.1} parent=1 // loop_body
      %s19 = ssub.s32 %s14, 1
      %s20 = ssub.s32 %s14, 2
      %s21 = sadd.s32 %s14, 1
      %s22 = ssub.s32 %s14, %s21
      %p23 = scmp.eq.s32.totalorder %s22, 0
      %s25 = sadd.s32 %s24, 1
      %s26 = scalar_select %p23, %s24, %s25
      %p29 = pneg %p23
      %p30 = scmp.eq.s32.totalorder %s14, 1
      %p31 = por %p29, %p30
      %p32 = scmp.ne.s32.totalorder %s24, %s27
      %p33 = scmp.eq.s32.totalorder %s14, 0
      %p34 = por %p32, %p33
      %p35 = scmp.ne.s32.totalorder %s24, %s27
      %p36 = scmp.eq.s32.totalorder %s19, 1
      %p37 = por %p35, %p36
      %p38 = scmp.ne.s32.totalorder %s27, %s28
      %p39 = scmp.eq.s32.totalorder %s19, 0
      %p40 = por %p38, %p39
      %p41 = scmp.ne.s32.totalorder %s27, %s28
      %p42 = scmp.eq.s32.totalorder %s20, 1
      %p43 = por %p41, %p42
      %p45 = scmp.ne.s32.totalorder %s28, %s44
      %p46 = scmp.eq.s32.totalorder %s20, 0
      %p47 = por %p45, %p46
      %s49 = sadd.s32 %s48, 1
      %p52 = scmp.eq.s32.totalorder %s14, 1
      %p53 = scmp.ne.s32.totalorder %s48, %s50
      %p54 = scmp.eq.s32.totalorder %s14, 0
      %p55 = por %p53, %p54
      %p56 = scmp.ne.s32.totalorder %s48, %s50
      %p57 = scmp.eq.s32.totalorder %s19, 1
      %p58 = por %p56, %p57
      %p59 = scmp.ne.s32.totalorder %s50, %s51
      %p60 = scmp.eq.s32.totalorder %s19, 0
      %p61 = por %p59, %p60
      %p62 = scmp.ne.s32.totalorder %s50, %s51
      %p63 = scmp.eq.s32.totalorder %s20, 1
      %p64 = por %p62, %p63
      %p66 = scmp.ne.s32.totalorder %s51, %s65
      %p67 = scmp.eq.s32.totalorder %s20, 0
      %p68 = por %p66, %p67
      %s70 = sadd.s32 %s69, 1
      %p73 = scmp.eq.s32.totalorder %s14, 1
      %p74 = scmp.ne.s32.totalorder %s69, %s71
      %p75 = scmp.eq.s32.totalorder %s14, 0
      %p76 = por %p74, %p75
      %p77 = scmp.ne.s32.totalorder %s69, %s71
      %p78 = scmp.eq.s32.totalorder %s19, 1
      %p79 = por %p77, %p78
      %p80 = scmp.ne.s32.totalorder %s71, %s72
      %p81 = scmp.eq.s32.totalorder %s19, 0
      %p82 = por %p80, %p81
      %p83 = scmp.ne.s32.totalorder %s71, %s72
      %p84 = scmp.eq.s32.totalorder %s20, 1
      %p85 = por %p83, %p84
      %p87 = scmp.ne.s32.totalorder %s72, %s86
      %p88 = scmp.eq.s32.totalorder %s20, 0
      %p89 = por %p87, %p88
      %s91 = sadd.s32 %s90, 1
      %p94 = scmp.eq.s32.totalorder %s14, 1
      %p95 = scmp.ne.s32.totalorder %s90, %s92
      %p96 = scmp.eq.s32.totalorder %s14, 0
      %p97 = por %p95, %p96
      %p98 = scmp.ne.s32.totalorder %s90, %s92
      %p99 = scmp.eq.s32.totalorder %s19, 1
      %p100 = por %p98, %p99
      %p101 = scmp.ne.s32.totalorder %s92, %s93
      %p102 = scmp.eq.s32.totalorder %s19, 0
      %p103 = por %p101, %p102
      %p104 = scmp.ne.s32.totalorder %s92, %s93
      %p105 = scmp.eq.s32.totalorder %s20, 1
      %p106 = por %p104, %p105
      %p108 = scmp.ne.s32.totalorder %s93, %s107
      %p109 = scmp.eq.s32.totalorder %s20, 0
      %p110 = por %p108, %p109
      %s112 = sadd.s32 %s111, 1
      %p115 = scmp.eq.s32.totalorder %s14, 1
      %p116 = scmp.ne.s32.totalorder %s111, %s113
      %p117 = scmp.eq.s32.totalorder %s14, 0
      %p118 = por %p116, %p117
      %p119 = scmp.ne.s32.totalorder %s111, %s113
      %p120 = scmp.eq.s32.totalorder %s19, 1
      %p121 = por %p119, %p120
      %p122 = scmp.ne.s32.totalorder %s113, %s114
      %p123 = scmp.eq.s32.totalorder %s19, 0
      %p124 = por %p122, %p123
      %p125 = scmp.ne.s32.totalorder %s113, %s114
      %p126 = scmp.eq.s32.totalorder %s20, 1
      %p127 = por %p125, %p126
      %p129 = scmp.ne.s32.totalorder %s114, %s128
      %p130 = scmp.eq.s32.totalorder %s20, 0
      %p131 = por %p129, %p130
      %s133 = sadd.s32 %s132, 1
      %p136 = scmp.eq.s32.totalorder %s14, 1
      %p137 = scmp.ne.s32.totalorder %s132, %s134
      %p138 = scmp.eq.s32.totalorder %s14, 0
      %p139 = por %p137, %p138
      %p140 = scmp.ne.s32.totalorder %s132, %s134
      %p141 = scmp.eq.s32.totalorder %s19, 1
      %p142 = por %p140, %p141
      %p143 = scmp.ne.s32.totalorder %s134, %s135
      %p144 = scmp.eq.s32.totalorder %s19, 0
      %p145 = por %p143, %p144
      %p146 = scmp.ne.s32.totalorder %s134, %s135
      %p147 = scmp.eq.s32.totalorder %s20, 1
      %p148 = por %p146, %p147
      %p150 = scmp.ne.s32.totalorder %s135, %s149
      %p151 = scmp.eq.s32.totalorder %s20, 0
      %p152 = por %p150, %p151
      %s154 = sadd.s32 %s153, 1
      %p157 = scmp.eq.s32.totalorder %s14, 1
      %p158 = scmp.ne.s32.totalorder %s153, %s155
      %p159 = scmp.eq.s32.totalorder %s14, 0
      %p160 = por %p158, %p159
      %p161 = scmp.ne.s32.totalorder %s153, %s155
      %p162 = scmp.eq.s32.totalorder %s19, 1
      %p163 = por %p161, %p162
      %p164 = scmp.ne.s32.totalorder %s155, %s156
      %p165 = scmp.eq.s32.totalorder %s19, 0
      %p166 = por %p164, %p165
      %p167 = scmp.ne.s32.totalorder %s155, %s156
      %p168 = scmp.eq.s32.totalorder %s20, 1
      %p169 = por %p167, %p168
      %p171 = scmp.ne.s32.totalorder %s156, %s170
      %p172 = scmp.eq.s32.totalorder %s20, 0
      %p173 = por %p171, %p172
      %s175 = sadd.s32 %s174, 1
      %p178 = scmp.eq.s32.totalorder %s14, 1
      %p179 = scmp.ne.s32.totalorder %s174, %s176
      %p180 = scmp.eq.s32.totalorder %s14, 0
      %p181 = por %p179, %p180
      %p182 = scmp.ne.s32.totalorder %s174, %s176
      %p183 = scmp.eq.s32.totalorder %s19, 1
      %p184 = por %p182, %p183
      %p185 = scmp.ne.s32.totalorder %s176, %s177
      %p186 = scmp.eq.s32.totalorder %s19, 0
      %p187 = por %p185, %p186
      %p188 = scmp.ne.s32.totalorder %s176, %s177
      %p189 = scmp.eq.s32.totalorder %s20, 1
      %p190 = por %p188, %p189
      %p192 = scmp.ne.s32.totalorder %s177, %s191
      %p193 = scmp.eq.s32.totalorder %s20, 0
      %p194 = por %p192, %p193
      %s195 = ssub.s32 %s14, %s21
      %p196 = scmp.eq.s32.totalorder %s195, 0
      %s198 = sadd.s32 %s197, 1
      %s199 = scalar_select %p196, %s197, %s198
      %p202 = pneg %p196
      %p203 = scmp.eq.s32.totalorder %s14, 1
      %p204 = por %p202, %p203
      %p205 = scmp.ne.s32.totalorder %s197, %s200
      %p206 = scmp.eq.s32.totalorder %s14, 0
      %p207 = por %p205, %p206
      %p208 = scmp.ne.s32.totalorder %s197, %s200
      %p209 = scmp.eq.s32.totalorder %s19, 1
      %p210 = por %p208, %p209
      %p211 = scmp.ne.s32.totalorder %s200, %s201
      %p212 = scmp.eq.s32.totalorder %s19, 0
      %p213 = por %p211, %p212
      %p214 = scmp.ne.s32.totalorder %s200, %s201
      %p215 = scmp.eq.s32.totalorder %s20, 1
      %p216 = por %p214, %p215
      %p218 = scmp.ne.s32.totalorder %s201, %s217
      %p219 = scmp.eq.s32.totalorder %s20, 0
      %p220 = por %p218, %p219
      %p221 = scmp.le.s32.totalorder 1, %s14
      %p222 = scmp.lt.s32.totalorder %s14, 3
      %p223 = pnand %p221, %p222
      %p224 = pneg %p223
      // Predicated region
      $region9: #{spatial_bottleneck_block.1} parent=5 // pred_check
        _
      $region10: #{spatial_bottleneck_block.1} parent=5 // pred_check_branch
        %226 = sbr.rel (%p223) target = $region12
      $region11: #{spatial_bottleneck_block.1} parent=5 // pred_region
        %s227 = ssub.s32 %s14, 1
        // Predicated region
        $region13: #{spatial_bottleneck_block.1} parent=11 // pred_check
          %p228 = pneg %p61
        $region14: #{spatial_bottleneck_block.1} parent=11 // pred_check_branch
          %230 = sbr.rel (%p228) target = $region16
        $region15: #{spatial_bottleneck_block.1} parent=11 // pred_region
          _
        $region16: #{spatial_bottleneck_block.1} parent=11 // pred_fallthru
          _
        // Predicated region
        $region17: #{spatial_bottleneck_block.1} parent=11 // pred_check
          %p231 = pneg %p82
        $region18: #{spatial_bottleneck_block.1} parent=11 // pred_check_branch
          %233 = sbr.rel (%p231) target = $region20
        $region19: #{spatial_bottleneck_block.1} parent=11 // pred_region
          _
        $region20: #{spatial_bottleneck_block.1} parent=11 // pred_fallthru
          _
        // Predicated region
        $region21: #{spatial_bottleneck_block.1} parent=11 // pred_check
          %p234 = pneg %p103
        $region22: #{spatial_bottleneck_block.1} parent=11 // pred_check_branch
          %236 = sbr.rel (%p234) target = $region24
        $region23: #{spatial_bottleneck_block.1} parent=11 // pred_region
          _
        $region24: #{spatial_bottleneck_block.1} parent=11 // pred_fallthru
          _
        // Predicated region
        $region25: #{spatial_bottleneck_block.1} parent=11 // pred_check
          %p237 = pneg %p124
        $region26: #{spatial_bottleneck_block.1} parent=11 // pred_check_branch
          %239 = sbr.rel (%p237) target = $region28
        $region27: #{spatial_bottleneck_block.1} parent=11 // pred_region
          _
        $region28: #{spatial_bottleneck_block.1} parent=11 // pred_fallthru
          _
        // Predicated region
        $region29: #{spatial_bottleneck_block.1} parent=11 // pred_check
          %p240 = pneg %p145
        $region30: #{spatial_bottleneck_block.1} parent=11 // pred_check_branch
          %242 = sbr.rel (%p240) target = $region32
        $region31: #{spatial_bottleneck_block.1} parent=11 // pred_region
          _
        $region32: #{spatial_bottleneck_block.1} parent=11 // pred_fallthru
          _
        // Predicated region
        $region33: #{spatial_bottleneck_block.1} parent=11 // pred_check
          %p243 = pneg %p166
        $region34: #{spatial_bottleneck_block.1} parent=11 // pred_check_branch
          %245 = sbr.rel (%p243) target = $region36
        $region35: #{spatial_bottleneck_block.1} parent=11 // pred_region
          _
        $region36: #{spatial_bottleneck_block.1} parent=11 // pred_fallthru
          _
        // Predicated region
        $region37: #{spatial_bottleneck_block.1} parent=11 // pred_check
          %p246 = pneg %p187
        $region38: #{spatial_bottleneck_block.1} parent=11 // pred_check_branch
          %248 = sbr.rel (%p246) target = $region40
        $region39: #{spatial_bottleneck_block.1} parent=11 // pred_region
          _
        $region40: #{spatial_bottleneck_block.1} parent=11 // pred_fallthru
          _
      $region12: #{spatial_bottleneck_block.1} parent=5 // pred_fallthru
        _
      %p249 = scmp.lt.s32.totalorder %s14, 2
      // Predicated region
      $region41: #{spatial_bottleneck_block.1} parent=5 // pred_check
        %p250 = pneg %p249
      $region42: #{spatial_bottleneck_block.1} parent=5 // pred_check_branch
        %252 = sbr.rel (%p250) target = $region44
      $region43: #{spatial_bottleneck_block.1} parent=5 // pred_region
        // Predicated region
        $region45: #{spatial_bottleneck_block.1} parent=43 // pred_check
          %p253 = pneg %p34
        $region46: #{spatial_bottleneck_block.1} parent=43 // pred_check_branch
          %255 = sbr.rel (%p253) target = $region48
        $region47: #{spatial_bottleneck_block.1} parent=43 // pred_region
          %s256 = sand.u32 %s24, 1
          %s257 = sand.u32 %s24, 1
          %s258 = smul.addr %s257, 32
          %s259 = scalar_lea.vmem [#allocation4], %s258
          %s260 = smul.addr %s14, 4
          %s261 = scalar_lea.vmem %s0, %s260
          // Predicated region
          $region49: #{spatial_bottleneck_block.1} parent=47 // pred_check
            _
          $region50: #{spatial_bottleneck_block.1} parent=47 // pred_check_branch
            %263 = sbr.rel (0) target = $region52
          $region51: #{spatial_bottleneck_block.1} parent=47 // pred_region
            // Predicated region
            $region53: #{spatial_bottleneck_block.1} parent=51 // pred_check
              _
            $region54: #{spatial_bottleneck_block.1} parent=51 // pred_check_branch
              %265 = sbr.rel target = $region56
            $region55: #{spatial_bottleneck_block.1} parent=51 // pred_region
              // Predicated region
              $region68: #{spatial_bottleneck_block.1} parent=55 // pred_check
                _
              $region69: #{spatial_bottleneck_block.1} parent=55 // pred_check_branch
                %295 = sbr.rel (0) target = $region71
              $region70: #{spatial_bottleneck_block.1} parent=55 // pred_region
                loop: start=0, step=1, limit=1
                $region72: #{spatial_bottleneck_block.1} parent=70 // loop_pre_header
                  _
                $region73: #{spatial_bottleneck_block.1} parent=70 // loop_header
                  %s297 = sphi 0, %s301
                  %p298 = scmp.ge.s32.totalorder %s297, 1
                  %s302 = sphi %s261, %s261
                  %s303 = sphi %s259, %s259
                $region74: #{spatial_bottleneck_block.1} parent=70 // loop_header_branch
                  %300 = sbr.rel (%p298) target = $region78
                $region75: #{spatial_bottleneck_block.1} parent=70 // loop_body
                  _
                $region76: #{spatial_bottleneck_block.1} parent=70 // loop_footer
                  %s301 = sadd.s32 1, %s297
                $region77: #{spatial_bottleneck_block.1} parent=70 // loop_footer_branch
                  %296 = sbr.rel target = $region73
                $region78: #{spatial_bottleneck_block.1} parent=70 // loop_exit
                  _
                %s305 = ssub.s32 16, 1
                loop: start=0, step=1, limit=1
                $region79: #{spatial_bottleneck_block.1} parent=70 // loop_pre_header
                  _
                $region80: #{spatial_bottleneck_block.1} parent=70 // loop_header
                  %s307 = sphi 0, %s311
                  %p308 = scmp.ge.s32.totalorder %s307, 1
                  %s312 = sphi %s261, %s261
                  %s313 = sphi %s259, %s259
                $region81: #{spatial_bottleneck_block.1} parent=70 // loop_header_branch
                  %310 = sbr.rel (%p308) target = $region85
                $region82: #{spatial_bottleneck_block.1} parent=70 // loop_body
                  %v314 = vld [vmem:[%s312] sm:%s305]
                  %315 = vst [vmem:[%s313] sm:%s305] %v314
                  %v316 = vld [vmem:[%s312 + $0x8] sm:%s305]
                  %317 = vst [vmem:[%s313 + $0x4] sm:%s305] %v316
                  %v318 = vld [vmem:[%s312 + $0x10] sm:%s305]
                  %319 = vst [vmem:[%s313 + $0x8] sm:%s305] %v318
                  %v320 = vld [vmem:[%s312 + $0x18] sm:%s305]
                  %321 = vst [vmem:[%s313 + $0xc] sm:%s305] %v320
                  %v322 = vld [vmem:[%s312 + $0x20] sm:%s305]
                  %323 = vst [vmem:[%s313 + $0x10] sm:%s305] %v322
                  %v324 = vld [vmem:[%s312 + $0x28] sm:%s305]
                  %325 = vst [vmem:[%s313 + $0x14] sm:%s305] %v324
                  %v326 = vld [vmem:[%s312 + $0x30] sm:%s305]
                  %327 = vst [vmem:[%s313 + $0x18] sm:%s305] %v326
                  %v328 = vld [vmem:[%s312 + $0x38] sm:%s305]
                  %329 = vst [vmem:[%s313 + $0x1c] sm:%s305] %v328
                $region83: #{spatial_bottleneck_block.1} parent=70 // loop_footer
                  %s311 = sadd.s32 1, %s307
                $region84: #{spatial_bottleneck_block.1} parent=70 // loop_footer_branch
                  %306 = sbr.rel target = $region80
                $region85: #{spatial_bottleneck_block.1} parent=70 // loop_exit
                  _
              $region71: #{spatial_bottleneck_block.1} parent=55 // pred_fallthru
                _
            $region56: #{spatial_bottleneck_block.1} parent=51 // pred_fallthru
              _
            // Predicated region
            $region57: #{spatial_bottleneck_block.1} parent=51 // pred_check
              _
            $region58: #{spatial_bottleneck_block.1} parent=51 // pred_check_branch
              %267 = sbr.rel (0) target = $region60
            $region59: #{spatial_bottleneck_block.1} parent=51 // pred_region
              %s269 = ssub.s32 16, 1
              loop: start=0, step=1, limit=1
              $region61: #{spatial_bottleneck_block.1} parent=59 // loop_pre_header
                _
              $region62: #{spatial_bottleneck_block.1} parent=59 // loop_header
                %s271 = sphi 0, %s275
                %p272 = scmp.ge.s32.totalorder %s271, 1
                %s276 = sphi %s261, %s261
                %s277 = sphi %s259, %s259
              $region63: #{spatial_bottleneck_block.1} parent=59 // loop_header_branch
                %274 = sbr.rel (%p272) target = $region67
              $region64: #{spatial_bottleneck_block.1} parent=59 // loop_body
                %v278 = vld [vmem:[%s276] sm:%s269]
                %279 = vst [vmem:[%s277] sm:%s269] %v278
                %v280 = vld [vmem:[%s276 + $0x8] sm:%s269]
                %281 = vst [vmem:[%s277 + $0x4] sm:%s269] %v280
                %v282 = vld [vmem:[%s276 + $0x10] sm:%s269]
                %283 = vst [vmem:[%s277 + $0x8] sm:%s269] %v282
                %v284 = vld [vmem:[%s276 + $0x18] sm:%s269]
                %285 = vst [vmem:[%s277 + $0xc] sm:%s269] %v284
                %v286 = vld [vmem:[%s276 + $0x20] sm:%s269]
                %287 = vst [vmem:[%s277 + $0x10] sm:%s269] %v286
                %v288 = vld [vmem:[%s276 + $0x28] sm:%s269]
                %289 = vst [vmem:[%s277 + $0x14] sm:%s269] %v288
                %v290 = vld [vmem:[%s276 + $0x30] sm:%s269]
                %291 = vst [vmem:[%s277 + $0x18] sm:%s269] %v290
                %v292 = vld [vmem:[%s276 + $0x38] sm:%s269]
                %293 = vst [vmem:[%s277 + $0x1c] sm:%s269] %v292
              $region65: #{spatial_bottleneck_block.1} parent=59 // loop_footer
                %s275 = sadd.s32 1, %s271
              $region66: #{spatial_bottleneck_block.1} parent=59 // loop_footer_branch
                %270 = sbr.rel target = $region62
              $region67: #{spatial_bottleneck_block.1} parent=59 // loop_exit
                _
            $region60: #{spatial_bottleneck_block.1} parent=51 // pred_fallthru
              _
          $region52: #{spatial_bottleneck_block.1} parent=47 // pred_fallthru
            _
          %330 = vnop
        $region48: #{spatial_bottleneck_block.1} parent=43 // pred_fallthru
          _
      $region44: #{spatial_bottleneck_block.1} parent=5 // pred_fallthru
        _
      %p331 = scmp.le.s32.totalorder 1, %s14
      %p332 = scmp.lt.s32.totalorder %s14, 3
      %p333 = pnand %p331, %p332
      %p334 = pneg %p333
      // Predicated region
      $region86: #{spatial_bottleneck_block.1} parent=5 // pred_check
        _
      $region87: #{spatial_bottleneck_block.1} parent=5 // pred_check_branch
        %336 = sbr.rel (%p333) target = $region89
      $region88: #{spatial_bottleneck_block.1} parent=5 // pred_region
        %s337 = ssub.s32 %s14, 1
        %s338 = sand.u32 %s27, 1
        %s339 = sand.u32 %s27, 1
        %s340 = smul.addr %s339, 32
        %s341 = scalar_lea.vmem [#allocation4], %s340
        // Predicated region
        $region90: #{spatial_bottleneck_block.1} parent=88 // pred_check
          %p342 = pneg %p40
        $region91: #{spatial_bottleneck_block.1} parent=88 // pred_check_branch
          %344 = sbr.rel (%p342) target = $region93
        $region92: #{spatial_bottleneck_block.1} parent=88 // pred_region
          _
        $region93: #{spatial_bottleneck_block.1} parent=88 // pred_fallthru
          _
        %s345 = sand.u32 %s27, 1
        %s346 = sand.u32 %s27, 1
        %s347 = smul.addr %s346, 32
        %s348 = scalar_lea.vmem [#allocation4], %s347
        %p349 = pneg %p40
        %p350 = pneg %p37
        %p351 = pneg %p61
        %p352 = pneg %p58
        %p353 = pneg %p82
        %p354 = pneg %p79
        %p355 = pneg %p103
        %p356 = pneg %p100
        %p357 = pneg %p124
        %p358 = pneg %p121
        %p359 = pneg %p145
        %p360 = pneg %p142
        %p361 = pneg %p166
        %p362 = pneg %p163
        %p363 = pneg %p187
        %p364 = pneg %p184
        %p365 = pneg %p213
        %p366 = pneg %p210
        %s367 = sand.u32 %s200, 1
        %s368 = sand.u32 %s200, 1
        %s369 = smul.addr %s368, 256
        %s370 = scalar_lea.vmem [#allocation5], %s369
        %v372 = vld [vmem:[%s341] ss:$8 sm:$0xf]
        %v373 = vshrl.u32 %v372, 16
        %s374 = scalar_lea.vmem %s341, 1 [#allocation4]
        %v375 = vld [vmem:[%s374] ss:$8 sm:$0xf]
        %v376 = vshrl.u32 %v375, 16
        %s377 = scalar_lea.vmem %s341, 2 [#allocation4]
        %v378 = vld [vmem:[%s377] ss:$8 sm:$0xf]
        %v379 = vshrl.u32 %v378, 16
        %s380 = scalar_lea.vmem %s341, 3 [#allocation4]
        %v381 = vld [vmem:[%s380] ss:$8 sm:$0xf]
        %v382 = vshrl.u32 %v381, 16
        %s383 = scalar_lea.vmem %s341, 4 [#allocation4]
        %v384 = vld [vmem:[%s383] ss:$8 sm:$0xf]
        %v385 = vshrl.u32 %v384, 16
        %s386 = scalar_lea.vmem %s341, 5 [#allocation4]
        %v387 = vld [vmem:[%s386] ss:$8 sm:$0xf]
        %v388 = vshrl.u32 %v387, 16
        %s389 = scalar_lea.vmem %s341, 6 [#allocation4]
        %v390 = vld [vmem:[%s389] ss:$8 sm:$0xf]
        %v391 = vshrl.u32 %v390, 16
        %s392 = scalar_lea.vmem %s341, 7 [#allocation4]
        %v393 = vld [vmem:[%s392] ss:$8 sm:$0xf]
        %v394 = vshrl.u32 %v393, 16
        %v395 = vpack.c.b16 %v372, %v372
        %v396 = vpack.c.b16 %v373, %v373
        %v397 = vpack.c.b16 %v375, %v375
        %v398 = vpack.c.b16 %v376, %v376
        %v399 = vpack.c.b16 %v378, %v378
        %v400 = vpack.c.b16 %v379, %v379
        %v401 = vpack.c.b16 %v381, %v381
        %v402 = vpack.c.b16 %v382, %v382
        %v403 = vpack.c.b16 %v384, %v384
        %v404 = vpack.c.b16 %v385, %v385
        %v405 = vpack.c.b16 %v387, %v387
        %v406 = vpack.c.b16 %v388, %v388
        %v407 = vpack.c.b16 %v390, %v390
        %v408 = vpack.c.b16 %v391, %v391
        %v409 = vpack.c.b16 %v393, %v393
        %v410 = vpack.c.b16 %v394, %v394
        %v427 = vld [vmem:[%s2] sm:$0x3]
        %v428 = vld [vmem:[%s3] sm:$0xf]
        %430 = vset.pattern.permute.xlu0 0
        %431 = vperm.xlu0 %430, %v428
        %v432 = vpop.permute.xlu0 %431
        %vm434 = vcmask 31744
        %v436 = vsel %vm434, %v427, 0
        %vm438 = vcmask 1041408
        %v440 = vsel %vm438, %v395, 0
        %v443 = vsel %vm438, %v396, 0
        %v446 = vsel %vm438, %v397, 0
        %v449 = vsel %vm438, %v398, 0
        %v452 = vsel %vm438, %v399, 0
        %v455 = vsel %vm438, %v400, 0
        %v458 = vsel %vm438, %v401, 0
        %v461 = vsel %vm438, %v402, 0
        %v464 = vsel %vm438, %v403, 0
        %v467 = vsel %vm438, %v404, 0
        %v470 = vsel %vm438, %v405, 0
        %v473 = vsel %vm438, %v406, 0
        %v476 = vsel %vm438, %v407, 0
        %v479 = vsel %vm438, %v408, 0
        %v482 = vsel %vm438, %v409, 0
        %v485 = vsel %vm438, %v410, 0
        %487 = vmatprep.subr.bf16.mxu0 0
        %488 = vmatpush1.bf16.msra.mxu0 0
        %489 = vmatprep.subr.bf16.mxu0 0
        %490 = vmatpush1.bf16.msra.mxu0 0
        %491 = vmatprep.subr.bf16.mxu0 0
        %492 = vmatpush1.bf16.msra.mxu0 0
        %493 = vmatprep.subr.bf16.mxu0 0
        %494 = vmatpush1.bf16.msra.mxu0 0
        %495 = vmatprep.subr.bf16.mxu0 0
        %496 = vmatpush1.bf16.msra.mxu0 0
        %497 = vmatprep.subr.bf16.mxu0 0
        %498 = vmatpush1.bf16.msra.mxu0 0
        %499 = vmatprep.subr.bf16.mxu0 0
        %500 = vmatpush1.bf16.msra.mxu0 0
        %501 = vmatprep.subr.bf16.mxu0 %v443
        %502 = vmatpush1.bf16.msra.mxu0 %v440
        %503 = vmatprep.subr.bf16.mxu0 0
        %504 = vmatpush2.bf16.msra.mxu0 0
        %505 = vmatprep.subr.bf16.mxu0 0
        %506 = vmatpush2.bf16.msra.mxu0 0
        %507 = vmatprep.subr.bf16.mxu0 0
        %508 = vmatpush2.bf16.msra.mxu0 0
        %509 = vmatprep.subr.bf16.mxu0 0
        %510 = vmatpush2.bf16.msra.mxu0 0
        %511 = vmatprep.subr.bf16.mxu0 0
        %512 = vmatpush2.bf16.msra.mxu0 0
        %513 = vmatprep.subr.bf16.mxu0 0
        %514 = vmatpush2.bf16.msra.mxu0 0
        %515 = vmatprep.subr.bf16.mxu0 0
        %516 = vmatpush2.bf16.msra.mxu0 0
        %517 = vmatprep.subr.bf16.mxu0 0
        %518 = vmatpush2.bf16.msra.mxu0 0
        %519 = vmatprep.mubr.bf16.mxu0 0
        %520 = vmatmul.mubr.bf16.gmra.mxu0 %v436
        %v521 = vpop.f32.mrf.mxu0
        %v522 = vadd.f32 %v432, %v521
        %v523 = vpop.f32.mrf.mxu0
        %v524 = vadd.f32 %v432, %v523
        %v525 = vpop.f32.mrf.mxu0
        %v526 = vpop.f32.mrf.mxu0
        %527 = vdwg.mxu0
        %528 = vmatprep.subr.bf16.mxu0 0
        %529 = vmatpush1.bf16.msra.mxu0 0
        %530 = vmatprep.subr.bf16.mxu0 0
        %531 = vmatpush1.bf16.msra.mxu0 0
        %532 = vmatprep.subr.bf16.mxu0 0
        %533 = vmatpush1.bf16.msra.mxu0 0
        %534 = vmatprep.subr.bf16.mxu0 0
        %535 = vmatpush1.bf16.msra.mxu0 0
        %536 = vmatprep.subr.bf16.mxu0 0
        %537 = vmatpush1.bf16.msra.mxu0 0
        %538 = vmatprep.subr.bf16.mxu0 0
        %539 = vmatpush1.bf16.msra.mxu0 0
        %540 = vmatprep.subr.bf16.mxu0 0
        %541 = vmatpush1.bf16.msra.mxu0 0
        %542 = vmatprep.subr.bf16.mxu0 %v449
        %543 = vmatpush1.bf16.msra.mxu0 %v446
        %544 = vmatprep.subr.bf16.mxu0 0
        %545 = vmatpush2.bf16.msra.mxu0 0
        %546 = vmatprep.subr.bf16.mxu0 0
        %547 = vmatpush2.bf16.msra.mxu0 0
        %548 = vmatprep.subr.bf16.mxu0 0
        %549 = vmatpush2.bf16.msra.mxu0 0
        %550 = vmatprep.subr.bf16.mxu0 0
        %551 = vmatpush2.bf16.msra.mxu0 0
        %552 = vmatprep.subr.bf16.mxu0 0
        %553 = vmatpush2.bf16.msra.mxu0 0
        %554 = vmatprep.subr.bf16.mxu0 0
        %555 = vmatpush2.bf16.msra.mxu0 0
        %556 = vmatprep.subr.bf16.mxu0 0
        %557 = vmatpush2.bf16.msra.mxu0 0
        %558 = vmatprep.subr.bf16.mxu0 0
        %559 = vmatpush2.bf16.msra.mxu0 0
        %560 = vmatprep.mubr.bf16.mxu0 0
        %561 = vmatmul.mubr.bf16.gmra.mxu0 %v436
        %v562 = vpop.f32.mrf.mxu0
        %v563 = vadd.f32 %v432, %v562
        %v564 = vpop.f32.mrf.mxu0
        %v565 = vadd.f32 %v432, %v564
        %v566 = vpop.f32.mrf.mxu0
        %v567 = vpop.f32.mrf.mxu0
        %568 = vdwg.mxu0
        %569 = vmatprep.subr.bf16.mxu0 0
        %570 = vmatpush1.bf16.msra.mxu0 0
        %571 = vmatprep.subr.bf16.mxu0 0
        %572 = vmatpush1.bf16.msra.mxu0 0
        %573 = vmatprep.subr.bf16.mxu0 0
        %574 = vmatpush1.bf16.msra.mxu0 0
        %575 = vmatprep.subr.bf16.mxu0 0
        %576 = vmatpush1.bf16.msra.mxu0 0
        %577 = vmatprep.subr.bf16.mxu0 0
        %578 = vmatpush1.bf16.msra.mxu0 0
        %579 = vmatprep.subr.bf16.mxu0 0
        %580 = vmatpush1.bf16.msra.mxu0 0
        %581 = vmatprep.subr.bf16.mxu0 0
        %582 = vmatpush1.bf16.msra.mxu0 0
        %583 = vmatprep.subr.bf16.mxu0 %v455
        %584 = vmatpush1.bf16.msra.mxu0 %v452
        %585 = vmatprep.subr.bf16.mxu0 0
        %586 = vmatpush2.bf16.msra.mxu0 0
        %587 = vmatprep.subr.bf16.mxu0 0
        %588 = vmatpush2.bf16.msra.mxu0 0
        %589 = vmatprep.subr.bf16.mxu0 0
        %590 = vmatpush2.bf16.msra.mxu0 0
        %591 = vmatprep.subr.bf16.mxu0 0
        %592 = vmatpush2.bf16.msra.mxu0 0
        %593 = vmatprep.subr.bf16.mxu0 0
        %594 = vmatpush2.bf16.msra.mxu0 0
        %595 = vmatprep.subr.bf16.mxu0 0
        %596 = vmatpush2.bf16.msra.mxu0 0
        %597 = vmatprep.subr.bf16.mxu0 0
        %598 = vmatpush2.bf16.msra.mxu0 0
        %599 = vmatprep.subr.bf16.mxu0 0
        %600 = vmatpush2.bf16.msra.mxu0 0
        %601 = vmatprep.mubr.bf16.mxu0 0
        %602 = vmatmul.mubr.bf16.gmra.mxu0 %v436
        %v603 = vpop.f32.mrf.mxu0
        %v604 = vadd.f32 %v432, %v603
        %v605 = vpop.f32.mrf.mxu0
        %v606 = vadd.f32 %v432, %v605
        %v607 = vpop.f32.mrf.mxu0
        %v608 = vpop.f32.mrf.mxu0
        %609 = vdwg.mxu0
        %610 = vmatprep.subr.bf16.mxu0 0
        %611 = vmatpush1.bf16.msra.mxu0 0
        %612 = vmatprep.subr.bf16.mxu0 0
        %613 = vmatpush1.bf16.msra.mxu0 0
        %614 = vmatprep.subr.bf16.mxu0 0
        %615 = vmatpush1.bf16.msra.mxu0 0
        %616 = vmatprep.subr.bf16.mxu0 0
        %617 = vmatpush1.bf16.msra.mxu0 0
        %618 = vmatprep.subr.bf16.mxu0 0
        %619 = vmatpush1.bf16.msra.mxu0 0
        %620 = vmatprep.subr.bf16.mxu0 0
        %621 = vmatpush1.bf16.msra.mxu0 0
        %622 = vmatprep.subr.bf16.mxu0 0
        %623 = vmatpush1.bf16.msra.mxu0 0
        %624 = vmatprep.subr.bf16.mxu0 %v461
        %625 = vmatpush1.bf16.msra.mxu0 %v458
        %626 = vmatprep.subr.bf16.mxu0 0
        %627 = vmatpush2.bf16.msra.mxu0 0
        %628 = vmatprep.subr.bf16.mxu0 0
        %629 = vmatpush2.bf16.msra.mxu0 0
        %630 = vmatprep.subr.bf16.mxu0 0
        %631 = vmatpush2.bf16.msra.mxu0 0
        %632 = vmatprep.subr.bf16.mxu0 0
        %633 = vmatpush2.bf16.msra.mxu0 0
        %634 = vmatprep.subr.bf16.mxu0 0
        %635 = vmatpush2.bf16.msra.mxu0 0
        %636 = vmatprep.subr.bf16.mxu0 0
        %637 = vmatpush2.bf16.msra.mxu0 0
        %638 = vmatprep.subr.bf16.mxu0 0
        %639 = vmatpush2.bf16.msra.mxu0 0
        %640 = vmatprep.subr.bf16.mxu0 0
        %641 = vmatpush2.bf16.msra.mxu0 0
        %642 = vmatprep.mubr.bf16.mxu0 0
        %643 = vmatmul.mubr.bf16.gmra.mxu0 %v436
        %v644 = vpop.f32.mrf.mxu0
        %v645 = vadd.f32 %v432, %v644
        %v646 = vpop.f32.mrf.mxu0
        %v647 = vadd.f32 %v432, %v646
        %v648 = vpop.f32.mrf.mxu0
        %v649 = vpop.f32.mrf.mxu0
        %650 = vdwg.mxu0
        %651 = vmatprep.subr.bf16.mxu0 0
        %652 = vmatpush1.bf16.msra.mxu0 0
        %653 = vmatprep.subr.bf16.mxu0 0
        %654 = vmatpush1.bf16.msra.mxu0 0
        %655 = vmatprep.subr.bf16.mxu0 0
        %656 = vmatpush1.bf16.msra.mxu0 0
        %657 = vmatprep.subr.bf16.mxu0 0
        %658 = vmatpush1.bf16.msra.mxu0 0
        %659 = vmatprep.subr.bf16.mxu0 0
        %660 = vmatpush1.bf16.msra.mxu0 0
        %661 = vmatprep.subr.bf16.mxu0 0
        %662 = vmatpush1.bf16.msra.mxu0 0
        %663 = vmatprep.subr.bf16.mxu0 0
        %664 = vmatpush1.bf16.msra.mxu0 0
        %665 = vmatprep.subr.bf16.mxu0 %v467
        %666 = vmatpush1.bf16.msra.mxu0 %v464
        %667 = vmatprep.subr.bf16.mxu0 0
        %668 = vmatpush2.bf16.msra.mxu0 0
        %669 = vmatprep.subr.bf16.mxu0 0
        %670 = vmatpush2.bf16.msra.mxu0 0
        %671 = vmatprep.subr.bf16.mxu0 0
        %672 = vmatpush2.bf16.msra.mxu0 0
        %673 = vmatprep.subr.bf16.mxu0 0
        %674 = vmatpush2.bf16.msra.mxu0 0
        %675 = vmatprep.subr.bf16.mxu0 0
        %676 = vmatpush2.bf16.msra.mxu0 0
        %677 = vmatprep.subr.bf16.mxu0 0
        %678 = vmatpush2.bf16.msra.mxu0 0
        %679 = vmatprep.subr.bf16.mxu0 0
        %680 = vmatpush2.bf16.msra.mxu0 0
        %681 = vmatprep.subr.bf16.mxu0 0
        %682 = vmatpush2.bf16.msra.mxu0 0
        %683 = vmatprep.mubr.bf16.mxu0 0
        %684 = vmatmul.mubr.bf16.gmra.mxu0 %v436
        %v685 = vpop.f32.mrf.mxu0
        %v686 = vadd.f32 %v432, %v685
        %v687 = vpop.f32.mrf.mxu0
        %v688 = vadd.f32 %v432, %v687
        %v689 = vpop.f32.mrf.mxu0
        %v690 = vpop.f32.mrf.mxu0
        %691 = vdwg.mxu0
        %692 = vmatprep.subr.bf16.mxu0 0
        %693 = vmatpush1.bf16.msra.mxu0 0
        %694 = vmatprep.subr.bf16.mxu0 0
        %695 = vmatpush1.bf16.msra.mxu0 0
        %696 = vmatprep.subr.bf16.mxu0 0
        %697 = vmatpush1.bf16.msra.mxu0 0
        %698 = vmatprep.subr.bf16.mxu0 0
        %699 = vmatpush1.bf16.msra.mxu0 0
        %700 = vmatprep.subr.bf16.mxu0 0
        %701 = vmatpush1.bf16.msra.mxu0 0
        %702 = vmatprep.subr.bf16.mxu0 0
        %703 = vmatpush1.bf16.msra.mxu0 0
        %704 = vmatprep.subr.bf16.mxu0 0
        %705 = vmatpush1.bf16.msra.mxu0 0
        %706 = vmatprep.subr.bf16.mxu0 %v473
        %707 = vmatpush1.bf16.msra.mxu0 %v470
        %708 = vmatprep.subr.bf16.mxu0 0
        %709 = vmatpush2.bf16.msra.mxu0 0
        %710 = vmatprep.subr.bf16.mxu0 0
        %711 = vmatpush2.bf16.msra.mxu0 0
        %712 = vmatprep.subr.bf16.mxu0 0
        %713 = vmatpush2.bf16.msra.mxu0 0
        %714 = vmatprep.subr.bf16.mxu0 0
        %715 = vmatpush2.bf16.msra.mxu0 0
        %716 = vmatprep.subr.bf16.mxu0 0
        %717 = vmatpush2.bf16.msra.mxu0 0
        %718 = vmatprep.subr.bf16.mxu0 0
        %719 = vmatpush2.bf16.msra.mxu0 0
        %720 = vmatprep.subr.bf16.mxu0 0
        %721 = vmatpush2.bf16.msra.mxu0 0
        %722 = vmatprep.subr.bf16.mxu0 0
        %723 = vmatpush2.bf16.msra.mxu0 0
        %724 = vmatprep.mubr.bf16.mxu0 0
        %725 = vmatmul.mubr.bf16.gmra.mxu0 %v436
        %v726 = vpop.f32.mrf.mxu0
        %v727 = vadd.f32 %v432, %v726
        %v728 = vpop.f32.mrf.mxu0
        %v729 = vadd.f32 %v432, %v728
        %v730 = vpop.f32.mrf.mxu0
        %v731 = vpop.f32.mrf.mxu0
        %732 = vdwg.mxu0
        %733 = vmatprep.subr.bf16.mxu0 0
        %734 = vmatpush1.bf16.msra.mxu0 0
        %735 = vmatprep.subr.bf16.mxu0 0
        %736 = vmatpush1.bf16.msra.mxu0 0
        %737 = vmatprep.subr.bf16.mxu0 0
        %738 = vmatpush1.bf16.msra.mxu0 0
        %739 = vmatprep.subr.bf16.mxu0 0
        %740 = vmatpush1.bf16.msra.mxu0 0
        %741 = vmatprep.subr.bf16.mxu0 0
        %742 = vmatpush1.bf16.msra.mxu0 0
        %743 = vmatprep.subr.bf16.mxu0 0
        %744 = vmatpush1.bf16.msra.mxu0 0
        %745 = vmatprep.subr.bf16.mxu0 0
        %746 = vmatpush1.bf16.msra.mxu0 0
        %747 = vmatprep.subr.bf16.mxu0 %v479
        %748 = vmatpush1.bf16.msra.mxu0 %v476
        %749 = vmatprep.subr.bf16.mxu0 0
        %750 = vmatpush2.bf16.msra.mxu0 0
        %751 = vmatprep.subr.bf16.mxu0 0
        %752 = vmatpush2.bf16.msra.mxu0 0
        %753 = vmatprep.subr.bf16.mxu0 0
        %754 = vmatpush2.bf16.msra.mxu0 0
        %755 = vmatprep.subr.bf16.mxu0 0
        %756 = vmatpush2.bf16.msra.mxu0 0
        %757 = vmatprep.subr.bf16.mxu0 0
        %758 = vmatpush2.bf16.msra.mxu0 0
        %759 = vmatprep.subr.bf16.mxu0 0
        %760 = vmatpush2.bf16.msra.mxu0 0
        %761 = vmatprep.subr.bf16.mxu0 0
        %762 = vmatpush2.bf16.msra.mxu0 0
        %763 = vmatprep.subr.bf16.mxu0 0
        %764 = vmatpush2.bf16.msra.mxu0 0
        %765 = vmatprep.mubr.bf16.mxu0 0
        %766 = vmatmul.mubr.bf16.gmra.mxu0 %v436
        %v767 = vpop.f32.mrf.mxu0
        %v768 = vadd.f32 %v432, %v767
        %v769 = vpop.f32.mrf.mxu0
        %v770 = vadd.f32 %v432, %v769
        %v771 = vpop.f32.mrf.mxu0
        %v772 = vpop.f32.mrf.mxu0
        %773 = vdwg.mxu0
        %774 = vmatprep.subr.bf16.mxu0 0
        %775 = vmatpush1.bf16.msra.mxu0 0
        %776 = vmatprep.subr.bf16.mxu0 0
        %777 = vmatpush1.bf16.msra.mxu0 0
        %778 = vmatprep.subr.bf16.mxu0 0
        %779 = vmatpush1.bf16.msra.mxu0 0
        %780 = vmatprep.subr.bf16.mxu0 0
        %781 = vmatpush1.bf16.msra.mxu0 0
        %782 = vmatprep.subr.bf16.mxu0 0
        %783 = vmatpush1.bf16.msra.mxu0 0
        %784 = vmatprep.subr.bf16.mxu0 0
        %785 = vmatpush1.bf16.msra.mxu0 0
        %786 = vmatprep.subr.bf16.mxu0 0
        %787 = vmatpush1.bf16.msra.mxu0 0
        %788 = vmatprep.subr.bf16.mxu0 %v485
        %789 = vmatpush1.bf16.msra.mxu0 %v482
        %790 = vmatprep.subr.bf16.mxu0 0
        %791 = vmatpush2.bf16.msra.mxu0 0
        %792 = vmatprep.subr.bf16.mxu0 0
        %793 = vmatpush2.bf16.msra.mxu0 0
        %794 = vmatprep.subr.bf16.mxu0 0
        %795 = vmatpush2.bf16.msra.mxu0 0
        %796 = vmatprep.subr.bf16.mxu0 0
        %797 = vmatpush2.bf16.msra.mxu0 0
        %798 = vmatprep.subr.bf16.mxu0 0
        %799 = vmatpush2.bf16.msra.mxu0 0
        %800 = vmatprep.subr.bf16.mxu0 0
        %801 = vmatpush2.bf16.msra.mxu0 0
        %802 = vmatprep.subr.bf16.mxu0 0
        %803 = vmatpush2.bf16.msra.mxu0 0
        %804 = vmatprep.subr.bf16.mxu0 0
        %805 = vmatpush2.bf16.msra.mxu0 0
        %806 = vmatprep.mubr.bf16.mxu0 0
        %807 = vmatmul.mubr.bf16.gmra.mxu0 %v436
        %v808 = vpop.f32.mrf.mxu0
        %v809 = vadd.f32 %v432, %v808
        %v810 = vpop.f32.mrf.mxu0
        %v811 = vadd.f32 %v432, %v810
        %v812 = vpop.f32.mrf.mxu0
        %v813 = vpop.f32.mrf.mxu0
        %814 = vdwg.mxu0
        %v815 = vmax.f32 %v522, 0.0
        %v816 = vmax.f32 %v524, 0.0
        %v817 = vmax.f32 %v563, 0.0
        %v818 = vmax.f32 %v565, 0.0
        %v819 = vmax.f32 %v604, 0.0
        %v820 = vmax.f32 %v606, 0.0
        %v821 = vmax.f32 %v645, 0.0
        %v822 = vmax.f32 %v647, 0.0
        %v823 = vmax.f32 %v686, 0.0
        %v824 = vmax.f32 %v688, 0.0
        %v825 = vmax.f32 %v727, 0.0
        %v826 = vmax.f32 %v729, 0.0
        %v827 = vmax.f32 %v768, 0.0
        %v828 = vmax.f32 %v770, 0.0
        %v829 = vmax.f32 %v809, 0.0
        %v830 = vmax.f32 %v811, 0.0
        %v831 = vld [vmem:[%s4] sm:$0xf]
        %v832 = vld [vmem:[%s4 + $0x4] sm:$0x3]
        %v833 = vpack.c.bf16 %v815, %v815
        %v834 = vpack.c.bf16 %v816, %v816
        %v835 = vpack.c.bf16 %v817, %v817
        %v836 = vpack.c.bf16 %v818, %v818
        %v837 = vpack.c.bf16 %v819, %v819
        %v838 = vpack.c.bf16 %v820, %v820
        %v839 = vpack.c.bf16 %v821, %v821
        %v840 = vpack.c.bf16 %v822, %v822
        %v841 = vpack.c.bf16 %v823, %v823
        %v842 = vpack.c.bf16 %v824, %v824
        %v843 = vpack.c.bf16 %v825, %v825
        %v844 = vpack.c.bf16 %v826, %v826
        %v845 = vpack.c.bf16 %v827, %v827
        %v846 = vpack.c.bf16 %v828, %v828
        %v847 = vpack.c.bf16 %v829, %v829
        %v848 = vpack.c.bf16 %v830, %v830
        %v851 = vunpack.c.l.b16 %v831
        %v852 = vunpack.c.l.b16 %v832
        %v853 = vpack.c.b16 %v852, %v851
        %v855 = vsel %vm434, %v853, 0
        %v858 = vsel %vm438, %v833, 0
        %v861 = vsel %vm438, %v834, 0
        %v864 = vsel %vm438, %v835, 0
        %v867 = vsel %vm438, %v836, 0
        %v870 = vsel %vm438, %v837, 0
        %v873 = vsel %vm438, %v838, 0
        %v876 = vsel %vm438, %v839, 0
        %v879 = vsel %vm438, %v840, 0
        %v882 = vsel %vm438, %v841, 0
        %v885 = vsel %vm438, %v842, 0
        %v888 = vsel %vm438, %v843, 0
        %v891 = vsel %vm438, %v844, 0
        %v894 = vsel %vm438, %v845, 0
        %v897 = vsel %vm438, %v846, 0
        %v900 = vsel %vm438, %v847, 0
        %v903 = vsel %vm438, %v848, 0
        %905 = vmatprep.subr.bf16.mxu0 0
        %906 = vmatpush1.bf16.msra.mxu0 0
        %907 = vmatprep.subr.bf16.mxu0 0
        %908 = vmatpush1.bf16.msra.mxu0 0
        %909 = vmatprep.subr.bf16.mxu0 0
        %910 = vmatpush1.bf16.msra.mxu0 0
        %911 = vmatprep.subr.bf16.mxu0 0
        %912 = vmatpush1.bf16.msra.mxu0 0
        %913 = vmatprep.subr.bf16.mxu0 0
        %914 = vmatpush1.bf16.msra.mxu0 0
        %915 = vmatprep.subr.bf16.mxu0 0
        %916 = vmatpush1.bf16.msra.mxu0 0
        %917 = vmatprep.subr.bf16.mxu0 0
        %918 = vmatpush1.bf16.msra.mxu0 0
        %919 = vmatprep.subr.bf16.mxu0 %v861
        %920 = vmatpush1.bf16.msra.mxu0 %v858
        %921 = vmatprep.subr.bf16.mxu0 0
        %922 = vmatpush2.bf16.msra.mxu0 0
        %923 = vmatprep.subr.bf16.mxu0 0
        %924 = vmatpush2.bf16.msra.mxu0 0
        %925 = vmatprep.subr.bf16.mxu0 0
        %926 = vmatpush2.bf16.msra.mxu0 0
        %927 = vmatprep.subr.bf16.mxu0 0
        %928 = vmatpush2.bf16.msra.mxu0 0
        %929 = vmatprep.subr.bf16.mxu0 0
        %930 = vmatpush2.bf16.msra.mxu0 0
        %931 = vmatprep.subr.bf16.mxu0 0
        %932 = vmatpush2.bf16.msra.mxu0 0
        %933 = vmatprep.subr.bf16.mxu0 0
        %934 = vmatpush2.bf16.msra.mxu0 0
        %935 = vmatprep.subr.bf16.mxu0 0
        %936 = vmatpush2.bf16.msra.mxu0 0
        %937 = vmatprep.mubr.bf16.mxu0 0
        %938 = vmatmul.mubr.bf16.gmra.mxu0 %v855
        %v939 = vpop.f32.mrf.mxu0
        %v940 = vadd.f32 0.0, %v939
        %v941 = vpop.f32.mrf.mxu0
        %v942 = vadd.f32 0.0, %v941
        %v943 = vpop.f32.mrf.mxu0
        %v944 = vadd.f32 0.0, %v943
        %v945 = vpop.f32.mrf.mxu0
        %v946 = vadd.f32 0.0, %v945
        %947 = vdwg.mxu0
        %948 = vmatprep.subr.bf16.mxu0 0
        %949 = vmatpush1.bf16.msra.mxu0 0
        %950 = vmatprep.subr.bf16.mxu0 0
        %951 = vmatpush1.bf16.msra.mxu0 0
        %952 = vmatprep.subr.bf16.mxu0 0
        %953 = vmatpush1.bf16.msra.mxu0 0
        %954 = vmatprep.subr.bf16.mxu0 0
        %955 = vmatpush1.bf16.msra.mxu0 0
        %956 = vmatprep.subr.bf16.mxu0 0
        %957 = vmatpush1.bf16.msra.mxu0 0
        %958 = vmatprep.subr.bf16.mxu0 0
        %959 = vmatpush1.bf16.msra.mxu0 0
        %960 = vmatprep.subr.bf16.mxu0 0
        %961 = vmatpush1.bf16.msra.mxu0 0
        %962 = vmatprep.subr.bf16.mxu0 %v867
        %963 = vmatpush1.bf16.msra.mxu0 %v864
        %964 = vmatprep.subr.bf16.mxu0 0
        %965 = vmatpush2.bf16.msra.mxu0 0
        %966 = vmatprep.subr.bf16.mxu0 0
        %967 = vmatpush2.bf16.msra.mxu0 0
        %968 = vmatprep.subr.bf16.mxu0 0
        %969 = vmatpush2.bf16.msra.mxu0 0
        %970 = vmatprep.subr.bf16.mxu0 0
        %971 = vmatpush2.bf16.msra.mxu0 0
        %972 = vmatprep.subr.bf16.mxu0 0
        %973 = vmatpush2.bf16.msra.mxu0 0
        %974 = vmatprep.subr.bf16.mxu0 0
        %975 = vmatpush2.bf16.msra.mxu0 0
        %976 = vmatprep.subr.bf16.mxu0 0
        %977 = vmatpush2.bf16.msra.mxu0 0
        %978 = vmatprep.subr.bf16.mxu0 0
        %979 = vmatpush2.bf16.msra.mxu0 0
        %980 = vmatprep.mubr.bf16.mxu0 0
        %981 = vmatmul.mubr.bf16.gmra.mxu0 %v855
        %v982 = vpop.f32.mrf.mxu0
        %v983 = vadd.f32 0.0, %v982
        %v984 = vpop.f32.mrf.mxu0
        %v985 = vadd.f32 0.0, %v984
        %v986 = vpop.f32.mrf.mxu0
        %v987 = vadd.f32 0.0, %v986
        %v988 = vpop.f32.mrf.mxu0
        %v989 = vadd.f32 0.0, %v988
        %990 = vdwg.mxu0
        %991 = vmatprep.subr.bf16.mxu0 0
        %992 = vmatpush1.bf16.msra.mxu0 0
        %993 = vmatprep.subr.bf16.mxu0 0
        %994 = vmatpush1.bf16.msra.mxu0 0
        %995 = vmatprep.subr.bf16.mxu0 0
        %996 = vmatpush1.bf16.msra.mxu0 0
        %997 = vmatprep.subr.bf16.mxu0 0
        %998 = vmatpush1.bf16.msra.mxu0 0
        %999 = vmatprep.subr.bf16.mxu0 0
        %1000 = vmatpush1.bf16.msra.mxu0 0
        %1001 = vmatprep.subr.bf16.mxu0 0
        %1002 = vmatpush1.bf16.msra.mxu0 0
        %1003 = vmatprep.subr.bf16.mxu0 0
        %1004 = vmatpush1.bf16.msra.mxu0 0
        %1005 = vmatprep.subr.bf16.mxu0 %v873
        %1006 = vmatpush1.bf16.msra.mxu0 %v870
        %1007 = vmatprep.subr.bf16.mxu0 0
        %1008 = vmatpush2.bf16.msra.mxu0 0
        %1009 = vmatprep.subr.bf16.mxu0 0
        %1010 = vmatpush2.bf16.msra.mxu0 0
        %1011 = vmatprep.subr.bf16.mxu0 0
        %1012 = vmatpush2.bf16.msra.mxu0 0
        %1013 = vmatprep.subr.bf16.mxu0 0
        %1014 = vmatpush2.bf16.msra.mxu0 0
        %1015 = vmatprep.subr.bf16.mxu0 0
        %1016 = vmatpush2.bf16.msra.mxu0 0
        %1017 = vmatprep.subr.bf16.mxu0 0
        %1018 = vmatpush2.bf16.msra.mxu0 0
        %1019 = vmatprep.subr.bf16.mxu0 0
        %1020 = vmatpush2.bf16.msra.mxu0 0
        %1021 = vmatprep.subr.bf16.mxu0 0
        %1022 = vmatpush2.bf16.msra.mxu0 0
        %1023 = vmatprep.mubr.bf16.mxu0 0
        %1024 = vmatmul.mubr.bf16.gmra.mxu0 %v855
        %v1025 = vpop.f32.mrf.mxu0
        %v1026 = vadd.f32 0.0, %v1025
        %v1027 = vpop.f32.mrf.mxu0
        %v1028 = vadd.f32 0.0, %v1027
        %v1029 = vpop.f32.mrf.mxu0
        %v1030 = vadd.f32 0.0, %v1029
        %v1031 = vpop.f32.mrf.mxu0
        %v1032 = vadd.f32 0.0, %v1031
        %1033 = vdwg.mxu0
        %1034 = vmatprep.subr.bf16.mxu0 0
        %1035 = vmatpush1.bf16.msra.mxu0 0
        %1036 = vmatprep.subr.bf16.mxu0 0
        %1037 = vmatpush1.bf16.msra.mxu0 0
        %1038 = vmatprep.subr.bf16.mxu0 0
        %1039 = vmatpush1.bf16.msra.mxu0 0
        %1040 = vmatprep.subr.bf16.mxu0 0
        %1041 = vmatpush1.bf16.msra.mxu0 0
        %1042 = vmatprep.subr.bf16.mxu0 0
        %1043 = vmatpush1.bf16.msra.mxu0 0
        %1044 = vmatprep.subr.bf16.mxu0 0
        %1045 = vmatpush1.bf16.msra.mxu0 0
        %1046 = vmatprep.subr.bf16.mxu0 0
        %1047 = vmatpush1.bf16.msra.mxu0 0
        %1048 = vmatprep.subr.bf16.mxu0 %v879
        %1049 = vmatpush1.bf16.msra.mxu0 %v876
        %1050 = vmatprep.subr.bf16.mxu0 0
        %1051 = vmatpush2.bf16.msra.mxu0 0
        %1052 = vmatprep.subr.bf16.mxu0 0
        %1053 = vmatpush2.bf16.msra.mxu0 0
        %1054 = vmatprep.subr.bf16.mxu0 0
        %1055 = vmatpush2.bf16.msra.mxu0 0
        %1056 = vmatprep.subr.bf16.mxu0 0
        %1057 = vmatpush2.bf16.msra.mxu0 0
        %1058 = vmatprep.subr.bf16.mxu0 0
        %1059 = vmatpush2.bf16.msra.mxu0 0
        %1060 = vmatprep.subr.bf16.mxu0 0
        %1061 = vmatpush2.bf16.msra.mxu0 0
        %1062 = vmatprep.subr.bf16.mxu0 0
        %1063 = vmatpush2.bf16.msra.mxu0 0
        %1064 = vmatprep.subr.bf16.mxu0 0
        %1065 = vmatpush2.bf16.msra.mxu0 0
        %1066 = vmatprep.mubr.bf16.mxu0 0
        %1067 = vmatmul.mubr.bf16.gmra.mxu0 %v855
        %v1068 = vpop.f32.mrf.mxu0
        %v1069 = vadd.f32 0.0, %v1068
        %v1070 = vpop.f32.mrf.mxu0
        %v1071 = vadd.f32 0.0, %v1070
        %v1072 = vpop.f32.mrf.mxu0
        %v1073 = vadd.f32 0.0, %v1072
        %v1074 = vpop.f32.mrf.mxu0
        %v1075 = vadd.f32 0.0, %v1074
        %1076 = vdwg.mxu0
        %1077 = vmatprep.subr.bf16.mxu0 0
        %1078 = vmatpush1.bf16.msra.mxu0 0
        %1079 = vmatprep.subr.bf16.mxu0 0
        %1080 = vmatpush1.bf16.msra.mxu0 0
        %1081 = vmatprep.subr.bf16.mxu0 0
        %1082 = vmatpush1.bf16.msra.mxu0 0
        %1083 = vmatprep.subr.bf16.mxu0 0
        %1084 = vmatpush1.bf16.msra.mxu0 0
        %1085 = vmatprep.subr.bf16.mxu0 0
        %1086 = vmatpush1.bf16.msra.mxu0 0
        %1087 = vmatprep.subr.bf16.mxu0 0
        %1088 = vmatpush1.bf16.msra.mxu0 0
        %1089 = vmatprep.subr.bf16.mxu0 0
        %1090 = vmatpush1.bf16.msra.mxu0 0
        %1091 = vmatprep.subr.bf16.mxu0 %v885
        %1092 = vmatpush1.bf16.msra.mxu0 %v882
        %1093 = vmatprep.subr.bf16.mxu0 0
        %1094 = vmatpush2.bf16.msra.mxu0 0
        %1095 = vmatprep.subr.bf16.mxu0 0
        %1096 = vmatpush2.bf16.msra.mxu0 0
        %1097 = vmatprep.subr.bf16.mxu0 0
        %1098 = vmatpush2.bf16.msra.mxu0 0
        %1099 = vmatprep.subr.bf16.mxu0 0
        %1100 = vmatpush2.bf16.msra.mxu0 0
        %1101 = vmatprep.subr.bf16.mxu0 0
        %1102 = vmatpush2.bf16.msra.mxu0 0
        %1103 = vmatprep.subr.bf16.mxu0 0
        %1104 = vmatpush2.bf16.msra.mxu0 0
        %1105 = vmatprep.subr.bf16.mxu0 0
        %1106 = vmatpush2.bf16.msra.mxu0 0
        %1107 = vmatprep.subr.bf16.mxu0 0
        %1108 = vmatpush2.bf16.msra.mxu0 0
        %1109 = vmatprep.mubr.bf16.mxu0 0
        %1110 = vmatmul.mubr.bf16.gmra.mxu0 %v855
        %v1111 = vpop.f32.mrf.mxu0
        %v1112 = vadd.f32 0.0, %v1111
        %v1113 = vpop.f32.mrf.mxu0
        %v1114 = vadd.f32 0.0, %v1113
        %v1115 = vpop.f32.mrf.mxu0
        %v1116 = vadd.f32 0.0, %v1115
        %v1117 = vpop.f32.mrf.mxu0
        %v1118 = vadd.f32 0.0, %v1117
        %1119 = vdwg.mxu0
        %1120 = vmatprep.subr.bf16.mxu0 0
        %1121 = vmatpush1.bf16.msra.mxu0 0
        %1122 = vmatprep.subr.bf16.mxu0 0
        %1123 = vmatpush1.bf16.msra.mxu0 0
        %1124 = vmatprep.subr.bf16.mxu0 0
        %1125 = vmatpush1.bf16.msra.mxu0 0
        %1126 = vmatprep.subr.bf16.mxu0 0
        %1127 = vmatpush1.bf16.msra.mxu0 0
        %1128 = vmatprep.subr.bf16.mxu0 0
        %1129 = vmatpush1.bf16.msra.mxu0 0
        %1130 = vmatprep.subr.bf16.mxu0 0
        %1131 = vmatpush1.bf16.msra.mxu0 0
        %1132 = vmatprep.subr.bf16.mxu0 0
        %1133 = vmatpush1.bf16.msra.mxu0 0
        %1134 = vmatprep.subr.bf16.mxu0 %v891
        %1135 = vmatpush1.bf16.msra.mxu0 %v888
        %1136 = vmatprep.subr.bf16.mxu0 0
        %1137 = vmatpush2.bf16.msra.mxu0 0
        %1138 = vmatprep.subr.bf16.mxu0 0
        %1139 = vmatpush2.bf16.msra.mxu0 0
        %1140 = vmatprep.subr.bf16.mxu0 0
        %1141 = vmatpush2.bf16.msra.mxu0 0
        %1142 = vmatprep.subr.bf16.mxu0 0
        %1143 = vmatpush2.bf16.msra.mxu0 0
        %1144 = vmatprep.subr.bf16.mxu0 0
        %1145 = vmatpush2.bf16.msra.mxu0 0
        %1146 = vmatprep.subr.bf16.mxu0 0
        %1147 = vmatpush2.bf16.msra.mxu0 0
        %1148 = vmatprep.subr.bf16.mxu0 0
        %1149 = vmatpush2.bf16.msra.mxu0 0
        %1150 = vmatprep.subr.bf16.mxu0 0
        %1151 = vmatpush2.bf16.msra.mxu0 0
        %1152 = vmatprep.mubr.bf16.mxu0 0
        %1153 = vmatmul.mubr.bf16.gmra.mxu0 %v855
        %v1154 = vpop.f32.mrf.mxu0
        %v1155 = vadd.f32 0.0, %v1154
        %v1156 = vpop.f32.mrf.mxu0
        %v1157 = vadd.f32 0.0, %v1156
        %v1158 = vpop.f32.mrf.mxu0
        %v1159 = vadd.f32 0.0, %v1158
        %v1160 = vpop.f32.mrf.mxu0
        %v1161 = vadd.f32 0.0, %v1160
        %1162 = vdwg.mxu0
        %1163 = vmatprep.subr.bf16.mxu0 0
        %1164 = vmatpush1.bf16.msra.mxu0 0
        %1165 = vmatprep.subr.bf16.mxu0 0
        %1166 = vmatpush1.bf16.msra.mxu0 0
        %1167 = vmatprep.subr.bf16.mxu0 0
        %1168 = vmatpush1.bf16.msra.mxu0 0
        %1169 = vmatprep.subr.bf16.mxu0 0
        %1170 = vmatpush1.bf16.msra.mxu0 0
        %1171 = vmatprep.subr.bf16.mxu0 0
        %1172 = vmatpush1.bf16.msra.mxu0 0
        %1173 = vmatprep.subr.bf16.mxu0 0
        %1174 = vmatpush1.bf16.msra.mxu0 0
        %1175 = vmatprep.subr.bf16.mxu0 0
        %1176 = vmatpush1.bf16.msra.mxu0 0
        %1177 = vmatprep.subr.bf16.mxu0 %v897
        %1178 = vmatpush1.bf16.msra.mxu0 %v894
        %1179 = vmatprep.subr.bf16.mxu0 0
        %1180 = vmatpush2.bf16.msra.mxu0 0
        %1181 = vmatprep.subr.bf16.mxu0 0
        %1182 = vmatpush2.bf16.msra.mxu0 0
        %1183 = vmatprep.subr.bf16.mxu0 0
        %1184 = vmatpush2.bf16.msra.mxu0 0
        %1185 = vmatprep.subr.bf16.mxu0 0
        %1186 = vmatpush2.bf16.msra.mxu0 0
        %1187 = vmatprep.subr.bf16.mxu0 0
        %1188 = vmatpush2.bf16.msra.mxu0 0
        %1189 = vmatprep.subr.bf16.mxu0 0
        %1190 = vmatpush2.bf16.msra.mxu0 0
        %1191 = vmatprep.subr.bf16.mxu0 0
        %1192 = vmatpush2.bf16.msra.mxu0 0
        %1193 = vmatprep.subr.bf16.mxu0 0
        %1194 = vmatpush2.bf16.msra.mxu0 0
        %1195 = vmatprep.mubr.bf16.mxu0 0
        %1196 = vmatmul.mubr.bf16.gmra.mxu0 %v855
        %v1197 = vpop.f32.mrf.mxu0
        %v1198 = vadd.f32 0.0, %v1197
        %v1199 = vpop.f32.mrf.mxu0
        %v1200 = vadd.f32 0.0, %v1199
        %v1201 = vpop.f32.mrf.mxu0
        %v1202 = vadd.f32 0.0, %v1201
        %v1203 = vpop.f32.mrf.mxu0
        %v1204 = vadd.f32 0.0, %v1203
        %1205 = vdwg.mxu0
        %1206 = vmatprep.subr.bf16.mxu0 0
        %1207 = vmatpush1.bf16.msra.mxu0 0
        %1208 = vmatprep.subr.bf16.mxu0 0
        %1209 = vmatpush1.bf16.msra.mxu0 0
        %1210 = vmatprep.subr.bf16.mxu0 0
        %1211 = vmatpush1.bf16.msra.mxu0 0
        %1212 = vmatprep.subr.bf16.mxu0 0
        %1213 = vmatpush1.bf16.msra.mxu0 0
        %1214 = vmatprep.subr.bf16.mxu0 0
        %1215 = vmatpush1.bf16.msra.mxu0 0
        %1216 = vmatprep.subr.bf16.mxu0 0
        %1217 = vmatpush1.bf16.msra.mxu0 0
        %1218 = vmatprep.subr.bf16.mxu0 0
        %1219 = vmatpush1.bf16.msra.mxu0 0
        %1220 = vmatprep.subr.bf16.mxu0 %v903
        %1221 = vmatpush1.bf16.msra.mxu0 %v900
        %1222 = vmatprep.subr.bf16.mxu0 0
        %1223 = vmatpush2.bf16.msra.mxu0 0
        %1224 = vmatprep.subr.bf16.mxu0 0
        %1225 = vmatpush2.bf16.msra.mxu0 0
        %1226 = vmatprep.subr.bf16.mxu0 0
        %1227 = vmatpush2.bf16.msra.mxu0 0
        %1228 = vmatprep.subr.bf16.mxu0 0
        %1229 = vmatpush2.bf16.msra.mxu0 0
        %1230 = vmatprep.subr.bf16.mxu0 0
        %1231 = vmatpush2.bf16.msra.mxu0 0
        %1232 = vmatprep.subr.bf16.mxu0 0
        %1233 = vmatpush2.bf16.msra.mxu0 0
        %1234 = vmatprep.subr.bf16.mxu0 0
        %1235 = vmatpush2.bf16.msra.mxu0 0
        %1236 = vmatprep.subr.bf16.mxu0 0
        %1237 = vmatpush2.bf16.msra.mxu0 0
        %1238 = vmatprep.mubr.bf16.mxu0 0
        %1239 = vmatmul.mubr.bf16.gmra.mxu0 %v855
        %v1240 = vpop.f32.mrf.mxu0
        %v1241 = vadd.f32 0.0, %v1240
        %v1242 = vpop.f32.mrf.mxu0
        %v1243 = vadd.f32 0.0, %v1242
        %v1244 = vpop.f32.mrf.mxu0
        %v1245 = vadd.f32 0.0, %v1244
        %v1246 = vpop.f32.mrf.mxu0
        %v1247 = vadd.f32 0.0, %v1246
        %1248 = vdwg.mxu0
        %v1249 = vpack.c.bf16 %v944, %v940
        %v1250 = vpack.c.bf16 %v946, %v942
        %v1251 = vpack.c.bf16 %v987, %v983
        %v1252 = vpack.c.bf16 %v989, %v985
        %v1253 = vpack.c.bf16 %v1030, %v1026
        %v1254 = vpack.c.bf16 %v1032, %v1028
        %v1255 = vpack.c.bf16 %v1073, %v1069
        %v1256 = vpack.c.bf16 %v1075, %v1071
        %v1257 = vpack.c.bf16 %v1116, %v1112
        %v1258 = vpack.c.bf16 %v1118, %v1114
        %v1259 = vpack.c.bf16 %v1159, %v1155
        %v1260 = vpack.c.bf16 %v1161, %v1157
        %v1261 = vpack.c.bf16 %v1202, %v1198
        %v1262 = vpack.c.bf16 %v1204, %v1200
        %v1263 = vpack.c.bf16 %v1245, %v1241
        %v1264 = vpack.c.bf16 %v1247, %v1243
        %v1266 = vcombine.high %v1249, %v1249
        %v1268 = vunpack.c.l.s4 1983009808
        %v1269 = vunpack.c.0.s8 %v1268
        %v1270 = vlaneseq
        %v1271 = vshrl.u32 %v1270, 7
        %v1272 = vsub.s32 %v1269, %v1271
        %v1273 = vrot.slane %v1249, %v1272
        %v1275 = vunpack.c.l.s4 1983009808
        %v1276 = vunpack.c.0.s8 %v1275
        %v1277 = vlaneseq
        %v1278 = vshrl.u32 %v1277, 7
        %v1279 = vsub.s32 %v1276, %v1278
        %v1280 = vrot.slane %v1266, %v1279
        %v1281 = vcombine.high %v1273, %v1273
        %1285 = vst [vmem:[#allocation2] sm:$0x3] %v1273
        %1286 = vst [vmem:[#allocation2 + $0x20] sm:$0x3] %v1281
        %1287 = vst [vmem:[#allocation2 + $0x40] sm:$0x3] %v1280
        %v1289 = vcombine.high %v1250, %v1250
        %v1291 = vunpack.c.l.s4 1983009808
        %v1292 = vunpack.c.0.s8 %v1291
        %v1293 = vlaneseq
        %v1294 = vshrl.u32 %v1293, 7
        %v1295 = vsub.s32 %v1292, %v1294
        %v1296 = vrot.slane %v1250, %v1295
        %v1298 = vunpack.c.l.s4 1983009808
        %v1299 = vunpack.c.0.s8 %v1298
        %v1300 = vlaneseq
        %v1301 = vshrl.u32 %v1300, 7
        %v1302 = vsub.s32 %v1299, %v1301
        %v1303 = vrot.slane %v1289, %v1302
        %v1304 = vcombine.high %v1296, %v1296
        %s1308 = scalar_lea.vmem [#allocation2], 2
        %1309 = vst [vmem:[%s1308] sm:$0x3] %v1296
        %1310 = vst [vmem:[%s1308 + $0x20] sm:$0x3] %v1304
        %1311 = vst [vmem:[%s1308 + $0x40] sm:$0x3] %v1303
        %v1313 = vcombine.high %v1251, %v1251
        %v1315 = vunpack.c.l.s4 1983009808
        %v1316 = vunpack.c.0.s8 %v1315
        %v1317 = vlaneseq
        %v1318 = vshrl.u32 %v1317, 7
        %v1319 = vsub.s32 %v1316, %v1318
        %v1320 = vrot.slane %v1251, %v1319
        %v1322 = vunpack.c.l.s4 1983009808
        %v1323 = vunpack.c.0.s8 %v1322
        %v1324 = vlaneseq
        %v1325 = vshrl.u32 %v1324, 7
        %v1326 = vsub.s32 %v1323, %v1325
        %v1327 = vrot.slane %v1313, %v1326
        %v1328 = vcombine.high %v1320, %v1320
        %s1332 = scalar_lea.vmem [#allocation2], 4
        %1333 = vst [vmem:[%s1332] sm:$0x3] %v1320
        %1334 = vst [vmem:[%s1332 + $0x20] sm:$0x3] %v1328
        %1335 = vst [vmem:[%s1332 + $0x40] sm:$0x3] %v1327
        %v1337 = vcombine.high %v1252, %v1252
        %v1339 = vunpack.c.l.s4 1983009808
        %v1340 = vunpack.c.0.s8 %v1339
        %v1341 = vlaneseq
        %v1342 = vshrl.u32 %v1341, 7
        %v1343 = vsub.s32 %v1340, %v1342
        %v1344 = vrot.slane %v1252, %v1343
        %v1346 = vunpack.c.l.s4 1983009808
        %v1347 = vunpack.c.0.s8 %v1346
        %v1348 = vlaneseq
        %v1349 = vshrl.u32 %v1348, 7
        %v1350 = vsub.s32 %v1347, %v1349
        %v1351 = vrot.slane %v1337, %v1350
        %v1352 = vcombine.high %v1344, %v1344
        %s1356 = scalar_lea.vmem [#allocation2], 6
        %1357 = vst [vmem:[%s1356] sm:$0x3] %v1344
        %1358 = vst [vmem:[%s1356 + $0x20] sm:$0x3] %v1352
        %1359 = vst [vmem:[%s1356 + $0x40] sm:$0x3] %v1351
        %v1361 = vcombine.high %v1253, %v1253
        %v1363 = vunpack.c.l.s4 1983009808
        %v1364 = vunpack.c.0.s8 %v1363
        %v1365 = vlaneseq
        %v1366 = vshrl.u32 %v1365, 7
        %v1367 = vsub.s32 %v1364, %v1366
        %v1368 = vrot.slane %v1253, %v1367
        %v1370 = vunpack.c.l.s4 1983009808
        %v1371 = vunpack.c.0.s8 %v1370
        %v1372 = vlaneseq
        %v1373 = vshrl.u32 %v1372, 7
        %v1374 = vsub.s32 %v1371, %v1373
        %v1375 = vrot.slane %v1361, %v1374
        %v1376 = vcombine.high %v1368, %v1368
        %s1380 = scalar_lea.vmem [#allocation2], 8
        %1381 = vst [vmem:[%s1380] sm:$0x3] %v1368
        %1382 = vst [vmem:[%s1380 + $0x20] sm:$0x3] %v1376
        %1383 = vst [vmem:[%s1380 + $0x40] sm:$0x3] %v1375
        %v1385 = vcombine.high %v1254, %v1254
        %v1387 = vunpack.c.l.s4 1983009808
        %v1388 = vunpack.c.0.s8 %v1387
        %v1389 = vlaneseq
        %v1390 = vshrl.u32 %v1389, 7
        %v1391 = vsub.s32 %v1388, %v1390
        %v1392 = vrot.slane %v1254, %v1391
        %v1394 = vunpack.c.l.s4 1983009808
        %v1395 = vunpack.c.0.s8 %v1394
        %v1396 = vlaneseq
        %v1397 = vshrl.u32 %v1396, 7
        %v1398 = vsub.s32 %v1395, %v1397
        %v1399 = vrot.slane %v1385, %v1398
        %v1400 = vcombine.high %v1392, %v1392
        %s1404 = scalar_lea.vmem [#allocation2], 10
        %1405 = vst [vmem:[%s1404] sm:$0x3] %v1392
        %1406 = vst [vmem:[%s1404 + $0x20] sm:$0x3] %v1400
        %1407 = vst [vmem:[%s1404 + $0x40] sm:$0x3] %v1399
        %v1409 = vcombine.high %v1255, %v1255
        %v1411 = vunpack.c.l.s4 1983009808
        %v1412 = vunpack.c.0.s8 %v1411
        %v1413 = vlaneseq
        %v1414 = vshrl.u32 %v1413, 7
        %v1415 = vsub.s32 %v1412, %v1414
        %v1416 = vrot.slane %v1255, %v1415
        %v1418 = vunpack.c.l.s4 1983009808
        %v1419 = vunpack.c.0.s8 %v1418
        %v1420 = vlaneseq
        %v1421 = vshrl.u32 %v1420, 7
        %v1422 = vsub.s32 %v1419, %v1421
        %v1423 = vrot.slane %v1409, %v1422
        %v1424 = vcombine.high %v1416, %v1416
        %s1428 = scalar_lea.vmem [#allocation2], 12
        %1429 = vst [vmem:[%s1428] sm:$0x3] %v1416
        %1430 = vst [vmem:[%s1428 + $0x20] sm:$0x3] %v1424
        %1431 = vst [vmem:[%s1428 + $0x40] sm:$0x3] %v1423
        %v1433 = vcombine.high %v1256, %v1256
        %v1435 = vunpack.c.l.s4 1983009808
        %v1436 = vunpack.c.0.s8 %v1435
        %v1437 = vlaneseq
        %v1438 = vshrl.u32 %v1437, 7
        %v1439 = vsub.s32 %v1436, %v1438
        %v1440 = vrot.slane %v1256, %v1439
        %v1442 = vunpack.c.l.s4 1983009808
        %v1443 = vunpack.c.0.s8 %v1442
        %v1444 = vlaneseq
        %v1445 = vshrl.u32 %v1444, 7
        %v1446 = vsub.s32 %v1443, %v1445
        %v1447 = vrot.slane %v1433, %v1446
        %v1448 = vcombine.high %v1440, %v1440
        %s1452 = scalar_lea.vmem [#allocation2], 14
        %1453 = vst [vmem:[%s1452] sm:$0x3] %v1440
        %1454 = vst [vmem:[%s1452 + $0x20] sm:$0x3] %v1448
        %1455 = vst [vmem:[%s1452 + $0x40] sm:$0x3] %v1447
        %v1457 = vcombine.high %v1257, %v1257
        %v1459 = vunpack.c.l.s4 1983009808
        %v1460 = vunpack.c.0.s8 %v1459
        %v1461 = vlaneseq
        %v1462 = vshrl.u32 %v1461, 7
        %v1463 = vsub.s32 %v1460, %v1462
        %v1464 = vrot.slane %v1257, %v1463
        %v1466 = vunpack.c.l.s4 1983009808
        %v1467 = vunpack.c.0.s8 %v1466
        %v1468 = vlaneseq
        %v1469 = vshrl.u32 %v1468, 7
        %v1470 = vsub.s32 %v1467, %v1469
        %v1471 = vrot.slane %v1457, %v1470
        %v1472 = vcombine.high %v1464, %v1464
        %s1476 = scalar_lea.vmem [#allocation2], 16
        %1477 = vst [vmem:[%s1476] sm:$0x3] %v1464
        %1478 = vst [vmem:[%s1476 + $0x20] sm:$0x3] %v1472
        %1479 = vst [vmem:[%s1476 + $0x40] sm:$0x3] %v1471
        %v1481 = vcombine.high %v1258, %v1258
        %v1483 = vunpack.c.l.s4 1983009808
        %v1484 = vunpack.c.0.s8 %v1483
        %v1485 = vlaneseq
        %v1486 = vshrl.u32 %v1485, 7
        %v1487 = vsub.s32 %v1484, %v1486
        %v1488 = vrot.slane %v1258, %v1487
        %v1490 = vunpack.c.l.s4 1983009808
        %v1491 = vunpack.c.0.s8 %v1490
        %v1492 = vlaneseq
        %v1493 = vshrl.u32 %v1492, 7
        %v1494 = vsub.s32 %v1491, %v1493
        %v1495 = vrot.slane %v1481, %v1494
        %v1496 = vcombine.high %v1488, %v1488
        %s1500 = scalar_lea.vmem [#allocation2], 18
        %1501 = vst [vmem:[%s1500] sm:$0x3] %v1488
        %1502 = vst [vmem:[%s1500 + $0x20] sm:$0x3] %v1496
        %1503 = vst [vmem:[%s1500 + $0x40] sm:$0x3] %v1495
        %v1505 = vcombine.high %v1259, %v1259
        %v1507 = vunpack.c.l.s4 1983009808
        %v1508 = vunpack.c.0.s8 %v1507
        %v1509 = vlaneseq
        %v1510 = vshrl.u32 %v1509, 7
        %v1511 = vsub.s32 %v1508, %v1510
        %v1512 = vrot.slane %v1259, %v1511
        %v1514 = vunpack.c.l.s4 1983009808
        %v1515 = vunpack.c.0.s8 %v1514
        %v1516 = vlaneseq
        %v1517 = vshrl.u32 %v1516, 7
        %v1518 = vsub.s32 %v1515, %v1517
        %v1519 = vrot.slane %v1505, %v1518
        %v1520 = vcombine.high %v1512, %v1512
        %s1524 = scalar_lea.vmem [#allocation2], 20
        %1525 = vst [vmem:[%s1524] sm:$0x3] %v1512
        %1526 = vst [vmem:[%s1524 + $0x20] sm:$0x3] %v1520
        %1527 = vst [vmem:[%s1524 + $0x40] sm:$0x3] %v1519
        %v1529 = vcombine.high %v1260, %v1260
        %v1531 = vunpack.c.l.s4 1983009808
        %v1532 = vunpack.c.0.s8 %v1531
        %v1533 = vlaneseq
        %v1534 = vshrl.u32 %v1533, 7
        %v1535 = vsub.s32 %v1532, %v1534
        %v1536 = vrot.slane %v1260, %v1535
        %v1538 = vunpack.c.l.s4 1983009808
        %v1539 = vunpack.c.0.s8 %v1538
        %v1540 = vlaneseq
        %v1541 = vshrl.u32 %v1540, 7
        %v1542 = vsub.s32 %v1539, %v1541
        %v1543 = vrot.slane %v1529, %v1542
        %v1544 = vcombine.high %v1536, %v1536
        %s1548 = scalar_lea.vmem [#allocation2], 22
        %1549 = vst [vmem:[%s1548] sm:$0x3] %v1536
        %1550 = vst [vmem:[%s1548 + $0x20] sm:$0x3] %v1544
        %1551 = vst [vmem:[%s1548 + $0x40] sm:$0x3] %v1543
        %v1553 = vcombine.high %v1261, %v1261
        %v1555 = vunpack.c.l.s4 1983009808
        %v1556 = vunpack.c.0.s8 %v1555
        %v1557 = vlaneseq
        %v1558 = vshrl.u32 %v1557, 7
        %v1559 = vsub.s32 %v1556, %v1558
        %v1560 = vrot.slane %v1261, %v1559
        %v1562 = vunpack.c.l.s4 1983009808
        %v1563 = vunpack.c.0.s8 %v1562
        %v1564 = vlaneseq
        %v1565 = vshrl.u32 %v1564, 7
        %v1566 = vsub.s32 %v1563, %v1565
        %v1567 = vrot.slane %v1553, %v1566
        %v1568 = vcombine.high %v1560, %v1560
        %s1572 = scalar_lea.vmem [#allocation2], 24
        %1573 = vst [vmem:[%s1572] sm:$0x3] %v1560
        %1574 = vst [vmem:[%s1572 + $0x20] sm:$0x3] %v1568
        %1575 = vst [vmem:[%s1572 + $0x40] sm:$0x3] %v1567
        %v1577 = vcombine.high %v1262, %v1262
        %v1579 = vunpack.c.l.s4 1983009808
        %v1580 = vunpack.c.0.s8 %v1579
        %v1581 = vlaneseq
        %v1582 = vshrl.u32 %v1581, 7
        %v1583 = vsub.s32 %v1580, %v1582
        %v1584 = vrot.slane %v1262, %v1583
        %v1586 = vunpack.c.l.s4 1983009808
        %v1587 = vunpack.c.0.s8 %v1586
        %v1588 = vlaneseq
        %v1589 = vshrl.u32 %v1588, 7
        %v1590 = vsub.s32 %v1587, %v1589
        %v1591 = vrot.slane %v1577, %v1590
        %v1592 = vcombine.high %v1584, %v1584
        %s1596 = scalar_lea.vmem [#allocation2], 26
        %1597 = vst [vmem:[%s1596] sm:$0x3] %v1584
        %1598 = vst [vmem:[%s1596 + $0x20] sm:$0x3] %v1592
        %1599 = vst [vmem:[%s1596 + $0x40] sm:$0x3] %v1591
        %v1601 = vcombine.high %v1263, %v1263
        %v1603 = vunpack.c.l.s4 1983009808
        %v1604 = vunpack.c.0.s8 %v1603
        %v1605 = vlaneseq
        %v1606 = vshrl.u32 %v1605, 7
        %v1607 = vsub.s32 %v1604, %v1606
        %v1608 = vrot.slane %v1263, %v1607
        %v1610 = vunpack.c.l.s4 1983009808
        %v1611 = vunpack.c.0.s8 %v1610
        %v1612 = vlaneseq
        %v1613 = vshrl.u32 %v1612, 7
        %v1614 = vsub.s32 %v1611, %v1613
        %v1615 = vrot.slane %v1601, %v1614
        %v1616 = vcombine.high %v1608, %v1608
        %s1620 = scalar_lea.vmem [#allocation2], 28
        %1621 = vst [vmem:[%s1620] sm:$0x3] %v1608
        %1622 = vst [vmem:[%s1620 + $0x20] sm:$0x3] %v1616
        %1623 = vst [vmem:[%s1620 + $0x40] sm:$0x3] %v1615
        %v1625 = vcombine.high %v1264, %v1264
        %v1627 = vunpack.c.l.s4 1983009808
        %v1628 = vunpack.c.0.s8 %v1627
        %v1629 = vlaneseq
        %v1630 = vshrl.u32 %v1629, 7
        %v1631 = vsub.s32 %v1628, %v1630
        %v1632 = vrot.slane %v1264, %v1631
        %v1634 = vunpack.c.l.s4 1983009808
        %v1635 = vunpack.c.0.s8 %v1634
        %v1636 = vlaneseq
        %v1637 = vshrl.u32 %v1636, 7
        %v1638 = vsub.s32 %v1635, %v1637
        %v1639 = vrot.slane %v1625, %v1638
        %v1640 = vcombine.high %v1632, %v1632
        %s1644 = scalar_lea.vmem [#allocation2], 30
        %1645 = vst [vmem:[%s1644] sm:$0x3] %v1632
        %1646 = vst [vmem:[%s1644 + $0x20] sm:$0x3] %v1640
        %1647 = vst [vmem:[%s1644 + $0x40] sm:$0x3] %v1639
        %v1648 = vld [vmem:[#allocation2] sm:$0x3]
        %v1649 = vld [vmem:[#allocation2 + $0x2] sm:$0x3]
        %v1650 = vld [vmem:[#allocation2 + $0x4] sm:$0x3]
        %v1651 = vld [vmem:[#allocation2 + $0x6] sm:$0x3]
        %v1652 = vld [vmem:[#allocation2 + $0x8] sm:$0x3]
        %v1653 = vld [vmem:[#allocation2 + $0xa] sm:$0x3]
        %v1654 = vld [vmem:[#allocation2 + $0xc] sm:$0x3]
        %v1655 = vld [vmem:[#allocation2 + $0xe] sm:$0x3]
        %v1656 = vld [vmem:[#allocation2 + $0x10] sm:$0x3]
        %v1657 = vld [vmem:[#allocation2 + $0x12] sm:$0x3]
        %v1658 = vld [vmem:[#allocation2 + $0x14] sm:$0x3]
        %v1659 = vld [vmem:[#allocation2 + $0x16] sm:$0x3]
        %v1660 = vld [vmem:[#allocation2 + $0x18] sm:$0x3]
        %v1661 = vld [vmem:[#allocation2 + $0x1a] sm:$0x3]
        %v1662 = vld [vmem:[#allocation2 + $0x1c] sm:$0x3]
        %v1663 = vld [vmem:[#allocation2 + $0x1e] sm:$0x3]
        %v1664 = vld [vmem:[#allocation2 + $0x20] sm:$0x3]
        %v1665 = vld [vmem:[#allocation2 + $0x22] sm:$0x3]
        %v1666 = vld [vmem:[#allocation2 + $0x24] sm:$0x3]
        %v1667 = vld [vmem:[#allocation2 + $0x26] sm:$0x3]
        %v1668 = vld [vmem:[#allocation2 + $0x28] sm:$0x3]
        %v1669 = vld [vmem:[#allocation2 + $0x2a] sm:$0x3]
        %v1670 = vld [vmem:[#allocation2 + $0x2c] sm:$0x3]
        %v1671 = vld [vmem:[#allocation2 + $0x2e] sm:$0x3]
        %v1672 = vld [vmem:[#allocation2 + $0x30] sm:$0x3]
        %v1673 = vld [vmem:[#allocation2 + $0x32] sm:$0x3]
        %v1674 = vld [vmem:[#allocation2 + $0x34] sm:$0x3]
        %v1675 = vld [vmem:[#allocation2 + $0x36] sm:$0x3]
        %v1676 = vld [vmem:[#allocation2 + $0x38] sm:$0x3]
        %v1677 = vld [vmem:[#allocation2 + $0x3a] sm:$0x3]
        %v1678 = vld [vmem:[#allocation2 + $0x3c] sm:$0x3]
        %v1679 = vld [vmem:[#allocation2 + $0x3e] sm:$0x3]
        %v1680 = vld [vmem:[#allocation2 + $0x40] sm:$0x3]
        %v1681 = vld [vmem:[#allocation2 + $0x42] sm:$0x3]
        %v1682 = vld [vmem:[#allocation2 + $0x44] sm:$0x3]
        %v1683 = vld [vmem:[#allocation2 + $0x46] sm:$0x3]
        %v1684 = vld [vmem:[#allocation2 + $0x48] sm:$0x3]
        %v1685 = vld [vmem:[#allocation2 + $0x4a] sm:$0x3]
        %v1686 = vld [vmem:[#allocation2 + $0x4c] sm:$0x3]
        %v1687 = vld [vmem:[#allocation2 + $0x4e] sm:$0x3]
        %v1688 = vld [vmem:[#allocation2 + $0x50] sm:$0x3]
        %v1689 = vld [vmem:[#allocation2 + $0x52] sm:$0x3]
        %v1690 = vld [vmem:[#allocation2 + $0x54] sm:$0x3]
        %v1691 = vld [vmem:[#allocation2 + $0x56] sm:$0x3]
        %v1692 = vld [vmem:[#allocation2 + $0x58] sm:$0x3]
        %v1693 = vld [vmem:[#allocation2 + $0x5a] sm:$0x3]
        %v1694 = vld [vmem:[#allocation2 + $0x5c] sm:$0x3]
        %v1695 = vld [vmem:[#allocation2 + $0x5e] sm:$0x3]
        %v1696 = vcombine.low %v1648, %v1650
        %v1698 = vunpack.c.l.s4 1934713408
        %v1699 = vunpack.c.0.s8 %v1698
        %v1700 = vlaneseq
        %v1701 = vshrl.u32 %v1700, 7
        %v1702 = vsub.s32 %v1699, %v1701
        %v1703 = vrot.slane %v1696, %v1702
        %v1704 = vcombine.high %v1703, 0
        %v1705 = vcombine.low %v1649, %v1651
        %v1707 = vunpack.c.l.s4 1934713408
        %v1708 = vunpack.c.0.s8 %v1707
        %v1709 = vlaneseq
        %v1710 = vshrl.u32 %v1709, 7
        %v1711 = vsub.s32 %v1708, %v1710
        %v1712 = vrot.slane %v1705, %v1711
        %v1713 = vcombine.high %v1712, 0
        %v1714 = vcombine.low %v1652, %v1654
        %v1716 = vunpack.c.l.s4 1934713408
        %v1717 = vunpack.c.0.s8 %v1716
        %v1718 = vlaneseq
        %v1719 = vshrl.u32 %v1718, 7
        %v1720 = vsub.s32 %v1717, %v1719
        %v1721 = vrot.slane %v1714, %v1720
        %v1722 = vcombine.high %v1721, 0
        %v1723 = vcombine.low %v1653, %v1655
        %v1725 = vunpack.c.l.s4 1934713408
        %v1726 = vunpack.c.0.s8 %v1725
        %v1727 = vlaneseq
        %v1728 = vshrl.u32 %v1727, 7
        %v1729 = vsub.s32 %v1726, %v1728
        %v1730 = vrot.slane %v1723, %v1729
        %v1731 = vcombine.high %v1730, 0
        %v1732 = vcombine.low %v1656, %v1658
        %v1734 = vunpack.c.l.s4 1934713408
        %v1735 = vunpack.c.0.s8 %v1734
        %v1736 = vlaneseq
        %v1737 = vshrl.u32 %v1736, 7
        %v1738 = vsub.s32 %v1735, %v1737
        %v1739 = vrot.slane %v1732, %v1738
        %v1740 = vcombine.high %v1739, 0
        %v1741 = vcombine.low %v1657, %v1659
        %v1743 = vunpack.c.l.s4 1934713408
        %v1744 = vunpack.c.0.s8 %v1743
        %v1745 = vlaneseq
        %v1746 = vshrl.u32 %v1745, 7
        %v1747 = vsub.s32 %v1744, %v1746
        %v1748 = vrot.slane %v1741, %v1747
        %v1749 = vcombine.high %v1748, 0
        %v1750 = vcombine.low %v1660, %v1662
        %v1752 = vunpack.c.l.s4 1934713408
        %v1753 = vunpack.c.0.s8 %v1752
        %v1754 = vlaneseq
        %v1755 = vshrl.u32 %v1754, 7
        %v1756 = vsub.s32 %v1753, %v1755
        %v1757 = vrot.slane %v1750, %v1756
        %v1758 = vcombine.high %v1757, 0
        %v1759 = vcombine.low %v1661, %v1663
        %v1761 = vunpack.c.l.s4 1934713408
        %v1762 = vunpack.c.0.s8 %v1761
        %v1763 = vlaneseq
        %v1764 = vshrl.u32 %v1763, 7
        %v1765 = vsub.s32 %v1762, %v1764
        %v1766 = vrot.slane %v1759, %v1765
        %v1767 = vcombine.high %v1766, 0
        %v1768 = vcombine.low %v1664, %v1666
        %v1770 = vunpack.c.l.s4 1934713408
        %v1771 = vunpack.c.0.s8 %v1770
        %v1772 = vlaneseq
        %v1773 = vshrl.u32 %v1772, 7
        %v1774 = vsub.s32 %v1771, %v1773
        %v1775 = vrot.slane %v1768, %v1774
        %v1776 = vcombine.high %v1775, 0
        %v1777 = vcombine.low %v1665, %v1667
        %v1779 = vunpack.c.l.s4 1934713408
        %v1780 = vunpack.c.0.s8 %v1779
        %v1781 = vlaneseq
        %v1782 = vshrl.u32 %v1781, 7
        %v1783 = vsub.s32 %v1780, %v1782
        %v1784 = vrot.slane %v1777, %v1783
        %v1785 = vcombine.high %v1784, 0
        %v1786 = vcombine.low %v1668, %v1670
        %v1788 = vunpack.c.l.s4 1934713408
        %v1789 = vunpack.c.0.s8 %v1788
        %v1790 = vlaneseq
        %v1791 = vshrl.u32 %v1790, 7
        %v1792 = vsub.s32 %v1789, %v1791
        %v1793 = vrot.slane %v1786, %v1792
        %v1794 = vcombine.high %v1793, 0
        %v1795 = vcombine.low %v1669, %v1671
        %v1797 = vunpack.c.l.s4 1934713408
        %v1798 = vunpack.c.0.s8 %v1797
        %v1799 = vlaneseq
        %v1800 = vshrl.u32 %v1799, 7
        %v1801 = vsub.s32 %v1798, %v1800
        %v1802 = vrot.slane %v1795, %v1801
        %v1803 = vcombine.high %v1802, 0
        %v1804 = vcombine.low %v1672, %v1674
        %v1806 = vunpack.c.l.s4 1934713408
        %v1807 = vunpack.c.0.s8 %v1806
        %v1808 = vlaneseq
        %v1809 = vshrl.u32 %v1808, 7
        %v1810 = vsub.s32 %v1807, %v1809
        %v1811 = vrot.slane %v1804, %v1810
        %v1812 = vcombine.high %v1811, 0
        %v1813 = vcombine.low %v1673, %v1675
        %v1815 = vunpack.c.l.s4 1934713408
        %v1816 = vunpack.c.0.s8 %v1815
        %v1817 = vlaneseq
        %v1818 = vshrl.u32 %v1817, 7
        %v1819 = vsub.s32 %v1816, %v1818
        %v1820 = vrot.slane %v1813, %v1819
        %v1821 = vcombine.high %v1820, 0
        %v1822 = vcombine.low %v1676, %v1678
        %v1824 = vunpack.c.l.s4 1934713408
        %v1825 = vunpack.c.0.s8 %v1824
        %v1826 = vlaneseq
        %v1827 = vshrl.u32 %v1826, 7
        %v1828 = vsub.s32 %v1825, %v1827
        %v1829 = vrot.slane %v1822, %v1828
        %v1830 = vcombine.high %v1829, 0
        %v1831 = vcombine.low %v1677, %v1679
        %v1833 = vunpack.c.l.s4 1934713408
        %v1834 = vunpack.c.0.s8 %v1833
        %v1835 = vlaneseq
        %v1836 = vshrl.u32 %v1835, 7
        %v1837 = vsub.s32 %v1834, %v1836
        %v1838 = vrot.slane %v1831, %v1837
        %v1839 = vcombine.high %v1838, 0
        %v1840 = vcombine.low %v1680, %v1682
        %v1842 = vunpack.c.l.s4 1934713408
        %v1843 = vunpack.c.0.s8 %v1842
        %v1844 = vlaneseq
        %v1845 = vshrl.u32 %v1844, 7
        %v1846 = vsub.s32 %v1843, %v1845
        %v1847 = vrot.slane %v1840, %v1846
        %v1848 = vcombine.high %v1847, 0
        %v1849 = vcombine.low %v1681, %v1683
        %v1851 = vunpack.c.l.s4 1934713408
        %v1852 = vunpack.c.0.s8 %v1851
        %v1853 = vlaneseq
        %v1854 = vshrl.u32 %v1853, 7
        %v1855 = vsub.s32 %v1852, %v1854
        %v1856 = vrot.slane %v1849, %v1855
        %v1857 = vcombine.high %v1856, 0
        %v1858 = vcombine.low %v1684, %v1686
        %v1860 = vunpack.c.l.s4 1934713408
        %v1861 = vunpack.c.0.s8 %v1860
        %v1862 = vlaneseq
        %v1863 = vshrl.u32 %v1862, 7
        %v1864 = vsub.s32 %v1861, %v1863
        %v1865 = vrot.slane %v1858, %v1864
        %v1866 = vcombine.high %v1865, 0
        %v1867 = vcombine.low %v1685, %v1687
        %v1869 = vunpack.c.l.s4 1934713408
        %v1870 = vunpack.c.0.s8 %v1869
        %v1871 = vlaneseq
        %v1872 = vshrl.u32 %v1871, 7
        %v1873 = vsub.s32 %v1870, %v1872
        %v1874 = vrot.slane %v1867, %v1873
        %v1875 = vcombine.high %v1874, 0
        %v1876 = vcombine.low %v1688, %v1690
        %v1878 = vunpack.c.l.s4 1934713408
        %v1879 = vunpack.c.0.s8 %v1878
        %v1880 = vlaneseq
        %v1881 = vshrl.u32 %v1880, 7
        %v1882 = vsub.s32 %v1879, %v1881
        %v1883 = vrot.slane %v1876, %v1882
        %v1884 = vcombine.high %v1883, 0
        %v1885 = vcombine.low %v1689, %v1691
        %v1887 = vunpack.c.l.s4 1934713408
        %v1888 = vunpack.c.0.s8 %v1887
        %v1889 = vlaneseq
        %v1890 = vshrl.u32 %v1889, 7
        %v1891 = vsub.s32 %v1888, %v1890
        %v1892 = vrot.slane %v1885, %v1891
        %v1893 = vcombine.high %v1892, 0
        %v1894 = vcombine.low %v1692, %v1694
        %v1896 = vunpack.c.l.s4 1934713408
        %v1897 = vunpack.c.0.s8 %v1896
        %v1898 = vlaneseq
        %v1899 = vshrl.u32 %v1898, 7
        %v1900 = vsub.s32 %v1897, %v1899
        %v1901 = vrot.slane %v1894, %v1900
        %v1902 = vcombine.high %v1901, 0
        %v1903 = vcombine.low %v1693, %v1695
        %v1905 = vunpack.c.l.s4 1934713408
        %v1906 = vunpack.c.0.s8 %v1905
        %v1907 = vlaneseq
        %v1908 = vshrl.u32 %v1907, 7
        %v1909 = vsub.s32 %v1906, %v1908
        %v1910 = vrot.slane %v1903, %v1909
        %v1911 = vcombine.high %v1910, 0
        %v1914 = vpack.i.b16 %v1712, %v1703
        %v1915 = vshrl.u32 %v1703, 16
        %v1916 = vshrl.u32 %v1712, 16
        %v1917 = vpack.i.b16 %v1916, %v1915
        %v1920 = vpack.i.b16 %v1713, %v1704
        %v1921 = vshrl.u32 %v1704, 16
        %v1922 = vshrl.u32 %v1713, 16
        %v1923 = vpack.i.b16 %v1922, %v1921
        %v1926 = vpack.i.b16 %v1730, %v1721
        %v1927 = vshrl.u32 %v1721, 16
        %v1928 = vshrl.u32 %v1730, 16
        %v1929 = vpack.i.b16 %v1928, %v1927
        %v1932 = vpack.i.b16 %v1731, %v1722
        %v1933 = vshrl.u32 %v1722, 16
        %v1934 = vshrl.u32 %v1731, 16
        %v1935 = vpack.i.b16 %v1934, %v1933
        %v1938 = vpack.i.b16 %v1748, %v1739
        %v1939 = vshrl.u32 %v1739, 16
        %v1940 = vshrl.u32 %v1748, 16
        %v1941 = vpack.i.b16 %v1940, %v1939
        %v1944 = vpack.i.b16 %v1749, %v1740
        %v1945 = vshrl.u32 %v1740, 16
        %v1946 = vshrl.u32 %v1749, 16
        %v1947 = vpack.i.b16 %v1946, %v1945
        %v1950 = vpack.i.b16 %v1766, %v1757
        %v1951 = vshrl.u32 %v1757, 16
        %v1952 = vshrl.u32 %v1766, 16
        %v1953 = vpack.i.b16 %v1952, %v1951
        %v1956 = vpack.i.b16 %v1767, %v1758
        %v1957 = vshrl.u32 %v1758, 16
        %v1958 = vshrl.u32 %v1767, 16
        %v1959 = vpack.i.b16 %v1958, %v1957
        %v1962 = vpack.i.b16 %v1784, %v1775
        %v1963 = vshrl.u32 %v1775, 16
        %v1964 = vshrl.u32 %v1784, 16
        %v1965 = vpack.i.b16 %v1964, %v1963
        %v1968 = vpack.i.b16 %v1785, %v1776
        %v1969 = vshrl.u32 %v1776, 16
        %v1970 = vshrl.u32 %v1785, 16
        %v1971 = vpack.i.b16 %v1970, %v1969
        %v1974 = vpack.i.b16 %v1802, %v1793
        %v1975 = vshrl.u32 %v1793, 16
        %v1976 = vshrl.u32 %v1802, 16
        %v1977 = vpack.i.b16 %v1976, %v1975
        %v1980 = vpack.i.b16 %v1803, %v1794
        %v1981 = vshrl.u32 %v1794, 16
        %v1982 = vshrl.u32 %v1803, 16
        %v1983 = vpack.i.b16 %v1982, %v1981
        %v1986 = vpack.i.b16 %v1820, %v1811
        %v1987 = vshrl.u32 %v1811, 16
        %v1988 = vshrl.u32 %v1820, 16
        %v1989 = vpack.i.b16 %v1988, %v1987
        %v1992 = vpack.i.b16 %v1821, %v1812
        %v1993 = vshrl.u32 %v1812, 16
        %v1994 = vshrl.u32 %v1821, 16
        %v1995 = vpack.i.b16 %v1994, %v1993
        %v1998 = vpack.i.b16 %v1838, %v1829
        %v1999 = vshrl.u32 %v1829, 16
        %v2000 = vshrl.u32 %v1838, 16
        %v2001 = vpack.i.b16 %v2000, %v1999
        %v2004 = vpack.i.b16 %v1839, %v1830
        %v2005 = vshrl.u32 %v1830, 16
        %v2006 = vshrl.u32 %v1839, 16
        %v2007 = vpack.i.b16 %v2006, %v2005
        %v2010 = vpack.i.b16 %v1856, %v1847
        %v2011 = vshrl.u32 %v1847, 16
        %v2012 = vshrl.u32 %v1856, 16
        %v2013 = vpack.i.b16 %v2012, %v2011
        %v2016 = vpack.i.b16 %v1857, %v1848
        %v2017 = vshrl.u32 %v1848, 16
        %v2018 = vshrl.u32 %v1857, 16
        %v2019 = vpack.i.b16 %v2018, %v2017
        %v2022 = vpack.i.b16 %v1874, %v1865
        %v2023 = vshrl.u32 %v1865, 16
        %v2024 = vshrl.u32 %v1874, 16
        %v2025 = vpack.i.b16 %v2024, %v2023
        %v2028 = vpack.i.b16 %v1875, %v1866
        %v2029 = vshrl.u32 %v1866, 16
        %v2030 = vshrl.u32 %v1875, 16
        %v2031 = vpack.i.b16 %v2030, %v2029
        %v2034 = vpack.i.b16 %v1892, %v1883
        %v2035 = vshrl.u32 %v1883, 16
        %v2036 = vshrl.u32 %v1892, 16
        %v2037 = vpack.i.b16 %v2036, %v2035
        %v2040 = vpack.i.b16 %v1893, %v1884
        %v2041 = vshrl.u32 %v1884, 16
        %v2042 = vshrl.u32 %v1893, 16
        %v2043 = vpack.i.b16 %v2042, %v2041
        %v2046 = vpack.i.b16 %v1910, %v1901
        %v2047 = vshrl.u32 %v1901, 16
        %v2048 = vshrl.u32 %v1910, 16
        %v2049 = vpack.i.b16 %v2048, %v2047
        %v2052 = vpack.i.b16 %v1911, %v1902
        %v2053 = vshrl.u32 %v1902, 16
        %v2054 = vshrl.u32 %v1911, 16
        %v2055 = vpack.i.b16 %v2054, %v2053
        %v2056 = vcombine.low %v1914, %v1926
        %v2057 = vcombine.low %v1938, %v1950
        %v2059 = vunpack.c.l.s4 1983009808
        %v2060 = vunpack.c.0.s8 %v2059
        %v2061 = vlaneseq
        %v2062 = vshrl.u32 %v2061, 7
        %v2063 = vsub.s32 %v2060, %v2062
        %v2064 = vrot.slane %v2056, %v2063
        %v2066 = vunpack.c.l.s4 1983009808
        %v2067 = vunpack.c.0.s8 %v2066
        %v2068 = vlaneseq
        %v2069 = vshrl.u32 %v2068, 7
        %v2070 = vsub.s32 %v2067, %v2069
        %v2071 = vrot.slane %v2057, %v2070
        %v2072 = vcombine.low %v2064, %v2071
        %v2073 = vcombine.low %v1962, %v1974
        %v2074 = vcombine.low %v1986, %v1998
        %v2076 = vunpack.c.l.s4 1983009808
        %v2077 = vunpack.c.0.s8 %v2076
        %v2078 = vlaneseq
        %v2079 = vshrl.u32 %v2078, 7
        %v2080 = vsub.s32 %v2077, %v2079
        %v2081 = vrot.slane %v2073, %v2080
        %v2083 = vunpack.c.l.s4 1983009808
        %v2084 = vunpack.c.0.s8 %v2083
        %v2085 = vlaneseq
        %v2086 = vshrl.u32 %v2085, 7
        %v2087 = vsub.s32 %v2084, %v2086
        %v2088 = vrot.slane %v2074, %v2087
        %v2089 = vcombine.low %v2081, %v2088
        %v2090 = vcombine.low %v2010, %v2022
        %v2091 = vcombine.low %v2034, %v2046
        %v2093 = vunpack.c.l.s4 1983009808
        %v2094 = vunpack.c.0.s8 %v2093
        %v2095 = vlaneseq
        %v2096 = vshrl.u32 %v2095, 7
        %v2097 = vsub.s32 %v2094, %v2096
        %v2098 = vrot.slane %v2090, %v2097
        %v2100 = vunpack.c.l.s4 1983009808
        %v2101 = vunpack.c.0.s8 %v2100
        %v2102 = vlaneseq
        %v2103 = vshrl.u32 %v2102, 7
        %v2104 = vsub.s32 %v2101, %v2103
        %v2105 = vrot.slane %v2091, %v2104
        %v2106 = vcombine.low %v2098, %v2105
        %v2110 = vcombine.low %v1917, %v1929
        %v2111 = vcombine.low %v1941, %v1953
        %v2113 = vunpack.c.l.s4 1983009808
        %v2114 = vunpack.c.0.s8 %v2113
        %v2115 = vlaneseq
        %v2116 = vshrl.u32 %v2115, 7
        %v2117 = vsub.s32 %v2114, %v2116
        %v2118 = vrot.slane %v2110, %v2117
        %v2120 = vunpack.c.l.s4 1983009808
        %v2121 = vunpack.c.0.s8 %v2120
        %v2122 = vlaneseq
        %v2123 = vshrl.u32 %v2122, 7
        %v2124 = vsub.s32 %v2121, %v2123
        %v2125 = vrot.slane %v2111, %v2124
        %v2126 = vcombine.low %v2118, %v2125
        %v2127 = vcombine.low %v1965, %v1977
        %v2128 = vcombine.low %v1989, %v2001
        %v2130 = vunpack.c.l.s4 1983009808
        %v2131 = vunpack.c.0.s8 %v2130
        %v2132 = vlaneseq
        %v2133 = vshrl.u32 %v2132, 7
        %v2134 = vsub.s32 %v2131, %v2133
        %v2135 = vrot.slane %v2127, %v2134
        %v2137 = vunpack.c.l.s4 1983009808
        %v2138 = vunpack.c.0.s8 %v2137
        %v2139 = vlaneseq
        %v2140 = vshrl.u32 %v2139, 7
        %v2141 = vsub.s32 %v2138, %v2140
        %v2142 = vrot.slane %v2128, %v2141
        %v2143 = vcombine.low %v2135, %v2142
        %v2144 = vcombine.low %v2013, %v2025
        %v2145 = vcombine.low %v2037, %v2049
        %v2147 = vunpack.c.l.s4 1983009808
        %v2148 = vunpack.c.0.s8 %v2147
        %v2149 = vlaneseq
        %v2150 = vshrl.u32 %v2149, 7
        %v2151 = vsub.s32 %v2148, %v2150
        %v2152 = vrot.slane %v2144, %v2151
        %v2154 = vunpack.c.l.s4 1983009808
        %v2155 = vunpack.c.0.s8 %v2154
        %v2156 = vlaneseq
        %v2157 = vshrl.u32 %v2156, 7
        %v2158 = vsub.s32 %v2155, %v2157
        %v2159 = vrot.slane %v2145, %v2158
        %v2160 = vcombine.low %v2152, %v2159
        %v2164 = vcombine.low %v1920, %v1932
        %v2165 = vcombine.low %v1944, %v1956
        %v2167 = vunpack.c.l.s4 1983009808
        %v2168 = vunpack.c.0.s8 %v2167
        %v2169 = vlaneseq
        %v2170 = vshrl.u32 %v2169, 7
        %v2171 = vsub.s32 %v2168, %v2170
        %v2172 = vrot.slane %v2164, %v2171
        %v2174 = vunpack.c.l.s4 1983009808
        %v2175 = vunpack.c.0.s8 %v2174
        %v2176 = vlaneseq
        %v2177 = vshrl.u32 %v2176, 7
        %v2178 = vsub.s32 %v2175, %v2177
        %v2179 = vrot.slane %v2165, %v2178
        %v2180 = vcombine.low %v2172, %v2179
        %v2181 = vcombine.low %v1968, %v1980
        %v2182 = vcombine.low %v1992, %v2004
        %v2184 = vunpack.c.l.s4 1983009808
        %v2185 = vunpack.c.0.s8 %v2184
        %v2186 = vlaneseq
        %v2187 = vshrl.u32 %v2186, 7
        %v2188 = vsub.s32 %v2185, %v2187
        %v2189 = vrot.slane %v2181, %v2188
        %v2191 = vunpack.c.l.s4 1983009808
        %v2192 = vunpack.c.0.s8 %v2191
        %v2193 = vlaneseq
        %v2194 = vshrl.u32 %v2193, 7
        %v2195 = vsub.s32 %v2192, %v2194
        %v2196 = vrot.slane %v2182, %v2195
        %v2197 = vcombine.low %v2189, %v2196
        %v2198 = vcombine.low %v2016, %v2028
        %v2199 = vcombine.low %v2040, %v2052
        %v2201 = vunpack.c.l.s4 1983009808
        %v2202 = vunpack.c.0.s8 %v2201
        %v2203 = vlaneseq
        %v2204 = vshrl.u32 %v2203, 7
        %v2205 = vsub.s32 %v2202, %v2204
        %v2206 = vrot.slane %v2198, %v2205
        %v2208 = vunpack.c.l.s4 1983009808
        %v2209 = vunpack.c.0.s8 %v2208
        %v2210 = vlaneseq
        %v2211 = vshrl.u32 %v2210, 7
        %v2212 = vsub.s32 %v2209, %v2211
        %v2213 = vrot.slane %v2199, %v2212
        %v2214 = vcombine.low %v2206, %v2213
        %v2218 = vcombine.low %v1923, %v1935
        %v2219 = vcombine.low %v1947, %v1959
        %v2221 = vunpack.c.l.s4 1983009808
        %v2222 = vunpack.c.0.s8 %v2221
        %v2223 = vlaneseq
        %v2224 = vshrl.u32 %v2223, 7
        %v2225 = vsub.s32 %v2222, %v2224
        %v2226 = vrot.slane %v2218, %v2225
        %v2228 = vunpack.c.l.s4 1983009808
        %v2229 = vunpack.c.0.s8 %v2228
        %v2230 = vlaneseq
        %v2231 = vshrl.u32 %v2230, 7
        %v2232 = vsub.s32 %v2229, %v2231
        %v2233 = vrot.slane %v2219, %v2232
        %v2234 = vcombine.low %v2226, %v2233
        %v2235 = vcombine.low %v1971, %v1983
        %v2236 = vcombine.low %v1995, %v2007
        %v2238 = vunpack.c.l.s4 1983009808
        %v2239 = vunpack.c.0.s8 %v2238
        %v2240 = vlaneseq
        %v2241 = vshrl.u32 %v2240, 7
        %v2242 = vsub.s32 %v2239, %v2241
        %v2243 = vrot.slane %v2235, %v2242
        %v2245 = vunpack.c.l.s4 1983009808
        %v2246 = vunpack.c.0.s8 %v2245
        %v2247 = vlaneseq
        %v2248 = vshrl.u32 %v2247, 7
        %v2249 = vsub.s32 %v2246, %v2248
        %v2250 = vrot.slane %v2236, %v2249
        %v2251 = vcombine.low %v2243, %v2250
        %v2252 = vcombine.low %v2019, %v2031
        %v2253 = vcombine.low %v2043, %v2055
        %v2255 = vunpack.c.l.s4 1983009808
        %v2256 = vunpack.c.0.s8 %v2255
        %v2257 = vlaneseq
        %v2258 = vshrl.u32 %v2257, 7
        %v2259 = vsub.s32 %v2256, %v2258
        %v2260 = vrot.slane %v2252, %v2259
        %v2262 = vunpack.c.l.s4 1983009808
        %v2263 = vunpack.c.0.s8 %v2262
        %v2264 = vlaneseq
        %v2265 = vshrl.u32 %v2264, 7
        %v2266 = vsub.s32 %v2263, %v2265
        %v2267 = vrot.slane %v2253, %v2266
        %v2268 = vcombine.low %v2260, %v2267
        %v2272 = vld [vmem:[%s1] sm:$0xf]
        %v2273 = vld [vmem:[%s1 + $0x4] sm:$0xf]
        %v2276 = vunpack.c.l.b16 %v2272
        %v2277 = vunpack.c.l.b16 %v2273
        %v2278 = vpack.c.b16 %v2277, %v2276
        %vm2279 = vcmask 392192
        %v2281 = vsel %vm2279, %v2278, 0
        %2283 = vmatprep.subr.bf16.mxu0 0
        %2284 = vmatpush1.bf16.msra.mxu0 0
        %2285 = vmatprep.subr.bf16.mxu0 0
        %2286 = vmatpush1.bf16.msra.mxu0 0
        %2287 = vmatprep.subr.bf16.mxu0 0
        %2288 = vmatpush1.bf16.msra.mxu0 0
        %2289 = vmatprep.subr.bf16.mxu0 0
        %2290 = vmatpush1.bf16.msra.mxu0 0
        %2291 = vmatprep.subr.bf16.mxu0 0
        %2292 = vmatpush1.bf16.msra.mxu0 0
        %2293 = vmatprep.subr.bf16.mxu0 %v2160
        %2294 = vmatpush1.bf16.msra.mxu0 %v2106
        %2295 = vmatprep.subr.bf16.mxu0 %v2143
        %2296 = vmatpush1.bf16.msra.mxu0 %v2089
        %2297 = vmatprep.subr.bf16.mxu0 %v2126
        %2298 = vmatpush1.bf16.msra.mxu0 %v2072
        %2299 = vmatprep.subr.bf16.mxu0 0
        %2300 = vmatpush2.bf16.msra.mxu0 0
        %2301 = vmatprep.subr.bf16.mxu0 0
        %2302 = vmatpush2.bf16.msra.mxu0 0
        %2303 = vmatprep.subr.bf16.mxu0 0
        %2304 = vmatpush2.bf16.msra.mxu0 0
        %2305 = vmatprep.subr.bf16.mxu0 0
        %2306 = vmatpush2.bf16.msra.mxu0 0
        %2307 = vmatprep.subr.bf16.mxu0 0
        %2308 = vmatpush2.bf16.msra.mxu0 0
        %2309 = vmatprep.subr.bf16.mxu0 0
        %2310 = vmatpush2.bf16.msra.mxu0 0
        %2311 = vmatprep.subr.bf16.mxu0 0
        %2312 = vmatpush2.bf16.msra.mxu0 0
        %2313 = vmatprep.subr.bf16.mxu0 0
        %2314 = vmatpush2.bf16.msra.mxu0 0
        %2315 = vmatprep.mubr.bf16.mxu0 0
        %2316 = vmatmul.mubr.bf16.gmra.mxu0 %v2281
        %v2317 = vpop.f32.mrf.mxu0
        %v2318 = vadd.f32 0.0, %v2317
        %v2319 = vpop.f32.mrf.mxu0
        %v2320 = vadd.f32 0.0, %v2319
        %v2321 = vpop.f32.mrf.mxu0
        %v2322 = vadd.f32 0.0, %v2321
        %v2323 = vpop.f32.mrf.mxu0
        %v2324 = vadd.f32 0.0, %v2323
        %2325 = vdwg.mxu0
        %2326 = vmatprep.subr.bf16.mxu0 0
        %2327 = vmatpush1.bf16.msra.mxu0 0
        %2328 = vmatprep.subr.bf16.mxu0 0
        %2329 = vmatpush1.bf16.msra.mxu0 0
        %2330 = vmatprep.subr.bf16.mxu0 0
        %2331 = vmatpush1.bf16.msra.mxu0 0
        %2332 = vmatprep.subr.bf16.mxu0 0
        %2333 = vmatpush1.bf16.msra.mxu0 0
        %2334 = vmatprep.subr.bf16.mxu0 0
        %2335 = vmatpush1.bf16.msra.mxu0 0
        %2336 = vmatprep.subr.bf16.mxu0 %v2268
        %2337 = vmatpush1.bf16.msra.mxu0 %v2214
        %2338 = vmatprep.subr.bf16.mxu0 %v2251
        %2339 = vmatpush1.bf16.msra.mxu0 %v2197
        %2340 = vmatprep.subr.bf16.mxu0 %v2234
        %2341 = vmatpush1.bf16.msra.mxu0 %v2180
        %2342 = vmatprep.subr.bf16.mxu0 0
        %2343 = vmatpush2.bf16.msra.mxu0 0
        %2344 = vmatprep.subr.bf16.mxu0 0
        %2345 = vmatpush2.bf16.msra.mxu0 0
        %2346 = vmatprep.subr.bf16.mxu0 0
        %2347 = vmatpush2.bf16.msra.mxu0 0
        %2348 = vmatprep.subr.bf16.mxu0 0
        %2349 = vmatpush2.bf16.msra.mxu0 0
        %2350 = vmatprep.subr.bf16.mxu0 0
        %2351 = vmatpush2.bf16.msra.mxu0 0
        %2352 = vmatprep.subr.bf16.mxu0 0
        %2353 = vmatpush2.bf16.msra.mxu0 0
        %2354 = vmatprep.subr.bf16.mxu0 0
        %2355 = vmatpush2.bf16.msra.mxu0 0
        %2356 = vmatprep.subr.bf16.mxu0 0
        %2357 = vmatpush2.bf16.msra.mxu0 0
        %2358 = vmatprep.mubr.bf16.mxu0 0
        %2359 = vmatmul.mubr.bf16.gmra.mxu0 %v2281
        %v2360 = vpop.f32.mrf.mxu0
        %v2361 = vadd.f32 0.0, %v2360
        %v2362 = vpop.f32.mrf.mxu0
        %v2363 = vadd.f32 0.0, %v2362
        %v2364 = vpop.f32.mrf.mxu0
        %v2365 = vadd.f32 0.0, %v2364
        %v2366 = vpop.f32.mrf.mxu0
        %v2367 = vadd.f32 0.0, %v2366
        %2368 = vdwg.mxu0
        %v2369 = vcombine.low %v2318, %v2361
        %v2370 = vcombine.high %v2318, %v2361
        %v2372 = vunpack.c.l.s4 1983009808
        %v2373 = vunpack.c.0.s8 %v2372
        %v2374 = vlaneseq
        %v2375 = vshrl.u32 %v2374, 7
        %v2376 = vsub.s32 %v2373, %v2375
        %v2377 = vrot.slane %v2369, %v2376
        %v2379 = vunpack.c.l.s4 1983009808
        %v2380 = vunpack.c.0.s8 %v2379
        %v2381 = vlaneseq
        %v2382 = vshrl.u32 %v2381, 7
        %v2383 = vsub.s32 %v2380, %v2382
        %v2384 = vrot.slane %v2370, %v2383
        %v2385 = vcombine.low %v2320, %v2363
        %v2386 = vcombine.high %v2320, %v2363
        %v2388 = vunpack.c.l.s4 1983009808
        %v2389 = vunpack.c.0.s8 %v2388
        %v2390 = vlaneseq
        %v2391 = vshrl.u32 %v2390, 7
        %v2392 = vsub.s32 %v2389, %v2391
        %v2393 = vrot.slane %v2385, %v2392
        %v2395 = vunpack.c.l.s4 1983009808
        %v2396 = vunpack.c.0.s8 %v2395
        %v2397 = vlaneseq
        %v2398 = vshrl.u32 %v2397, 7
        %v2399 = vsub.s32 %v2396, %v2398
        %v2400 = vrot.slane %v2386, %v2399
        %v2401 = vcombine.low %v2377, %v2393
        %v2402 = vcombine.high %v2377, %v2393
        %v2404 = vunpack.c.l.s4 1934713408
        %v2405 = vunpack.c.0.s8 %v2404
        %v2406 = vlaneseq
        %v2407 = vshrl.u32 %v2406, 7
        %v2408 = vsub.s32 %v2405, %v2407
        %v2409 = vrot.slane %v2401, %v2408
        %v2411 = vunpack.c.l.s4 1934713408
        %v2412 = vunpack.c.0.s8 %v2411
        %v2413 = vlaneseq
        %v2414 = vshrl.u32 %v2413, 7
        %v2415 = vsub.s32 %v2412, %v2414
        %v2416 = vrot.slane %v2402, %v2415
        %v2417 = vcombine.low %v2384, %v2400
        %v2418 = vcombine.high %v2384, %v2400
        %v2420 = vunpack.c.l.s4 1934713408
        %v2421 = vunpack.c.0.s8 %v2420
        %v2422 = vlaneseq
        %v2423 = vshrl.u32 %v2422, 7
        %v2424 = vsub.s32 %v2421, %v2423
        %v2425 = vrot.slane %v2417, %v2424
        %v2427 = vunpack.c.l.s4 1934713408
        %v2428 = vunpack.c.0.s8 %v2427
        %v2429 = vlaneseq
        %v2430 = vshrl.u32 %v2429, 7
        %v2431 = vsub.s32 %v2428, %v2430
        %v2432 = vrot.slane %v2418, %v2431
        %v2433 = vcombine.high %v2409, 0.0
        %v2434 = vcombine.high %v2416, 0.0
        %v2435 = vcombine.high %v2425, 0.0
        %v2436 = vcombine.high %v2432, 0.0
        %v2437 = vcombine.low %v2322, %v2365
        %v2438 = vcombine.high %v2322, %v2365
        %v2440 = vunpack.c.l.s4 1983009808
        %v2441 = vunpack.c.0.s8 %v2440
        %v2442 = vlaneseq
        %v2443 = vshrl.u32 %v2442, 7
        %v2444 = vsub.s32 %v2441, %v2443
        %v2445 = vrot.slane %v2437, %v2444
        %v2447 = vunpack.c.l.s4 1983009808
        %v2448 = vunpack.c.0.s8 %v2447
        %v2449 = vlaneseq
        %v2450 = vshrl.u32 %v2449, 7
        %v2451 = vsub.s32 %v2448, %v2450
        %v2452 = vrot.slane %v2438, %v2451
        %v2453 = vcombine.low %v2324, %v2367
        %v2454 = vcombine.high %v2324, %v2367
        %v2456 = vunpack.c.l.s4 1983009808
        %v2457 = vunpack.c.0.s8 %v2456
        %v2458 = vlaneseq
        %v2459 = vshrl.u32 %v2458, 7
        %v2460 = vsub.s32 %v2457, %v2459
        %v2461 = vrot.slane %v2453, %v2460
        %v2463 = vunpack.c.l.s4 1983009808
        %v2464 = vunpack.c.0.s8 %v2463
        %v2465 = vlaneseq
        %v2466 = vshrl.u32 %v2465, 7
        %v2467 = vsub.s32 %v2464, %v2466
        %v2468 = vrot.slane %v2454, %v2467
        %v2469 = vcombine.low %v2445, %v2461
        %v2470 = vcombine.high %v2445, %v2461
        %v2472 = vunpack.c.l.s4 1934713408
        %v2473 = vunpack.c.0.s8 %v2472
        %v2474 = vlaneseq
        %v2475 = vshrl.u32 %v2474, 7
        %v2476 = vsub.s32 %v2473, %v2475
        %v2477 = vrot.slane %v2469, %v2476
        %v2479 = vunpack.c.l.s4 1934713408
        %v2480 = vunpack.c.0.s8 %v2479
        %v2481 = vlaneseq
        %v2482 = vshrl.u32 %v2481, 7
        %v2483 = vsub.s32 %v2480, %v2482
        %v2484 = vrot.slane %v2470, %v2483
        %v2485 = vcombine.low %v2452, %v2468
        %v2486 = vcombine.high %v2452, %v2468
        %v2488 = vunpack.c.l.s4 1934713408
        %v2489 = vunpack.c.0.s8 %v2488
        %v2490 = vlaneseq
        %v2491 = vshrl.u32 %v2490, 7
        %v2492 = vsub.s32 %v2489, %v2491
        %v2493 = vrot.slane %v2485, %v2492
        %v2495 = vunpack.c.l.s4 1934713408
        %v2496 = vunpack.c.0.s8 %v2495
        %v2497 = vlaneseq
        %v2498 = vshrl.u32 %v2497, 7
        %v2499 = vsub.s32 %v2496, %v2498
        %v2500 = vrot.slane %v2486, %v2499
        %v2501 = vcombine.high %v2477, 0.0
        %v2502 = vcombine.high %v2484, 0.0
        %v2503 = vcombine.high %v2493, 0.0
        %v2504 = vcombine.high %v2500, 0.0
        %v2505 = vld [vmem:[%s5] sm:$0xff]
        %v2506 = vld [vmem:[%s5 + $0x8] sm:$0xff]
        %v2507 = vlaneseq
        %v2508 = vshrl.u32 %v2507, 7
        %v2509 = vsub.s32 0, %v2508
        %v2510 = vrot.slane %v2505, %v2509
        %2512 = vbcast.lane.b32.xlu0 %v2510, 256
        %v2513 = vpop.permute.xlu0 %2512
        %v2514 = vlaneseq
        %v2515 = vshrl.u32 %v2514, 7
        %v2516 = vsub.s32 1, %v2515
        %v2517 = vrot.slane %v2505, %v2516
        %2519 = vbcast.lane.b32.xlu0 %v2517, 256
        %v2520 = vpop.permute.xlu0 %2519
        %v2521 = vlaneseq
        %v2522 = vshrl.u32 %v2521, 7
        %v2523 = vsub.s32 2, %v2522
        %v2524 = vrot.slane %v2505, %v2523
        %2526 = vbcast.lane.b32.xlu0 %v2524, 256
        %v2527 = vpop.permute.xlu0 %2526
        %v2528 = vlaneseq
        %v2529 = vshrl.u32 %v2528, 7
        %v2530 = vsub.s32 3, %v2529
        %v2531 = vrot.slane %v2505, %v2530
        %2533 = vbcast.lane.b32.xlu0 %v2531, 256
        %v2534 = vpop.permute.xlu0 %2533
        %v2535 = vlaneseq
        %v2536 = vshrl.u32 %v2535, 7
        %v2537 = vsub.s32 4, %v2536
        %v2538 = vrot.slane %v2505, %v2537
        %2540 = vbcast.lane.b32.xlu0 %v2538, 256
        %v2541 = vpop.permute.xlu0 %2540
        %v2542 = vlaneseq
        %v2543 = vshrl.u32 %v2542, 7
        %v2544 = vsub.s32 5, %v2543
        %v2545 = vrot.slane %v2505, %v2544
        %2547 = vbcast.lane.b32.xlu0 %v2545, 256
        %v2548 = vpop.permute.xlu0 %2547
        %v2549 = vlaneseq
        %v2550 = vshrl.u32 %v2549, 7
        %v2551 = vsub.s32 6, %v2550
        %v2552 = vrot.slane %v2505, %v2551
        %2554 = vbcast.lane.b32.xlu0 %v2552, 256
        %v2555 = vpop.permute.xlu0 %2554
        %v2556 = vlaneseq
        %v2557 = vshrl.u32 %v2556, 7
        %v2558 = vsub.s32 7, %v2557
        %v2559 = vrot.slane %v2505, %v2558
        %2561 = vbcast.lane.b32.xlu0 %v2559, 256
        %v2562 = vpop.permute.xlu0 %2561
        %v2563 = vlaneseq
        %v2564 = vshrl.u32 %v2563, 7
        %v2565 = vsub.s32 0, %v2564
        %v2566 = vrot.slane %v2506, %v2565
        %2568 = vbcast.lane.b32.xlu0 %v2566, 256
        %v2569 = vpop.permute.xlu0 %2568
        %v2570 = vlaneseq
        %v2571 = vshrl.u32 %v2570, 7
        %v2572 = vsub.s32 1, %v2571
        %v2573 = vrot.slane %v2506, %v2572
        %2575 = vbcast.lane.b32.xlu0 %v2573, 256
        %v2576 = vpop.permute.xlu0 %2575
        %v2577 = vlaneseq
        %v2578 = vshrl.u32 %v2577, 7
        %v2579 = vsub.s32 2, %v2578
        %v2580 = vrot.slane %v2506, %v2579
        %2582 = vbcast.lane.b32.xlu0 %v2580, 256
        %v2583 = vpop.permute.xlu0 %2582
        %v2584 = vlaneseq
        %v2585 = vshrl.u32 %v2584, 7
        %v2586 = vsub.s32 3, %v2585
        %v2587 = vrot.slane %v2506, %v2586
        %2589 = vbcast.lane.b32.xlu0 %v2587, 256
        %v2590 = vpop.permute.xlu0 %2589
        %v2591 = vlaneseq
        %v2592 = vshrl.u32 %v2591, 7
        %v2593 = vsub.s32 4, %v2592
        %v2594 = vrot.slane %v2506, %v2593
        %2596 = vbcast.lane.b32.xlu0 %v2594, 256
        %v2597 = vpop.permute.xlu0 %2596
        %v2598 = vlaneseq
        %v2599 = vshrl.u32 %v2598, 7
        %v2600 = vsub.s32 5, %v2599
        %v2601 = vrot.slane %v2506, %v2600
        %2603 = vbcast.lane.b32.xlu0 %v2601, 256
        %v2604 = vpop.permute.xlu0 %2603
        %v2605 = vlaneseq
        %v2606 = vshrl.u32 %v2605, 7
        %v2607 = vsub.s32 6, %v2606
        %v2608 = vrot.slane %v2506, %v2607
        %2610 = vbcast.lane.b32.xlu0 %v2608, 256
        %v2611 = vpop.permute.xlu0 %2610
        %v2612 = vlaneseq
        %v2613 = vshrl.u32 %v2612, 7
        %v2614 = vsub.s32 7, %v2613
        %v2615 = vrot.slane %v2506, %v2614
        %2617 = vbcast.lane.b32.xlu0 %v2615, 256
        %v2618 = vpop.permute.xlu0 %2617
        %v2619 = vadd.f32 %v2409, %v2513
        %v2620 = vadd.f32 %v2433, %v2520
        %v2621 = vadd.f32 %v2416, %v2527
        %v2622 = vadd.f32 %v2434, %v2534
        %v2623 = vadd.f32 %v2425, %v2541
        %v2624 = vadd.f32 %v2435, %v2548
        %v2625 = vadd.f32 %v2432, %v2555
        %v2626 = vadd.f32 %v2436, %v2562
        %v2627 = vadd.f32 %v2477, %v2569
        %v2628 = vadd.f32 %v2501, %v2576
        %v2629 = vadd.f32 %v2484, %v2583
        %v2630 = vadd.f32 %v2502, %v2590
        %v2631 = vadd.f32 %v2493, %v2597
        %v2632 = vadd.f32 %v2503, %v2604
        %v2633 = vadd.f32 %v2500, %v2611
        %v2634 = vadd.f32 %v2504, %v2618
        %v2635 = vmax.f32 %v2619, 0.0
        %v2636 = vmax.f32 %v2620, 0.0
        %v2637 = vmax.f32 %v2621, 0.0
        %v2638 = vmax.f32 %v2622, 0.0
        %v2639 = vmax.f32 %v2623, 0.0
        %v2640 = vmax.f32 %v2624, 0.0
        %v2641 = vmax.f32 %v2625, 0.0
        %v2642 = vmax.f32 %v2626, 0.0
        %v2643 = vmax.f32 %v2627, 0.0
        %v2644 = vmax.f32 %v2628, 0.0
        %v2645 = vmax.f32 %v2629, 0.0
        %v2646 = vmax.f32 %v2630, 0.0
        %v2647 = vmax.f32 %v2631, 0.0
        %v2648 = vmax.f32 %v2632, 0.0
        %v2649 = vmax.f32 %v2633, 0.0
        %v2650 = vmax.f32 %v2634, 0.0
        %v2653 = vunpack.c.l.s4 1966171168
        %v2654 = vunpack.c.0.s8 %v2653
        %v2655 = vlaneseq
        %v2656 = vshrl.u32 %v2655, 7
        %v2657 = vsub.s32 %v2654, %v2656
        %v2658 = vrot.slane %v2635, %v2657
        %v2659 = vcombine.high %v2658, %v2658
        %v2661 = vunpack.c.l.s4 1966171168
        %v2662 = vunpack.c.0.s8 %v2661
        %v2663 = vlaneseq
        %v2664 = vshrl.u32 %v2663, 7
        %v2665 = vsub.s32 %v2662, %v2664
        %v2666 = vrot.slane %v2658, %v2665
        %v2668 = vunpack.c.l.s4 1966171168
        %v2669 = vunpack.c.0.s8 %v2668
        %v2670 = vlaneseq
        %v2671 = vshrl.u32 %v2670, 7
        %v2672 = vsub.s32 %v2669, %v2671
        %v2673 = vrot.slane %v2659, %v2672
        %v2674 = vcombine.high %v2666, %v2666
        %v2675 = vcombine.high %v2673, %v2673
        %2680 = vst [vmem:[#allocation3] sm:$0x1] %v2666
        %2681 = vst [vmem:[#allocation3 + $0x10] sm:$0x1] %v2673
        %2682 = vst [vmem:[#allocation3 + $0x20] sm:$0x1] %v2674
        %2683 = vst [vmem:[#allocation3 + $0x30] sm:$0x1] %v2675
        %v2686 = vunpack.c.l.s4 1966171168
        %v2687 = vunpack.c.0.s8 %v2686
        %v2688 = vlaneseq
        %v2689 = vshrl.u32 %v2688, 7
        %v2690 = vsub.s32 %v2687, %v2689
        %v2691 = vrot.slane %v2636, %v2690
        %v2692 = vcombine.high %v2691, %v2691
        %v2694 = vunpack.c.l.s4 1966171168
        %v2695 = vunpack.c.0.s8 %v2694
        %v2696 = vlaneseq
        %v2697 = vshrl.u32 %v2696, 7
        %v2698 = vsub.s32 %v2695, %v2697
        %v2699 = vrot.slane %v2691, %v2698
        %v2701 = vunpack.c.l.s4 1966171168
        %v2702 = vunpack.c.0.s8 %v2701
        %v2703 = vlaneseq
        %v2704 = vshrl.u32 %v2703, 7
        %v2705 = vsub.s32 %v2702, %v2704
        %v2706 = vrot.slane %v2692, %v2705
        %v2707 = vcombine.high %v2699, %v2699
        %v2708 = vcombine.high %v2706, %v2706
        %2713 = vst [vmem:[#allocation3 + $0x1] sm:$0x1] %v2699
        %2714 = vst [vmem:[#allocation3 + $0x11] sm:$0x1] %v2706
        %2715 = vst [vmem:[#allocation3 + $0x21] sm:$0x1] %v2707
        %2716 = vst [vmem:[#allocation3 + $0x31] sm:$0x1] %v2708
        %v2719 = vunpack.c.l.s4 1966171168
        %v2720 = vunpack.c.0.s8 %v2719
        %v2721 = vlaneseq
        %v2722 = vshrl.u32 %v2721, 7
        %v2723 = vsub.s32 %v2720, %v2722
        %v2724 = vrot.slane %v2637, %v2723
        %v2725 = vcombine.high %v2724, %v2724
        %v2727 = vunpack.c.l.s4 1966171168
        %v2728 = vunpack.c.0.s8 %v2727
        %v2729 = vlaneseq
        %v2730 = vshrl.u32 %v2729, 7
        %v2731 = vsub.s32 %v2728, %v2730
        %v2732 = vrot.slane %v2724, %v2731
        %v2734 = vunpack.c.l.s4 1966171168
        %v2735 = vunpack.c.0.s8 %v2734
        %v2736 = vlaneseq
        %v2737 = vshrl.u32 %v2736, 7
        %v2738 = vsub.s32 %v2735, %v2737
        %v2739 = vrot.slane %v2725, %v2738
        %v2740 = vcombine.high %v2732, %v2732
        %v2741 = vcombine.high %v2739, %v2739
        %2746 = vst [vmem:[#allocation3 + $0x2] sm:$0x1] %v2732
        %2747 = vst [vmem:[#allocation3 + $0x12] sm:$0x1] %v2739
        %2748 = vst [vmem:[#allocation3 + $0x22] sm:$0x1] %v2740
        %2749 = vst [vmem:[#allocation3 + $0x32] sm:$0x1] %v2741
        %v2752 = vunpack.c.l.s4 1966171168
        %v2753 = vunpack.c.0.s8 %v2752
        %v2754 = vlaneseq
        %v2755 = vshrl.u32 %v2754, 7
        %v2756 = vsub.s32 %v2753, %v2755
        %v2757 = vrot.slane %v2638, %v2756
        %v2758 = vcombine.high %v2757, %v2757
        %v2760 = vunpack.c.l.s4 1966171168
        %v2761 = vunpack.c.0.s8 %v2760
        %v2762 = vlaneseq
        %v2763 = vshrl.u32 %v2762, 7
        %v2764 = vsub.s32 %v2761, %v2763
        %v2765 = vrot.slane %v2757, %v2764
        %v2767 = vunpack.c.l.s4 1966171168
        %v2768 = vunpack.c.0.s8 %v2767
        %v2769 = vlaneseq
        %v2770 = vshrl.u32 %v2769, 7
        %v2771 = vsub.s32 %v2768, %v2770
        %v2772 = vrot.slane %v2758, %v2771
        %v2773 = vcombine.high %v2765, %v2765
        %v2774 = vcombine.high %v2772, %v2772
        %2779 = vst [vmem:[#allocation3 + $0x3] sm:$0x1] %v2765
        %2780 = vst [vmem:[#allocation3 + $0x13] sm:$0x1] %v2772
        %2781 = vst [vmem:[#allocation3 + $0x23] sm:$0x1] %v2773
        %2782 = vst [vmem:[#allocation3 + $0x33] sm:$0x1] %v2774
        %v2785 = vunpack.c.l.s4 1966171168
        %v2786 = vunpack.c.0.s8 %v2785
        %v2787 = vlaneseq
        %v2788 = vshrl.u32 %v2787, 7
        %v2789 = vsub.s32 %v2786, %v2788
        %v2790 = vrot.slane %v2639, %v2789
        %v2791 = vcombine.high %v2790, %v2790
        %v2793 = vunpack.c.l.s4 1966171168
        %v2794 = vunpack.c.0.s8 %v2793
        %v2795 = vlaneseq
        %v2796 = vshrl.u32 %v2795, 7
        %v2797 = vsub.s32 %v2794, %v2796
        %v2798 = vrot.slane %v2790, %v2797
        %v2800 = vunpack.c.l.s4 1966171168
        %v2801 = vunpack.c.0.s8 %v2800
        %v2802 = vlaneseq
        %v2803 = vshrl.u32 %v2802, 7
        %v2804 = vsub.s32 %v2801, %v2803
        %v2805 = vrot.slane %v2791, %v2804
        %v2806 = vcombine.high %v2798, %v2798
        %v2807 = vcombine.high %v2805, %v2805
        %2812 = vst [vmem:[#allocation3 + $0x4] sm:$0x1] %v2798
        %2813 = vst [vmem:[#allocation3 + $0x14] sm:$0x1] %v2805
        %2814 = vst [vmem:[#allocation3 + $0x24] sm:$0x1] %v2806
        %2815 = vst [vmem:[#allocation3 + $0x34] sm:$0x1] %v2807
        %v2818 = vunpack.c.l.s4 1966171168
        %v2819 = vunpack.c.0.s8 %v2818
        %v2820 = vlaneseq
        %v2821 = vshrl.u32 %v2820, 7
        %v2822 = vsub.s32 %v2819, %v2821
        %v2823 = vrot.slane %v2640, %v2822
        %v2824 = vcombine.high %v2823, %v2823
        %v2826 = vunpack.c.l.s4 1966171168
        %v2827 = vunpack.c.0.s8 %v2826
        %v2828 = vlaneseq
        %v2829 = vshrl.u32 %v2828, 7
        %v2830 = vsub.s32 %v2827, %v2829
        %v2831 = vrot.slane %v2823, %v2830
        %v2833 = vunpack.c.l.s4 1966171168
        %v2834 = vunpack.c.0.s8 %v2833
        %v2835 = vlaneseq
        %v2836 = vshrl.u32 %v2835, 7
        %v2837 = vsub.s32 %v2834, %v2836
        %v2838 = vrot.slane %v2824, %v2837
        %v2839 = vcombine.high %v2831, %v2831
        %v2840 = vcombine.high %v2838, %v2838
        %2845 = vst [vmem:[#allocation3 + $0x5] sm:$0x1] %v2831
        %2846 = vst [vmem:[#allocation3 + $0x15] sm:$0x1] %v2838
        %2847 = vst [vmem:[#allocation3 + $0x25] sm:$0x1] %v2839
        %2848 = vst [vmem:[#allocation3 + $0x35] sm:$0x1] %v2840
        %v2851 = vunpack.c.l.s4 1966171168
        %v2852 = vunpack.c.0.s8 %v2851
        %v2853 = vlaneseq
        %v2854 = vshrl.u32 %v2853, 7
        %v2855 = vsub.s32 %v2852, %v2854
        %v2856 = vrot.slane %v2641, %v2855
        %v2857 = vcombine.high %v2856, %v2856
        %v2859 = vunpack.c.l.s4 1966171168
        %v2860 = vunpack.c.0.s8 %v2859
        %v2861 = vlaneseq
        %v2862 = vshrl.u32 %v2861, 7
        %v2863 = vsub.s32 %v2860, %v2862
        %v2864 = vrot.slane %v2856, %v2863
        %v2866 = vunpack.c.l.s4 1966171168
        %v2867 = vunpack.c.0.s8 %v2866
        %v2868 = vlaneseq
        %v2869 = vshrl.u32 %v2868, 7
        %v2870 = vsub.s32 %v2867, %v2869
        %v2871 = vrot.slane %v2857, %v2870
        %v2872 = vcombine.high %v2864, %v2864
        %v2873 = vcombine.high %v2871, %v2871
        %2878 = vst [vmem:[#allocation3 + $0x6] sm:$0x1] %v2864
        %2879 = vst [vmem:[#allocation3 + $0x16] sm:$0x1] %v2871
        %2880 = vst [vmem:[#allocation3 + $0x26] sm:$0x1] %v2872
        %2881 = vst [vmem:[#allocation3 + $0x36] sm:$0x1] %v2873
        %v2884 = vunpack.c.l.s4 1966171168
        %v2885 = vunpack.c.0.s8 %v2884
        %v2886 = vlaneseq
        %v2887 = vshrl.u32 %v2886, 7
        %v2888 = vsub.s32 %v2885, %v2887
        %v2889 = vrot.slane %v2642, %v2888
        %v2890 = vcombine.high %v2889, %v2889
        %v2892 = vunpack.c.l.s4 1966171168
        %v2893 = vunpack.c.0.s8 %v2892
        %v2894 = vlaneseq
        %v2895 = vshrl.u32 %v2894, 7
        %v2896 = vsub.s32 %v2893, %v2895
        %v2897 = vrot.slane %v2889, %v2896
        %v2899 = vunpack.c.l.s4 1966171168
        %v2900 = vunpack.c.0.s8 %v2899
        %v2901 = vlaneseq
        %v2902 = vshrl.u32 %v2901, 7
        %v2903 = vsub.s32 %v2900, %v2902
        %v2904 = vrot.slane %v2890, %v2903
        %v2905 = vcombine.high %v2897, %v2897
        %v2906 = vcombine.high %v2904, %v2904
        %2911 = vst [vmem:[#allocation3 + $0x7] sm:$0x1] %v2897
        %2912 = vst [vmem:[#allocation3 + $0x17] sm:$0x1] %v2904
        %2913 = vst [vmem:[#allocation3 + $0x27] sm:$0x1] %v2905
        %2914 = vst [vmem:[#allocation3 + $0x37] sm:$0x1] %v2906
        %v2917 = vunpack.c.l.s4 1966171168
        %v2918 = vunpack.c.0.s8 %v2917
        %v2919 = vlaneseq
        %v2920 = vshrl.u32 %v2919, 7
        %v2921 = vsub.s32 %v2918, %v2920
        %v2922 = vrot.slane %v2643, %v2921
        %v2923 = vcombine.high %v2922, %v2922
        %v2925 = vunpack.c.l.s4 1966171168
        %v2926 = vunpack.c.0.s8 %v2925
        %v2927 = vlaneseq
        %v2928 = vshrl.u32 %v2927, 7
        %v2929 = vsub.s32 %v2926, %v2928
        %v2930 = vrot.slane %v2922, %v2929
        %v2932 = vunpack.c.l.s4 1966171168
        %v2933 = vunpack.c.0.s8 %v2932
        %v2934 = vlaneseq
        %v2935 = vshrl.u32 %v2934, 7
        %v2936 = vsub.s32 %v2933, %v2935
        %v2937 = vrot.slane %v2923, %v2936
        %v2938 = vcombine.high %v2930, %v2930
        %v2939 = vcombine.high %v2937, %v2937
        %2944 = vst [vmem:[#allocation3 + $0x8] sm:$0x1] %v2930
        %2945 = vst [vmem:[#allocation3 + $0x18] sm:$0x1] %v2937
        %2946 = vst [vmem:[#allocation3 + $0x28] sm:$0x1] %v2938
        %2947 = vst [vmem:[#allocation3 + $0x38] sm:$0x1] %v2939
        %v2950 = vunpack.c.l.s4 1966171168
        %v2951 = vunpack.c.0.s8 %v2950
        %v2952 = vlaneseq
        %v2953 = vshrl.u32 %v2952, 7
        %v2954 = vsub.s32 %v2951, %v2953
        %v2955 = vrot.slane %v2644, %v2954
        %v2956 = vcombine.high %v2955, %v2955
        %v2958 = vunpack.c.l.s4 1966171168
        %v2959 = vunpack.c.0.s8 %v2958
        %v2960 = vlaneseq
        %v2961 = vshrl.u32 %v2960, 7
        %v2962 = vsub.s32 %v2959, %v2961
        %v2963 = vrot.slane %v2955, %v2962
        %v2965 = vunpack.c.l.s4 1966171168
        %v2966 = vunpack.c.0.s8 %v2965
        %v2967 = vlaneseq
        %v2968 = vshrl.u32 %v2967, 7
        %v2969 = vsub.s32 %v2966, %v2968
        %v2970 = vrot.slane %v2956, %v2969
        %v2971 = vcombine.high %v2963, %v2963
        %v2972 = vcombine.high %v2970, %v2970
        %2977 = vst [vmem:[#allocation3 + $0x9] sm:$0x1] %v2963
        %2978 = vst [vmem:[#allocation3 + $0x19] sm:$0x1] %v2970
        %2979 = vst [vmem:[#allocation3 + $0x29] sm:$0x1] %v2971
        %2980 = vst [vmem:[#allocation3 + $0x39] sm:$0x1] %v2972
        %v2983 = vunpack.c.l.s4 1966171168
        %v2984 = vunpack.c.0.s8 %v2983
        %v2985 = vlaneseq
        %v2986 = vshrl.u32 %v2985, 7
        %v2987 = vsub.s32 %v2984, %v2986
        %v2988 = vrot.slane %v2645, %v2987
        %v2989 = vcombine.high %v2988, %v2988
        %v2991 = vunpack.c.l.s4 1966171168
        %v2992 = vunpack.c.0.s8 %v2991
        %v2993 = vlaneseq
        %v2994 = vshrl.u32 %v2993, 7
        %v2995 = vsub.s32 %v2992, %v2994
        %v2996 = vrot.slane %v2988, %v2995
        %v2998 = vunpack.c.l.s4 1966171168
        %v2999 = vunpack.c.0.s8 %v2998
        %v3000 = vlaneseq
        %v3001 = vshrl.u32 %v3000, 7
        %v3002 = vsub.s32 %v2999, %v3001
        %v3003 = vrot.slane %v2989, %v3002
        %v3004 = vcombine.high %v2996, %v2996
        %v3005 = vcombine.high %v3003, %v3003
        %3010 = vst [vmem:[#allocation3 + $0xa] sm:$0x1] %v2996
        %3011 = vst [vmem:[#allocation3 + $0x1a] sm:$0x1] %v3003
        %3012 = vst [vmem:[#allocation3 + $0x2a] sm:$0x1] %v3004
        %3013 = vst [vmem:[#allocation3 + $0x3a] sm:$0x1] %v3005
        %v3016 = vunpack.c.l.s4 1966171168
        %v3017 = vunpack.c.0.s8 %v3016
        %v3018 = vlaneseq
        %v3019 = vshrl.u32 %v3018, 7
        %v3020 = vsub.s32 %v3017, %v3019
        %v3021 = vrot.slane %v2646, %v3020
        %v3022 = vcombine.high %v3021, %v3021
        %v3024 = vunpack.c.l.s4 1966171168
        %v3025 = vunpack.c.0.s8 %v3024
        %v3026 = vlaneseq
        %v3027 = vshrl.u32 %v3026, 7
        %v3028 = vsub.s32 %v3025, %v3027
        %v3029 = vrot.slane %v3021, %v3028
        %v3031 = vunpack.c.l.s4 1966171168
        %v3032 = vunpack.c.0.s8 %v3031
        %v3033 = vlaneseq
        %v3034 = vshrl.u32 %v3033, 7
        %v3035 = vsub.s32 %v3032, %v3034
        %v3036 = vrot.slane %v3022, %v3035
        %v3037 = vcombine.high %v3029, %v3029
        %v3038 = vcombine.high %v3036, %v3036
        %3043 = vst [vmem:[#allocation3 + $0xb] sm:$0x1] %v3029
        %3044 = vst [vmem:[#allocation3 + $0x1b] sm:$0x1] %v3036
        %3045 = vst [vmem:[#allocation3 + $0x2b] sm:$0x1] %v3037
        %3046 = vst [vmem:[#allocation3 + $0x3b] sm:$0x1] %v3038
        %v3049 = vunpack.c.l.s4 1966171168
        %v3050 = vunpack.c.0.s8 %v3049
        %v3051 = vlaneseq
        %v3052 = vshrl.u32 %v3051, 7
        %v3053 = vsub.s32 %v3050, %v3052
        %v3054 = vrot.slane %v2647, %v3053
        %v3055 = vcombine.high %v3054, %v3054
        %v3057 = vunpack.c.l.s4 1966171168
        %v3058 = vunpack.c.0.s8 %v3057
        %v3059 = vlaneseq
        %v3060 = vshrl.u32 %v3059, 7
        %v3061 = vsub.s32 %v3058, %v3060
        %v3062 = vrot.slane %v3054, %v3061
        %v3064 = vunpack.c.l.s4 1966171168
        %v3065 = vunpack.c.0.s8 %v3064
        %v3066 = vlaneseq
        %v3067 = vshrl.u32 %v3066, 7
        %v3068 = vsub.s32 %v3065, %v3067
        %v3069 = vrot.slane %v3055, %v3068
        %v3070 = vcombine.high %v3062, %v3062
        %v3071 = vcombine.high %v3069, %v3069
        %3076 = vst [vmem:[#allocation3 + $0xc] sm:$0x1] %v3062
        %3077 = vst [vmem:[#allocation3 + $0x1c] sm:$0x1] %v3069
        %3078 = vst [vmem:[#allocation3 + $0x2c] sm:$0x1] %v3070
        %3079 = vst [vmem:[#allocation3 + $0x3c] sm:$0x1] %v3071
        %v3082 = vunpack.c.l.s4 1966171168
        %v3083 = vunpack.c.0.s8 %v3082
        %v3084 = vlaneseq
        %v3085 = vshrl.u32 %v3084, 7
        %v3086 = vsub.s32 %v3083, %v3085
        %v3087 = vrot.slane %v2648, %v3086
        %v3088 = vcombine.high %v3087, %v3087
        %v3090 = vunpack.c.l.s4 1966171168
        %v3091 = vunpack.c.0.s8 %v3090
        %v3092 = vlaneseq
        %v3093 = vshrl.u32 %v3092, 7
        %v3094 = vsub.s32 %v3091, %v3093
        %v3095 = vrot.slane %v3087, %v3094
        %v3097 = vunpack.c.l.s4 1966171168
        %v3098 = vunpack.c.0.s8 %v3097
        %v3099 = vlaneseq
        %v3100 = vshrl.u32 %v3099, 7
        %v3101 = vsub.s32 %v3098, %v3100
        %v3102 = vrot.slane %v3088, %v3101
        %v3103 = vcombine.high %v3095, %v3095
        %v3104 = vcombine.high %v3102, %v3102
        %3109 = vst [vmem:[#allocation3 + $0xd] sm:$0x1] %v3095
        %3110 = vst [vmem:[#allocation3 + $0x1d] sm:$0x1] %v3102
        %3111 = vst [vmem:[#allocation3 + $0x2d] sm:$0x1] %v3103
        %3112 = vst [vmem:[#allocation3 + $0x3d] sm:$0x1] %v3104
        %v3115 = vunpack.c.l.s4 1966171168
        %v3116 = vunpack.c.0.s8 %v3115
        %v3117 = vlaneseq
        %v3118 = vshrl.u32 %v3117, 7
        %v3119 = vsub.s32 %v3116, %v3118
        %v3120 = vrot.slane %v2649, %v3119
        %v3121 = vcombine.high %v3120, %v3120
        %v3123 = vunpack.c.l.s4 1966171168
        %v3124 = vunpack.c.0.s8 %v3123
        %v3125 = vlaneseq
        %v3126 = vshrl.u32 %v3125, 7
        %v3127 = vsub.s32 %v3124, %v3126
        %v3128 = vrot.slane %v3120, %v3127
        %v3130 = vunpack.c.l.s4 1966171168
        %v3131 = vunpack.c.0.s8 %v3130
        %v3132 = vlaneseq
        %v3133 = vshrl.u32 %v3132, 7
        %v3134 = vsub.s32 %v3131, %v3133
        %v3135 = vrot.slane %v3121, %v3134
        %v3136 = vcombine.high %v3128, %v3128
        %v3137 = vcombine.high %v3135, %v3135
        %3142 = vst [vmem:[#allocation3 + $0xe] sm:$0x1] %v3128
        %3143 = vst [vmem:[#allocation3 + $0x1e] sm:$0x1] %v3135
        %3144 = vst [vmem:[#allocation3 + $0x2e] sm:$0x1] %v3136
        %3145 = vst [vmem:[#allocation3 + $0x3e] sm:$0x1] %v3137
        %v3148 = vunpack.c.l.s4 1966171168
        %v3149 = vunpack.c.0.s8 %v3148
        %v3150 = vlaneseq
        %v3151 = vshrl.u32 %v3150, 7
        %v3152 = vsub.s32 %v3149, %v3151
        %v3153 = vrot.slane %v2650, %v3152
        %v3154 = vcombine.high %v3153, %v3153
        %v3156 = vunpack.c.l.s4 1966171168
        %v3157 = vunpack.c.0.s8 %v3156
        %v3158 = vlaneseq
        %v3159 = vshrl.u32 %v3158, 7
        %v3160 = vsub.s32 %v3157, %v3159
        %v3161 = vrot.slane %v3153, %v3160
        %v3163 = vunpack.c.l.s4 1966171168
        %v3164 = vunpack.c.0.s8 %v3163
        %v3165 = vlaneseq
        %v3166 = vshrl.u32 %v3165, 7
        %v3167 = vsub.s32 %v3164, %v3166
        %v3168 = vrot.slane %v3154, %v3167
        %v3169 = vcombine.high %v3161, %v3161
        %v3170 = vcombine.high %v3168, %v3168
        %3175 = vst [vmem:[#allocation3 + $0xf] sm:$0x1] %v3161
        %3176 = vst [vmem:[#allocation3 + $0x1f] sm:$0x1] %v3168
        %3177 = vst [vmem:[#allocation3 + $0x2f] sm:$0x1] %v3169
        %3178 = vst [vmem:[#allocation3 + $0x3f] sm:$0x1] %v3170
        %v3179 = vld [vmem:[#allocation3] sm:$0xff]
        %v3180 = vld [vmem:[#allocation3 + $0x8] sm:$0xff]
        %v3181 = vld [vmem:[#allocation3 + $0x10] sm:$0xff]
        %v3182 = vld [vmem:[#allocation3 + $0x18] sm:$0xff]
        %v3183 = vld [vmem:[#allocation3 + $0x20] sm:$0xff]
        %v3184 = vld [vmem:[#allocation3 + $0x28] sm:$0xff]
        %v3185 = vld [vmem:[#allocation3 + $0x30] sm:$0xff]
        %v3186 = vld [vmem:[#allocation3 + $0x38] sm:$0xff]
        %v3187 = vcombine.low %v3179, %v3183
        %v3188 = vcombine.high %v3179, %v3183
        %v3190 = vunpack.c.l.s4 1983009808
        %v3191 = vunpack.c.0.s8 %v3190
        %v3192 = vlaneseq
        %v3193 = vshrl.u32 %v3192, 7
        %v3194 = vsub.s32 %v3191, %v3193
        %v3195 = vrot.slane %v3187, %v3194
        %v3197 = vunpack.c.l.s4 1983009808
        %v3198 = vunpack.c.0.s8 %v3197
        %v3199 = vlaneseq
        %v3200 = vshrl.u32 %v3199, 7
        %v3201 = vsub.s32 %v3198, %v3200
        %v3202 = vrot.slane %v3188, %v3201
        %v3203 = vcombine.low %v3181, %v3185
        %v3204 = vcombine.high %v3181, %v3185
        %v3206 = vunpack.c.l.s4 1983009808
        %v3207 = vunpack.c.0.s8 %v3206
        %v3208 = vlaneseq
        %v3209 = vshrl.u32 %v3208, 7
        %v3210 = vsub.s32 %v3207, %v3209
        %v3211 = vrot.slane %v3203, %v3210
        %v3213 = vunpack.c.l.s4 1983009808
        %v3214 = vunpack.c.0.s8 %v3213
        %v3215 = vlaneseq
        %v3216 = vshrl.u32 %v3215, 7
        %v3217 = vsub.s32 %v3214, %v3216
        %v3218 = vrot.slane %v3204, %v3217
        %v3219 = vcombine.low %v3195, %v3211
        %v3220 = vcombine.high %v3195, %v3211
        %v3222 = vunpack.c.l.s4 1934713408
        %v3223 = vunpack.c.0.s8 %v3222
        %v3224 = vlaneseq
        %v3225 = vshrl.u32 %v3224, 7
        %v3226 = vsub.s32 %v3223, %v3225
        %v3227 = vrot.slane %v3219, %v3226
        %v3229 = vunpack.c.l.s4 1934713408
        %v3230 = vunpack.c.0.s8 %v3229
        %v3231 = vlaneseq
        %v3232 = vshrl.u32 %v3231, 7
        %v3233 = vsub.s32 %v3230, %v3232
        %v3234 = vrot.slane %v3220, %v3233
        %v3235 = vcombine.low %v3202, %v3218
        %v3236 = vcombine.high %v3202, %v3218
        %v3238 = vunpack.c.l.s4 1934713408
        %v3239 = vunpack.c.0.s8 %v3238
        %v3240 = vlaneseq
        %v3241 = vshrl.u32 %v3240, 7
        %v3242 = vsub.s32 %v3239, %v3241
        %v3243 = vrot.slane %v3235, %v3242
        %v3245 = vunpack.c.l.s4 1934713408
        %v3246 = vunpack.c.0.s8 %v3245
        %v3247 = vlaneseq
        %v3248 = vshrl.u32 %v3247, 7
        %v3249 = vsub.s32 %v3246, %v3248
        %v3250 = vrot.slane %v3236, %v3249
        %v3251 = vcombine.high %v3227, 0.0
        %v3252 = vcombine.high %v3234, 0.0
        %v3253 = vcombine.high %v3243, 0.0
        %v3254 = vcombine.high %v3250, 0.0
        %v3255 = vcombine.low %v3180, %v3184
        %v3256 = vcombine.high %v3180, %v3184
        %v3258 = vunpack.c.l.s4 1983009808
        %v3259 = vunpack.c.0.s8 %v3258
        %v3260 = vlaneseq
        %v3261 = vshrl.u32 %v3260, 7
        %v3262 = vsub.s32 %v3259, %v3261
        %v3263 = vrot.slane %v3255, %v3262
        %v3265 = vunpack.c.l.s4 1983009808
        %v3266 = vunpack.c.0.s8 %v3265
        %v3267 = vlaneseq
        %v3268 = vshrl.u32 %v3267, 7
        %v3269 = vsub.s32 %v3266, %v3268
        %v3270 = vrot.slane %v3256, %v3269
        %v3271 = vcombine.low %v3182, %v3186
        %v3272 = vcombine.high %v3182, %v3186
        %v3274 = vunpack.c.l.s4 1983009808
        %v3275 = vunpack.c.0.s8 %v3274
        %v3276 = vlaneseq
        %v3277 = vshrl.u32 %v3276, 7
        %v3278 = vsub.s32 %v3275, %v3277
        %v3279 = vrot.slane %v3271, %v3278
        %v3281 = vunpack.c.l.s4 1983009808
        %v3282 = vunpack.c.0.s8 %v3281
        %v3283 = vlaneseq
        %v3284 = vshrl.u32 %v3283, 7
        %v3285 = vsub.s32 %v3282, %v3284
        %v3286 = vrot.slane %v3272, %v3285
        %v3287 = vcombine.low %v3263, %v3279
        %v3288 = vcombine.high %v3263, %v3279
        %v3290 = vunpack.c.l.s4 1934713408
        %v3291 = vunpack.c.0.s8 %v3290
        %v3292 = vlaneseq
        %v3293 = vshrl.u32 %v3292, 7
        %v3294 = vsub.s32 %v3291, %v3293
        %v3295 = vrot.slane %v3287, %v3294
        %v3297 = vunpack.c.l.s4 1934713408
        %v3298 = vunpack.c.0.s8 %v3297
        %v3299 = vlaneseq
        %v3300 = vshrl.u32 %v3299, 7
        %v3301 = vsub.s32 %v3298, %v3300
        %v3302 = vrot.slane %v3288, %v3301
        %v3303 = vcombine.low %v3270, %v3286
        %v3304 = vcombine.high %v3270, %v3286
        %v3306 = vunpack.c.l.s4 1934713408
        %v3307 = vunpack.c.0.s8 %v3306
        %v3308 = vlaneseq
        %v3309 = vshrl.u32 %v3308, 7
        %v3310 = vsub.s32 %v3307, %v3309
        %v3311 = vrot.slane %v3303, %v3310
        %v3313 = vunpack.c.l.s4 1934713408
        %v3314 = vunpack.c.0.s8 %v3313
        %v3315 = vlaneseq
        %v3316 = vshrl.u32 %v3315, 7
        %v3317 = vsub.s32 %v3314, %v3316
        %v3318 = vrot.slane %v3304, %v3317
        %v3319 = vcombine.high %v3295, 0.0
        %v3320 = vcombine.high %v3302, 0.0
        %v3321 = vcombine.high %v3311, 0.0
        %v3322 = vcombine.high %v3318, 0.0
        %v3323 = vpack.c.bf16 %v3227, %v3227
        %v3324 = vpack.c.bf16 %v3251, %v3251
        %v3325 = vpack.c.bf16 %v3234, %v3234
        %v3326 = vpack.c.bf16 %v3252, %v3252
        %v3327 = vpack.c.bf16 %v3243, %v3243
        %v3328 = vpack.c.bf16 %v3253, %v3253
        %v3329 = vpack.c.bf16 %v3250, %v3250
        %v3330 = vpack.c.bf16 %v3254, %v3254
        %v3331 = vpack.c.bf16 %v3295, %v3295
        %v3332 = vpack.c.bf16 %v3319, %v3319
        %v3333 = vpack.c.bf16 %v3302, %v3302
        %v3334 = vpack.c.bf16 %v3320, %v3320
        %v3335 = vpack.c.bf16 %v3311, %v3311
        %v3336 = vpack.c.bf16 %v3321, %v3321
        %v3337 = vpack.c.bf16 %v3318, %v3318
        %v3338 = vpack.c.bf16 %v3322, %v3322
        %v3339 = vld [vmem:[%s6] sm:$0xf]
        %v3340 = vld [vmem:[%s6 + $0x4] sm:$0xf]
        %v3341 = vld [vmem:[%s7] sm:$0xff]
        %v3342 = vld [vmem:[%s7 + $0x8] sm:$0xff]
        %3344 = vset.pattern.permute.xlu0 0
        %3345 = vperm.xlu0 %3344, %v3341
        %v3346 = vpop.permute.xlu0 %3345
        %3349 = vset.pattern.permute.xlu0 0
        %3350 = vperm.xlu0 %3349, %v3342
        %v3351 = vpop.permute.xlu0 %3350
        %v3355 = vunpack.c.l.b16 %v3339
        %v3356 = vunpack.c.l.b16 %v3340
        %v3357 = vpack.c.b16 %v3356, %v3355
        %v3359 = vsel %vm434, %v3357, 0
        %v3362 = vsel %vm438, %v3323, 0
        %v3365 = vsel %vm438, %v3324, 0
        %v3368 = vsel %vm438, %v3325, 0
        %v3371 = vsel %vm438, %v3326, 0
        %v3374 = vsel %vm438, %v3327, 0
        %v3377 = vsel %vm438, %v3328, 0
        %v3380 = vsel %vm438, %v3329, 0
        %v3383 = vsel %vm438, %v3330, 0
        %v3386 = vsel %vm438, %v3331, 0
        %v3389 = vsel %vm438, %v3332, 0
        %v3392 = vsel %vm438, %v3333, 0
        %v3395 = vsel %vm438, %v3334, 0
        %v3398 = vsel %vm438, %v3335, 0
        %v3401 = vsel %vm438, %v3336, 0
        %v3404 = vsel %vm438, %v3337, 0
        %v3407 = vsel %vm438, %v3338, 0
        %3409 = vmatprep.subr.bf16.mxu0 0
        %3410 = vmatpush1.bf16.msra.mxu0 0
        %3411 = vmatprep.subr.bf16.mxu0 0
        %3412 = vmatpush1.bf16.msra.mxu0 0
        %3413 = vmatprep.subr.bf16.mxu0 0
        %3414 = vmatpush1.bf16.msra.mxu0 0
        %3415 = vmatprep.subr.bf16.mxu0 0
        %3416 = vmatpush1.bf16.msra.mxu0 0
        %3417 = vmatprep.subr.bf16.mxu0 0
        %3418 = vmatpush1.bf16.msra.mxu0 0
        %3419 = vmatprep.subr.bf16.mxu0 0
        %3420 = vmatpush1.bf16.msra.mxu0 0
        %3421 = vmatprep.subr.bf16.mxu0 0
        %3422 = vmatpush1.bf16.msra.mxu0 0
        %3423 = vmatprep.subr.bf16.mxu0 %v3365
        %3424 = vmatpush1.bf16.msra.mxu0 %v3362
        %3425 = vmatprep.subr.bf16.mxu0 0
        %3426 = vmatpush2.bf16.msra.mxu0 0
        %3427 = vmatprep.subr.bf16.mxu0 0
        %3428 = vmatpush2.bf16.msra.mxu0 0
        %3429 = vmatprep.subr.bf16.mxu0 0
        %3430 = vmatpush2.bf16.msra.mxu0 0
        %3431 = vmatprep.subr.bf16.mxu0 0
        %3432 = vmatpush2.bf16.msra.mxu0 0
        %3433 = vmatprep.subr.bf16.mxu0 0
        %3434 = vmatpush2.bf16.msra.mxu0 0
        %3435 = vmatprep.subr.bf16.mxu0 0
        %3436 = vmatpush2.bf16.msra.mxu0 0
        %3437 = vmatprep.subr.bf16.mxu0 0
        %3438 = vmatpush2.bf16.msra.mxu0 0
        %3439 = vmatprep.subr.bf16.mxu0 0
        %3440 = vmatpush2.bf16.msra.mxu0 0
        %3441 = vmatprep.mubr.bf16.mxu0 0
        %3442 = vmatmul.mubr.bf16.gmra.mxu0 %v3359
        %v3443 = vpop.f32.mrf.mxu0
        %v3444 = vadd.f32 %v3346, %v3443
        %v3445 = vpop.f32.mrf.mxu0
        %v3446 = vadd.f32 %v3346, %v3445
        %v3447 = vpop.f32.mrf.mxu0
        %v3448 = vadd.f32 %v3351, %v3447
        %v3449 = vpop.f32.mrf.mxu0
        %v3450 = vadd.f32 %v3351, %v3449
        %3451 = vdwg.mxu0
        %3452 = vmatprep.subr.bf16.mxu0 0
        %3453 = vmatpush1.bf16.msra.mxu0 0
        %3454 = vmatprep.subr.bf16.mxu0 0
        %3455 = vmatpush1.bf16.msra.mxu0 0
        %3456 = vmatprep.subr.bf16.mxu0 0
        %3457 = vmatpush1.bf16.msra.mxu0 0
        %3458 = vmatprep.subr.bf16.mxu0 0
        %3459 = vmatpush1.bf16.msra.mxu0 0
        %3460 = vmatprep.subr.bf16.mxu0 0
        %3461 = vmatpush1.bf16.msra.mxu0 0
        %3462 = vmatprep.subr.bf16.mxu0 0
        %3463 = vmatpush1.bf16.msra.mxu0 0
        %3464 = vmatprep.subr.bf16.mxu0 0
        %3465 = vmatpush1.bf16.msra.mxu0 0
        %3466 = vmatprep.subr.bf16.mxu0 %v3371
        %3467 = vmatpush1.bf16.msra.mxu0 %v3368
        %3468 = vmatprep.subr.bf16.mxu0 0
        %3469 = vmatpush2.bf16.msra.mxu0 0
        %3470 = vmatprep.subr.bf16.mxu0 0
        %3471 = vmatpush2.bf16.msra.mxu0 0
        %3472 = vmatprep.subr.bf16.mxu0 0
        %3473 = vmatpush2.bf16.msra.mxu0 0
        %3474 = vmatprep.subr.bf16.mxu0 0
        %3475 = vmatpush2.bf16.msra.mxu0 0
        %3476 = vmatprep.subr.bf16.mxu0 0
        %3477 = vmatpush2.bf16.msra.mxu0 0
        %3478 = vmatprep.subr.bf16.mxu0 0
        %3479 = vmatpush2.bf16.msra.mxu0 0
        %3480 = vmatprep.subr.bf16.mxu0 0
        %3481 = vmatpush2.bf16.msra.mxu0 0
        %3482 = vmatprep.subr.bf16.mxu0 0
        %3483 = vmatpush2.bf16.msra.mxu0 0
        %3484 = vmatprep.mubr.bf16.mxu0 0
        %3485 = vmatmul.mubr.bf16.gmra.mxu0 %v3359
        %v3486 = vpop.f32.mrf.mxu0
        %v3487 = vadd.f32 %v3346, %v3486
        %v3488 = vpop.f32.mrf.mxu0
        %v3489 = vadd.f32 %v3346, %v3488
        %v3490 = vpop.f32.mrf.mxu0
        %v3491 = vadd.f32 %v3351, %v3490
        %v3492 = vpop.f32.mrf.mxu0
        %v3493 = vadd.f32 %v3351, %v3492
        %3494 = vdwg.mxu0
        %3495 = vmatprep.subr.bf16.mxu0 0
        %3496 = vmatpush1.bf16.msra.mxu0 0
        %3497 = vmatprep.subr.bf16.mxu0 0
        %3498 = vmatpush1.bf16.msra.mxu0 0
        %3499 = vmatprep.subr.bf16.mxu0 0
        %3500 = vmatpush1.bf16.msra.mxu0 0
        %3501 = vmatprep.subr.bf16.mxu0 0
        %3502 = vmatpush1.bf16.msra.mxu0 0
        %3503 = vmatprep.subr.bf16.mxu0 0
        %3504 = vmatpush1.bf16.msra.mxu0 0
        %3505 = vmatprep.subr.bf16.mxu0 0
        %3506 = vmatpush1.bf16.msra.mxu0 0
        %3507 = vmatprep.subr.bf16.mxu0 0
        %3508 = vmatpush1.bf16.msra.mxu0 0
        %3509 = vmatprep.subr.bf16.mxu0 %v3377
        %3510 = vmatpush1.bf16.msra.mxu0 %v3374
        %3511 = vmatprep.subr.bf16.mxu0 0
        %3512 = vmatpush2.bf16.msra.mxu0 0
        %3513 = vmatprep.subr.bf16.mxu0 0
        %3514 = vmatpush2.bf16.msra.mxu0 0
        %3515 = vmatprep.subr.bf16.mxu0 0
        %3516 = vmatpush2.bf16.msra.mxu0 0
        %3517 = vmatprep.subr.bf16.mxu0 0
        %3518 = vmatpush2.bf16.msra.mxu0 0
        %3519 = vmatprep.subr.bf16.mxu0 0
        %3520 = vmatpush2.bf16.msra.mxu0 0
        %3521 = vmatprep.subr.bf16.mxu0 0
        %3522 = vmatpush2.bf16.msra.mxu0 0
        %3523 = vmatprep.subr.bf16.mxu0 0
        %3524 = vmatpush2.bf16.msra.mxu0 0
        %3525 = vmatprep.subr.bf16.mxu0 0
        %3526 = vmatpush2.bf16.msra.mxu0 0
        %3527 = vmatprep.mubr.bf16.mxu0 0
        %3528 = vmatmul.mubr.bf16.gmra.mxu0 %v3359
        %v3529 = vpop.f32.mrf.mxu0
        %v3530 = vadd.f32 %v3346, %v3529
        %v3531 = vpop.f32.mrf.mxu0
        %v3532 = vadd.f32 %v3346, %v3531
        %v3533 = vpop.f32.mrf.mxu0
        %v3534 = vadd.f32 %v3351, %v3533
        %v3535 = vpop.f32.mrf.mxu0
        %v3536 = vadd.f32 %v3351, %v3535
        %3537 = vdwg.mxu0
        %3538 = vmatprep.subr.bf16.mxu0 0
        %3539 = vmatpush1.bf16.msra.mxu0 0
        %3540 = vmatprep.subr.bf16.mxu0 0
        %3541 = vmatpush1.bf16.msra.mxu0 0
        %3542 = vmatprep.subr.bf16.mxu0 0
        %3543 = vmatpush1.bf16.msra.mxu0 0
        %3544 = vmatprep.subr.bf16.mxu0 0
        %3545 = vmatpush1.bf16.msra.mxu0 0
        %3546 = vmatprep.subr.bf16.mxu0 0
        %3547 = vmatpush1.bf16.msra.mxu0 0
        %3548 = vmatprep.subr.bf16.mxu0 0
        %3549 = vmatpush1.bf16.msra.mxu0 0
        %3550 = vmatprep.subr.bf16.mxu0 0
        %3551 = vmatpush1.bf16.msra.mxu0 0
        %3552 = vmatprep.subr.bf16.mxu0 %v3383
        %3553 = vmatpush1.bf16.msra.mxu0 %v3380
        %3554 = vmatprep.subr.bf16.mxu0 0
        %3555 = vmatpush2.bf16.msra.mxu0 0
        %3556 = vmatprep.subr.bf16.mxu0 0
        %3557 = vmatpush2.bf16.msra.mxu0 0
        %3558 = vmatprep.subr.bf16.mxu0 0
        %3559 = vmatpush2.bf16.msra.mxu0 0
        %3560 = vmatprep.subr.bf16.mxu0 0
        %3561 = vmatpush2.bf16.msra.mxu0 0
        %3562 = vmatprep.subr.bf16.mxu0 0
        %3563 = vmatpush2.bf16.msra.mxu0 0
        %3564 = vmatprep.subr.bf16.mxu0 0
        %3565 = vmatpush2.bf16.msra.mxu0 0
        %3566 = vmatprep.subr.bf16.mxu0 0
        %3567 = vmatpush2.bf16.msra.mxu0 0
        %3568 = vmatprep.subr.bf16.mxu0 0
        %3569 = vmatpush2.bf16.msra.mxu0 0
        %3570 = vmatprep.mubr.bf16.mxu0 0
        %3571 = vmatmul.mubr.bf16.gmra.mxu0 %v3359
        %v3572 = vpop.f32.mrf.mxu0
        %v3573 = vadd.f32 %v3346, %v3572
        %v3574 = vpop.f32.mrf.mxu0
        %v3575 = vadd.f32 %v3346, %v3574
        %v3576 = vpop.f32.mrf.mxu0
        %v3577 = vadd.f32 %v3351, %v3576
        %v3578 = vpop.f32.mrf.mxu0
        %v3579 = vadd.f32 %v3351, %v3578
        %3580 = vdwg.mxu0
        %3581 = vmatprep.subr.bf16.mxu0 0
        %3582 = vmatpush1.bf16.msra.mxu0 0
        %3583 = vmatprep.subr.bf16.mxu0 0
        %3584 = vmatpush1.bf16.msra.mxu0 0
        %3585 = vmatprep.subr.bf16.mxu0 0
        %3586 = vmatpush1.bf16.msra.mxu0 0
        %3587 = vmatprep.subr.bf16.mxu0 0
        %3588 = vmatpush1.bf16.msra.mxu0 0
        %3589 = vmatprep.subr.bf16.mxu0 0
        %3590 = vmatpush1.bf16.msra.mxu0 0
        %3591 = vmatprep.subr.bf16.mxu0 0
        %3592 = vmatpush1.bf16.msra.mxu0 0
        %3593 = vmatprep.subr.bf16.mxu0 0
        %3594 = vmatpush1.bf16.msra.mxu0 0
        %3595 = vmatprep.subr.bf16.mxu0 %v3389
        %3596 = vmatpush1.bf16.msra.mxu0 %v3386
        %3597 = vmatprep.subr.bf16.mxu0 0
        %3598 = vmatpush2.bf16.msra.mxu0 0
        %3599 = vmatprep.subr.bf16.mxu0 0
        %3600 = vmatpush2.bf16.msra.mxu0 0
        %3601 = vmatprep.subr.bf16.mxu0 0
        %3602 = vmatpush2.bf16.msra.mxu0 0
        %3603 = vmatprep.subr.bf16.mxu0 0
        %3604 = vmatpush2.bf16.msra.mxu0 0
        %3605 = vmatprep.subr.bf16.mxu0 0
        %3606 = vmatpush2.bf16.msra.mxu0 0
        %3607 = vmatprep.subr.bf16.mxu0 0
        %3608 = vmatpush2.bf16.msra.mxu0 0
        %3609 = vmatprep.subr.bf16.mxu0 0
        %3610 = vmatpush2.bf16.msra.mxu0 0
        %3611 = vmatprep.subr.bf16.mxu0 0
        %3612 = vmatpush2.bf16.msra.mxu0 0
        %3613 = vmatprep.mubr.bf16.mxu0 0
        %3614 = vmatmul.mubr.bf16.gmra.mxu0 %v3359
        %v3615 = vpop.f32.mrf.mxu0
        %v3616 = vadd.f32 %v3346, %v3615
        %v3617 = vpop.f32.mrf.mxu0
        %v3618 = vadd.f32 %v3346, %v3617
        %v3619 = vpop.f32.mrf.mxu0
        %v3620 = vadd.f32 %v3351, %v3619
        %v3621 = vpop.f32.mrf.mxu0
        %v3622 = vadd.f32 %v3351, %v3621
        %3623 = vdwg.mxu0
        %3624 = vmatprep.subr.bf16.mxu0 0
        %3625 = vmatpush1.bf16.msra.mxu0 0
        %3626 = vmatprep.subr.bf16.mxu0 0
        %3627 = vmatpush1.bf16.msra.mxu0 0
        %3628 = vmatprep.subr.bf16.mxu0 0
        %3629 = vmatpush1.bf16.msra.mxu0 0
        %3630 = vmatprep.subr.bf16.mxu0 0
        %3631 = vmatpush1.bf16.msra.mxu0 0
        %3632 = vmatprep.subr.bf16.mxu0 0
        %3633 = vmatpush1.bf16.msra.mxu0 0
        %3634 = vmatprep.subr.bf16.mxu0 0
        %3635 = vmatpush1.bf16.msra.mxu0 0
        %3636 = vmatprep.subr.bf16.mxu0 0
        %3637 = vmatpush1.bf16.msra.mxu0 0
        %3638 = vmatprep.subr.bf16.mxu0 %v3395
        %3639 = vmatpush1.bf16.msra.mxu0 %v3392
        %3640 = vmatprep.subr.bf16.mxu0 0
        %3641 = vmatpush2.bf16.msra.mxu0 0
        %3642 = vmatprep.subr.bf16.mxu0 0
        %3643 = vmatpush2.bf16.msra.mxu0 0
        %3644 = vmatprep.subr.bf16.mxu0 0
        %3645 = vmatpush2.bf16.msra.mxu0 0
        %3646 = vmatprep.subr.bf16.mxu0 0
        %3647 = vmatpush2.bf16.msra.mxu0 0
        %3648 = vmatprep.subr.bf16.mxu0 0
        %3649 = vmatpush2.bf16.msra.mxu0 0
        %3650 = vmatprep.subr.bf16.mxu0 0
        %3651 = vmatpush2.bf16.msra.mxu0 0
        %3652 = vmatprep.subr.bf16.mxu0 0
        %3653 = vmatpush2.bf16.msra.mxu0 0
        %3654 = vmatprep.subr.bf16.mxu0 0
        %3655 = vmatpush2.bf16.msra.mxu0 0
        %3656 = vmatprep.mubr.bf16.mxu0 0
        %3657 = vmatmul.mubr.bf16.gmra.mxu0 %v3359
        %v3658 = vpop.f32.mrf.mxu0
        %v3659 = vadd.f32 %v3346, %v3658
        %v3660 = vpop.f32.mrf.mxu0
        %v3661 = vadd.f32 %v3346, %v3660
        %v3662 = vpop.f32.mrf.mxu0
        %v3663 = vadd.f32 %v3351, %v3662
        %v3664 = vpop.f32.mrf.mxu0
        %v3665 = vadd.f32 %v3351, %v3664
        %3666 = vdwg.mxu0
        %3667 = vmatprep.subr.bf16.mxu0 0
        %3668 = vmatpush1.bf16.msra.mxu0 0
        %3669 = vmatprep.subr.bf16.mxu0 0
        %3670 = vmatpush1.bf16.msra.mxu0 0
        %3671 = vmatprep.subr.bf16.mxu0 0
        %3672 = vmatpush1.bf16.msra.mxu0 0
        %3673 = vmatprep.subr.bf16.mxu0 0
        %3674 = vmatpush1.bf16.msra.mxu0 0
        %3675 = vmatprep.subr.bf16.mxu0 0
        %3676 = vmatpush1.bf16.msra.mxu0 0
        %3677 = vmatprep.subr.bf16.mxu0 0
        %3678 = vmatpush1.bf16.msra.mxu0 0
        %3679 = vmatprep.subr.bf16.mxu0 0
        %3680 = vmatpush1.bf16.msra.mxu0 0
        %3681 = vmatprep.subr.bf16.mxu0 %v3401
        %3682 = vmatpush1.bf16.msra.mxu0 %v3398
        %3683 = vmatprep.subr.bf16.mxu0 0
        %3684 = vmatpush2.bf16.msra.mxu0 0
        %3685 = vmatprep.subr.bf16.mxu0 0
        %3686 = vmatpush2.bf16.msra.mxu0 0
        %3687 = vmatprep.subr.bf16.mxu0 0
        %3688 = vmatpush2.bf16.msra.mxu0 0
        %3689 = vmatprep.subr.bf16.mxu0 0
        %3690 = vmatpush2.bf16.msra.mxu0 0
        %3691 = vmatprep.subr.bf16.mxu0 0
        %3692 = vmatpush2.bf16.msra.mxu0 0
        %3693 = vmatprep.subr.bf16.mxu0 0
        %3694 = vmatpush2.bf16.msra.mxu0 0
        %3695 = vmatprep.subr.bf16.mxu0 0
        %3696 = vmatpush2.bf16.msra.mxu0 0
        %3697 = vmatprep.subr.bf16.mxu0 0
        %3698 = vmatpush2.bf16.msra.mxu0 0
        %3699 = vmatprep.mubr.bf16.mxu0 0
        %3700 = vmatmul.mubr.bf16.gmra.mxu0 %v3359
        %v3701 = vpop.f32.mrf.mxu0
        %v3702 = vadd.f32 %v3346, %v3701
        %v3703 = vpop.f32.mrf.mxu0
        %v3704 = vadd.f32 %v3346, %v3703
        %v3705 = vpop.f32.mrf.mxu0
        %v3706 = vadd.f32 %v3351, %v3705
        %v3707 = vpop.f32.mrf.mxu0
        %v3708 = vadd.f32 %v3351, %v3707
        %3709 = vdwg.mxu0
        %3710 = vmatprep.subr.bf16.mxu0 0
        %3711 = vmatpush1.bf16.msra.mxu0 0
        %3712 = vmatprep.subr.bf16.mxu0 0
        %3713 = vmatpush1.bf16.msra.mxu0 0
        %3714 = vmatprep.subr.bf16.mxu0 0
        %3715 = vmatpush1.bf16.msra.mxu0 0
        %3716 = vmatprep.subr.bf16.mxu0 0
        %3717 = vmatpush1.bf16.msra.mxu0 0
        %3718 = vmatprep.subr.bf16.mxu0 0
        %3719 = vmatpush1.bf16.msra.mxu0 0
        %3720 = vmatprep.subr.bf16.mxu0 0
        %3721 = vmatpush1.bf16.msra.mxu0 0
        %3722 = vmatprep.subr.bf16.mxu0 0
        %3723 = vmatpush1.bf16.msra.mxu0 0
        %3724 = vmatprep.subr.bf16.mxu0 %v3407
        %3725 = vmatpush1.bf16.msra.mxu0 %v3404
        %3726 = vmatprep.subr.bf16.mxu0 0
        %3727 = vmatpush2.bf16.msra.mxu0 0
        %3728 = vmatprep.subr.bf16.mxu0 0
        %3729 = vmatpush2.bf16.msra.mxu0 0
        %3730 = vmatprep.subr.bf16.mxu0 0
        %3731 = vmatpush2.bf16.msra.mxu0 0
        %3732 = vmatprep.subr.bf16.mxu0 0
        %3733 = vmatpush2.bf16.msra.mxu0 0
        %3734 = vmatprep.subr.bf16.mxu0 0
        %3735 = vmatpush2.bf16.msra.mxu0 0
        %3736 = vmatprep.subr.bf16.mxu0 0
        %3737 = vmatpush2.bf16.msra.mxu0 0
        %3738 = vmatprep.subr.bf16.mxu0 0
        %3739 = vmatpush2.bf16.msra.mxu0 0
        %3740 = vmatprep.subr.bf16.mxu0 0
        %3741 = vmatpush2.bf16.msra.mxu0 0
        %3742 = vmatprep.mubr.bf16.mxu0 0
        %3743 = vmatmul.mubr.bf16.gmra.mxu0 %v3359
        %v3744 = vpop.f32.mrf.mxu0
        %v3745 = vadd.f32 %v3346, %v3744
        %v3746 = vpop.f32.mrf.mxu0
        %v3747 = vadd.f32 %v3346, %v3746
        %v3748 = vpop.f32.mrf.mxu0
        %v3749 = vadd.f32 %v3351, %v3748
        %v3750 = vpop.f32.mrf.mxu0
        %v3751 = vadd.f32 %v3351, %v3750
        %3752 = vdwg.mxu0
        %v3753 = vmax.f32 %v3444, 0.0
        %v3754 = vmax.f32 %v3446, 0.0
        %v3755 = vmax.f32 %v3487, 0.0
        %v3756 = vmax.f32 %v3489, 0.0
        %v3757 = vmax.f32 %v3530, 0.0
        %v3758 = vmax.f32 %v3532, 0.0
        %v3759 = vmax.f32 %v3573, 0.0
        %v3760 = vmax.f32 %v3575, 0.0
        %v3761 = vmax.f32 %v3616, 0.0
        %v3762 = vmax.f32 %v3618, 0.0
        %v3763 = vmax.f32 %v3659, 0.0
        %v3764 = vmax.f32 %v3661, 0.0
        %v3765 = vmax.f32 %v3702, 0.0
        %v3766 = vmax.f32 %v3704, 0.0
        %v3767 = vmax.f32 %v3745, 0.0
        %v3768 = vmax.f32 %v3747, 0.0
        %v3769 = vmax.f32 %v3448, 0.0
        %v3770 = vmax.f32 %v3450, 0.0
        %v3771 = vmax.f32 %v3491, 0.0
        %v3772 = vmax.f32 %v3493, 0.0
        %v3773 = vmax.f32 %v3534, 0.0
        %v3774 = vmax.f32 %v3536, 0.0
        %v3775 = vmax.f32 %v3577, 0.0
        %v3776 = vmax.f32 %v3579, 0.0
        %v3777 = vmax.f32 %v3620, 0.0
        %v3778 = vmax.f32 %v3622, 0.0
        %v3779 = vmax.f32 %v3663, 0.0
        %v3780 = vmax.f32 %v3665, 0.0
        %v3781 = vmax.f32 %v3706, 0.0
        %v3782 = vmax.f32 %v3708, 0.0
        %v3783 = vmax.f32 %v3749, 0.0
        %v3784 = vmax.f32 %v3751, 0.0
        %3787 = vst [vmem:[%s370] ss:$16 sm:$0x3] %v3753
        %3788 = vst [vmem:[%s370] ss:$16 sm:$0xc] %v3753
        %3789 = vst [vmem:[%s370] ss:$16 sm:$0x30] %v3753
        %3790 = vst [vmem:[%s370] ss:$16 sm:$0xc0] %v3753
        %s3791 = scalar_lea.vmem %s370, 128 [#allocation5]
        %3792 = vst [vmem:[%s3791] ss:$16 sm:$0x3] %v3769
        %3793 = vst [vmem:[%s3791] ss:$16 sm:$0xc] %v3769
        %3794 = vst [vmem:[%s3791] ss:$16 sm:$0x30] %v3769
        %3795 = vst [vmem:[%s3791] ss:$16 sm:$0xc0] %v3769
        %s3798 = scalar_lea.vmem %s370, 1 [#allocation5]
        %3799 = vst [vmem:[%s3798] ss:$16 sm:$0x3] %v3754
        %3800 = vst [vmem:[%s3798] ss:$16 sm:$0xc] %v3754
        %3801 = vst [vmem:[%s3798] ss:$16 sm:$0x30] %v3754
        %3802 = vst [vmem:[%s3798] ss:$16 sm:$0xc0] %v3754
        %s3803 = scalar_lea.vmem %s370, 129 [#allocation5]
        %3804 = vst [vmem:[%s3803] ss:$16 sm:$0x3] %v3770
        %3805 = vst [vmem:[%s3803] ss:$16 sm:$0xc] %v3770
        %3806 = vst [vmem:[%s3803] ss:$16 sm:$0x30] %v3770
        %3807 = vst [vmem:[%s3803] ss:$16 sm:$0xc0] %v3770
        %s3810 = scalar_lea.vmem %s370, 2 [#allocation5]
        %3811 = vst [vmem:[%s3810] ss:$16 sm:$0x3] %v3755
        %3812 = vst [vmem:[%s3810] ss:$16 sm:$0xc] %v3755
        %3813 = vst [vmem:[%s3810] ss:$16 sm:$0x30] %v3755
        %3814 = vst [vmem:[%s3810] ss:$16 sm:$0xc0] %v3755
        %s3815 = scalar_lea.vmem %s370, 130 [#allocation5]
        %3816 = vst [vmem:[%s3815] ss:$16 sm:$0x3] %v3771
        %3817 = vst [vmem:[%s3815] ss:$16 sm:$0xc] %v3771
        %3818 = vst [vmem:[%s3815] ss:$16 sm:$0x30] %v3771
        %3819 = vst [vmem:[%s3815] ss:$16 sm:$0xc0] %v3771
        %s3822 = scalar_lea.vmem %s370, 3 [#allocation5]
        %3823 = vst [vmem:[%s3822] ss:$16 sm:$0x3] %v3756
        %3824 = vst [vmem:[%s3822] ss:$16 sm:$0xc] %v3756
        %3825 = vst [vmem:[%s3822] ss:$16 sm:$0x30] %v3756
        %3826 = vst [vmem:[%s3822] ss:$16 sm:$0xc0] %v3756
        %s3827 = scalar_lea.vmem %s370, 131 [#allocation5]
        %3828 = vst [vmem:[%s3827] ss:$16 sm:$0x3] %v3772
        %3829 = vst [vmem:[%s3827] ss:$16 sm:$0xc] %v3772
        %3830 = vst [vmem:[%s3827] ss:$16 sm:$0x30] %v3772
        %3831 = vst [vmem:[%s3827] ss:$16 sm:$0xc0] %v3772
        %s3834 = scalar_lea.vmem %s370, 4 [#allocation5]
        %3835 = vst [vmem:[%s3834] ss:$16 sm:$0x3] %v3757
        %3836 = vst [vmem:[%s3834] ss:$16 sm:$0xc] %v3757
        %3837 = vst [vmem:[%s3834] ss:$16 sm:$0x30] %v3757
        %3838 = vst [vmem:[%s3834] ss:$16 sm:$0xc0] %v3757
        %s3839 = scalar_lea.vmem %s370, 132 [#allocation5]
        %3840 = vst [vmem:[%s3839] ss:$16 sm:$0x3] %v3773
        %3841 = vst [vmem:[%s3839] ss:$16 sm:$0xc] %v3773
        %3842 = vst [vmem:[%s3839] ss:$16 sm:$0x30] %v3773
        %3843 = vst [vmem:[%s3839] ss:$16 sm:$0xc0] %v3773
        %s3846 = scalar_lea.vmem %s370, 5 [#allocation5]
        %3847 = vst [vmem:[%s3846] ss:$16 sm:$0x3] %v3758
        %3848 = vst [vmem:[%s3846] ss:$16 sm:$0xc] %v3758
        %3849 = vst [vmem:[%s3846] ss:$16 sm:$0x30] %v3758
        %3850 = vst [vmem:[%s3846] ss:$16 sm:$0xc0] %v3758
        %s3851 = scalar_lea.vmem %s370, 133 [#allocation5]
        %3852 = vst [vmem:[%s3851] ss:$16 sm:$0x3] %v3774
        %3853 = vst [vmem:[%s3851] ss:$16 sm:$0xc] %v3774
        %3854 = vst [vmem:[%s3851] ss:$16 sm:$0x30] %v3774
        %3855 = vst [vmem:[%s3851] ss:$16 sm:$0xc0] %v3774
        %s3858 = scalar_lea.vmem %s370, 6 [#allocation5]
        %3859 = vst [vmem:[%s3858] ss:$16 sm:$0x3] %v3759
        %3860 = vst [vmem:[%s3858] ss:$16 sm:$0xc] %v3759
        %3861 = vst [vmem:[%s3858] ss:$16 sm:$0x30] %v3759
        %3862 = vst [vmem:[%s3858] ss:$16 sm:$0xc0] %v3759
        %s3863 = scalar_lea.vmem %s370, 134 [#allocation5]
        %3864 = vst [vmem:[%s3863] ss:$16 sm:$0x3] %v3775
        %3865 = vst [vmem:[%s3863] ss:$16 sm:$0xc] %v3775
        %3866 = vst [vmem:[%s3863] ss:$16 sm:$0x30] %v3775
        %3867 = vst [vmem:[%s3863] ss:$16 sm:$0xc0] %v3775
        %s3870 = scalar_lea.vmem %s370, 7 [#allocation5]
        %3871 = vst [vmem:[%s3870] ss:$16 sm:$0x3] %v3760
        %3872 = vst [vmem:[%s3870] ss:$16 sm:$0xc] %v3760
        %3873 = vst [vmem:[%s3870] ss:$16 sm:$0x30] %v3760
        %3874 = vst [vmem:[%s3870] ss:$16 sm:$0xc0] %v3760
        %s3875 = scalar_lea.vmem %s370, 135 [#allocation5]
        %3876 = vst [vmem:[%s3875] ss:$16 sm:$0x3] %v3776
        %3877 = vst [vmem:[%s3875] ss:$16 sm:$0xc] %v3776
        %3878 = vst [vmem:[%s3875] ss:$16 sm:$0x30] %v3776
        %3879 = vst [vmem:[%s3875] ss:$16 sm:$0xc0] %v3776
        %s3882 = scalar_lea.vmem %s370, 8 [#allocation5]
        %3883 = vst [vmem:[%s3882] ss:$16 sm:$0x3] %v3761
        %3884 = vst [vmem:[%s3882] ss:$16 sm:$0xc] %v3761
        %3885 = vst [vmem:[%s3882] ss:$16 sm:$0x30] %v3761
        %3886 = vst [vmem:[%s3882] ss:$16 sm:$0xc0] %v3761
        %s3887 = scalar_lea.vmem %s370, 136 [#allocation5]
        %3888 = vst [vmem:[%s3887] ss:$16 sm:$0x3] %v3777
        %3889 = vst [vmem:[%s3887] ss:$16 sm:$0xc] %v3777
        %3890 = vst [vmem:[%s3887] ss:$16 sm:$0x30] %v3777
        %3891 = vst [vmem:[%s3887] ss:$16 sm:$0xc0] %v3777
        %s3894 = scalar_lea.vmem %s370, 9 [#allocation5]
        %3895 = vst [vmem:[%s3894] ss:$16 sm:$0x3] %v3762
        %3896 = vst [vmem:[%s3894] ss:$16 sm:$0xc] %v3762
        %3897 = vst [vmem:[%s3894] ss:$16 sm:$0x30] %v3762
        %3898 = vst [vmem:[%s3894] ss:$16 sm:$0xc0] %v3762
        %s3899 = scalar_lea.vmem %s370, 137 [#allocation5]
        %3900 = vst [vmem:[%s3899] ss:$16 sm:$0x3] %v3778
        %3901 = vst [vmem:[%s3899] ss:$16 sm:$0xc] %v3778
        %3902 = vst [vmem:[%s3899] ss:$16 sm:$0x30] %v3778
        %3903 = vst [vmem:[%s3899] ss:$16 sm:$0xc0] %v3778
        %s3906 = scalar_lea.vmem %s370, 10 [#allocation5]
        %3907 = vst [vmem:[%s3906] ss:$16 sm:$0x3] %v3763
        %3908 = vst [vmem:[%s3906] ss:$16 sm:$0xc] %v3763
        %3909 = vst [vmem:[%s3906] ss:$16 sm:$0x30] %v3763
        %3910 = vst [vmem:[%s3906] ss:$16 sm:$0xc0] %v3763
        %s3911 = scalar_lea.vmem %s370, 138 [#allocation5]
        %3912 = vst [vmem:[%s3911] ss:$16 sm:$0x3] %v3779
        %3913 = vst [vmem:[%s3911] ss:$16 sm:$0xc] %v3779
        %3914 = vst [vmem:[%s3911] ss:$16 sm:$0x30] %v3779
        %3915 = vst [vmem:[%s3911] ss:$16 sm:$0xc0] %v3779
        %s3918 = scalar_lea.vmem %s370, 11 [#allocation5]
        %3919 = vst [vmem:[%s3918] ss:$16 sm:$0x3] %v3764
        %3920 = vst [vmem:[%s3918] ss:$16 sm:$0xc] %v3764
        %3921 = vst [vmem:[%s3918] ss:$16 sm:$0x30] %v3764
        %3922 = vst [vmem:[%s3918] ss:$16 sm:$0xc0] %v3764
        %s3923 = scalar_lea.vmem %s370, 139 [#allocation5]
        %3924 = vst [vmem:[%s3923] ss:$16 sm:$0x3] %v3780
        %3925 = vst [vmem:[%s3923] ss:$16 sm:$0xc] %v3780
        %3926 = vst [vmem:[%s3923] ss:$16 sm:$0x30] %v3780
        %3927 = vst [vmem:[%s3923] ss:$16 sm:$0xc0] %v3780
        %s3930 = scalar_lea.vmem %s370, 12 [#allocation5]
        %3931 = vst [vmem:[%s3930] ss:$16 sm:$0x3] %v3765
        %3932 = vst [vmem:[%s3930] ss:$16 sm:$0xc] %v3765
        %3933 = vst [vmem:[%s3930] ss:$16 sm:$0x30] %v3765
        %3934 = vst [vmem:[%s3930] ss:$16 sm:$0xc0] %v3765
        %s3935 = scalar_lea.vmem %s370, 140 [#allocation5]
        %3936 = vst [vmem:[%s3935] ss:$16 sm:$0x3] %v3781
        %3937 = vst [vmem:[%s3935] ss:$16 sm:$0xc] %v3781
        %3938 = vst [vmem:[%s3935] ss:$16 sm:$0x30] %v3781
        %3939 = vst [vmem:[%s3935] ss:$16 sm:$0xc0] %v3781
        %s3942 = scalar_lea.vmem %s370, 13 [#allocation5]
        %3943 = vst [vmem:[%s3942] ss:$16 sm:$0x3] %v3766
        %3944 = vst [vmem:[%s3942] ss:$16 sm:$0xc] %v3766
        %3945 = vst [vmem:[%s3942] ss:$16 sm:$0x30] %v3766
        %3946 = vst [vmem:[%s3942] ss:$16 sm:$0xc0] %v3766
        %s3947 = scalar_lea.vmem %s370, 141 [#allocation5]
        %3948 = vst [vmem:[%s3947] ss:$16 sm:$0x3] %v3782
        %3949 = vst [vmem:[%s3947] ss:$16 sm:$0xc] %v3782
        %3950 = vst [vmem:[%s3947] ss:$16 sm:$0x30] %v3782
        %3951 = vst [vmem:[%s3947] ss:$16 sm:$0xc0] %v3782
        %s3954 = scalar_lea.vmem %s370, 14 [#allocation5]
        %3955 = vst [vmem:[%s3954] ss:$16 sm:$0x3] %v3767
        %3956 = vst [vmem:[%s3954] ss:$16 sm:$0xc] %v3767
        %3957 = vst [vmem:[%s3954] ss:$16 sm:$0x30] %v3767
        %3958 = vst [vmem:[%s3954] ss:$16 sm:$0xc0] %v3767
        %s3959 = scalar_lea.vmem %s370, 142 [#allocation5]
        %3960 = vst [vmem:[%s3959] ss:$16 sm:$0x3] %v3783
        %3961 = vst [vmem:[%s3959] ss:$16 sm:$0xc] %v3783
        %3962 = vst [vmem:[%s3959] ss:$16 sm:$0x30] %v3783
        %3963 = vst [vmem:[%s3959] ss:$16 sm:$0xc0] %v3783
        %s3966 = scalar_lea.vmem %s370, 15 [#allocation5]
        %3967 = vst [vmem:[%s3966] ss:$16 sm:$0x3] %v3768
        %3968 = vst [vmem:[%s3966] ss:$16 sm:$0xc] %v3768
        %3969 = vst [vmem:[%s3966] ss:$16 sm:$0x30] %v3768
        %3970 = vst [vmem:[%s3966] ss:$16 sm:$0xc0] %v3768
        %s3971 = scalar_lea.vmem %s370, 143 [#allocation5]
        %3972 = vst [vmem:[%s3971] ss:$16 sm:$0x3] %v3784
        %3973 = vst [vmem:[%s3971] ss:$16 sm:$0xc] %v3784
        %3974 = vst [vmem:[%s3971] ss:$16 sm:$0x30] %v3784
        %3975 = vst [vmem:[%s3971] ss:$16 sm:$0xc0] %v3784
        %s3976 = sand.u32 %s200, 1
        %s3977 = sand.u32 %s200, 1
        %s3978 = smul.addr %s3977, 256
        %s3979 = scalar_lea.vmem [#allocation5], %s3978
        // Predicated region
        $region94: #{spatial_bottleneck_block.1} parent=88 // pred_check
          %p3980 = pneg %p210
        $region95: #{spatial_bottleneck_block.1} parent=88 // pred_check_branch
          %3982 = sbr.rel (%p3980) target = $region97
        $region96: #{spatial_bottleneck_block.1} parent=88 // pred_region
          %s3983 = smul.addr %s19, 8
          %s3984 = scalar_lea.vmem %s8, %s3983
          // Predicated region
          $region98: #{spatial_bottleneck_block.1} parent=96 // pred_check
            _
          $region99: #{spatial_bottleneck_block.1} parent=96 // pred_check_branch
            %3986 = sbr.rel (0) target = $region101
          $region100: #{spatial_bottleneck_block.1} parent=96 // pred_region
            // Predicated region
            $region102: #{spatial_bottleneck_block.1} parent=100 // pred_check
              _
            $region103: #{spatial_bottleneck_block.1} parent=100 // pred_check_branch
              %3988 = sbr.rel (0) target = $region105
            $region104: #{spatial_bottleneck_block.1} parent=100 // pred_region
              // Predicated region
              $region117: #{spatial_bottleneck_block.1} parent=104 // pred_check
                _
              $region118: #{spatial_bottleneck_block.1} parent=104 // pred_check_branch
                %4066 = sbr.rel (0) target = $region120
              $region119: #{spatial_bottleneck_block.1} parent=104 // pred_region
                loop: start=0, step=1, limit=1
                $region121: #{spatial_bottleneck_block.1} parent=119 // loop_pre_header
                  _
                $region122: #{spatial_bottleneck_block.1} parent=119 // loop_header
                  %s4068 = sphi 0, %s4072
                  %p4069 = scmp.ge.s32.totalorder %s4068, 1
                  %s4073 = sphi %s3979, %s3979
                  %s4074 = sphi %s3984, %s3984
                $region123: #{spatial_bottleneck_block.1} parent=119 // loop_header_branch
                  %4071 = sbr.rel (%p4069) target = $region127
                $region124: #{spatial_bottleneck_block.1} parent=119 // loop_body
                  %v4075 = vld [vmem:[%s4073] sm:$0xff]
                  %4076 = vst [vmem:[%s4074] sm:$0xff] %v4075
                  %v4077 = vld [vmem:[%s4073 + $0x8] sm:$0xff]
                  %4078 = vst [vmem:[%s4074 + $0x10] sm:$0xff] %v4077
                  %v4079 = vld [vmem:[%s4073 + $0x10] sm:$0xff]
                  %4080 = vst [vmem:[%s4074 + $0x20] sm:$0xff] %v4079
                  %v4081 = vld [vmem:[%s4073 + $0x18] sm:$0xff]
                  %4082 = vst [vmem:[%s4074 + $0x30] sm:$0xff] %v4081
                  %v4083 = vld [vmem:[%s4073 + $0x20] sm:$0xff]
                  %4084 = vst [vmem:[%s4074 + $0x40] sm:$0xff] %v4083
                  %v4085 = vld [vmem:[%s4073 + $0x28] sm:$0xff]
                  %4086 = vst [vmem:[%s4074 + $0x50] sm:$0xff] %v4085
                  %v4087 = vld [vmem:[%s4073 + $0x30] sm:$0xff]
                  %4088 = vst [vmem:[%s4074 + $0x60] sm:$0xff] %v4087
                  %v4089 = vld [vmem:[%s4073 + $0x38] sm:$0xff]
                  %4090 = vst [vmem:[%s4074 + $0x70] sm:$0xff] %v4089
                  %v4091 = vld [vmem:[%s4073 + $0x40] sm:$0xff]
                  %4092 = vst [vmem:[%s4074 + $0x80] sm:$0xff] %v4091
                  %v4093 = vld [vmem:[%s4073 + $0x48] sm:$0xff]
                  %4094 = vst [vmem:[%s4074 + $0x90] sm:$0xff] %v4093
                  %v4095 = vld [vmem:[%s4073 + $0x50] sm:$0xff]
                  %4096 = vst [vmem:[%s4074 + $0xa0] sm:$0xff] %v4095
                  %v4097 = vld [vmem:[%s4073 + $0x58] sm:$0xff]
                  %4098 = vst [vmem:[%s4074 + $0xb0] sm:$0xff] %v4097
                  %v4099 = vld [vmem:[%s4073 + $0x60] sm:$0xff]
                  %4100 = vst [vmem:[%s4074 + $0xc0] sm:$0xff] %v4099
                  %v4101 = vld [vmem:[%s4073 + $0x68] sm:$0xff]
                  %4102 = vst [vmem:[%s4074 + $0xd0] sm:$0xff] %v4101
                  %v4103 = vld [vmem:[%s4073 + $0x70] sm:$0xff]
                  %4104 = vst [vmem:[%s4074 + $0xe0] sm:$0xff] %v4103
                  %v4105 = vld [vmem:[%s4073 + $0x78] sm:$0xff]
                  %4106 = vst [vmem:[%s4074 + $0xf0] sm:$0xff] %v4105
                  %v4107 = vld [vmem:[%s4073 + $0x80] sm:$0xff]
                  %4108 = vst [vmem:[%s4074 + $0x100] sm:$0xff] %v4107
                  %v4109 = vld [vmem:[%s4073 + $0x88] sm:$0xff]
                  %4110 = vst [vmem:[%s4074 + $0x110] sm:$0xff] %v4109
                  %v4111 = vld [vmem:[%s4073 + $0x90] sm:$0xff]
                  %4112 = vst [vmem:[%s4074 + $0x120] sm:$0xff] %v4111
                  %v4113 = vld [vmem:[%s4073 + $0x98] sm:$0xff]
                  %4114 = vst [vmem:[%s4074 + $0x130] sm:$0xff] %v4113
                  %v4115 = vld [vmem:[%s4073 + $0xa0] sm:$0xff]
                  %4116 = vst [vmem:[%s4074 + $0x140] sm:$0xff] %v4115
                  %v4117 = vld [vmem:[%s4073 + $0xa8] sm:$0xff]
                  %4118 = vst [vmem:[%s4074 + $0x150] sm:$0xff] %v4117
                  %v4119 = vld [vmem:[%s4073 + $0xb0] sm:$0xff]
                  %4120 = vst [vmem:[%s4074 + $0x160] sm:$0xff] %v4119
                  %v4121 = vld [vmem:[%s4073 + $0xb8] sm:$0xff]
                  %4122 = vst [vmem:[%s4074 + $0x170] sm:$0xff] %v4121
                  %v4123 = vld [vmem:[%s4073 + $0xc0] sm:$0xff]
                  %4124 = vst [vmem:[%s4074 + $0x180] sm:$0xff] %v4123
                  %v4125 = vld [vmem:[%s4073 + $0xc8] sm:$0xff]
                  %4126 = vst [vmem:[%s4074 + $0x190] sm:$0xff] %v4125
                  %v4127 = vld [vmem:[%s4073 + $0xd0] sm:$0xff]
                  %4128 = vst [vmem:[%s4074 + $0x1a0] sm:$0xff] %v4127
                  %v4129 = vld [vmem:[%s4073 + $0xd8] sm:$0xff]
                  %4130 = vst [vmem:[%s4074 + $0x1b0] sm:$0xff] %v4129
                  %v4131 = vld [vmem:[%s4073 + $0xe0] sm:$0xff]
                  %4132 = vst [vmem:[%s4074 + $0x1c0] sm:$0xff] %v4131
                  %v4133 = vld [vmem:[%s4073 + $0xe8] sm:$0xff]
                  %4134 = vst [vmem:[%s4074 + $0x1d0] sm:$0xff] %v4133
                  %v4135 = vld [vmem:[%s4073 + $0xf0] sm:$0xff]
                  %4136 = vst [vmem:[%s4074 + $0x1e0] sm:$0xff] %v4135
                  %v4137 = vld [vmem:[%s4073 + $0xf8] sm:$0xff]
                  %4138 = vst [vmem:[%s4074 + $0x1f0] sm:$0xff] %v4137
                $region125: #{spatial_bottleneck_block.1} parent=119 // loop_footer
                  %s4072 = sadd.s32 1, %s4068
                $region126: #{spatial_bottleneck_block.1} parent=119 // loop_footer_branch
                  %4067 = sbr.rel target = $region122
                $region127: #{spatial_bottleneck_block.1} parent=119 // loop_exit
                  _
              $region120: #{spatial_bottleneck_block.1} parent=104 // pred_fallthru
                _
              // Predicated region
              $region128: #{spatial_bottleneck_block.1} parent=104 // pred_check
                _
              $region129: #{spatial_bottleneck_block.1} parent=104 // pred_check_branch
                %4140 = sbr.rel target = $region131
              $region130: #{spatial_bottleneck_block.1} parent=104 // pred_region
                _
              $region131: #{spatial_bottleneck_block.1} parent=104 // pred_fallthru
                _
            $region105: #{spatial_bottleneck_block.1} parent=100 // pred_fallthru
              _
            // Predicated region
            $region106: #{spatial_bottleneck_block.1} parent=100 // pred_check
              _
            $region107: #{spatial_bottleneck_block.1} parent=100 // pred_check_branch
              %3990 = sbr.rel target = $region109
            $region108: #{spatial_bottleneck_block.1} parent=100 // pred_region
              %s3992 = ssub.s32 256, 1
              loop: start=0, step=1, limit=1
              $region110: #{spatial_bottleneck_block.1} parent=108 // loop_pre_header
                _
              $region111: #{spatial_bottleneck_block.1} parent=108 // loop_header
                %s3994 = sphi 0, %s3998
                %p3995 = scmp.ge.s32.totalorder %s3994, 1
                %s3999 = sphi %s3979, %s3979
                %s4000 = sphi %s3984, %s3984
              $region112: #{spatial_bottleneck_block.1} parent=108 // loop_header_branch
                %3997 = sbr.rel (%p3995) target = $region116
              $region113: #{spatial_bottleneck_block.1} parent=108 // loop_body
                %v4001 = vld [vmem:[%s3999] sm:%s3992]
                %4002 = vst [vmem:[%s4000] sm:%s3992] %v4001
                %v4003 = vld [vmem:[%s3999 + $0x8] sm:%s3992]
                %4004 = vst [vmem:[%s4000 + $0x10] sm:%s3992] %v4003
                %v4005 = vld [vmem:[%s3999 + $0x10] sm:%s3992]
                %4006 = vst [vmem:[%s4000 + $0x20] sm:%s3992] %v4005
                %v4007 = vld [vmem:[%s3999 + $0x18] sm:%s3992]
                %4008 = vst [vmem:[%s4000 + $0x30] sm:%s3992] %v4007
                %v4009 = vld [vmem:[%s3999 + $0x20] sm:%s3992]
                %4010 = vst [vmem:[%s4000 + $0x40] sm:%s3992] %v4009
                %v4011 = vld [vmem:[%s3999 + $0x28] sm:%s3992]
                %4012 = vst [vmem:[%s4000 + $0x50] sm:%s3992] %v4011
                %v4013 = vld [vmem:[%s3999 + $0x30] sm:%s3992]
                %4014 = vst [vmem:[%s4000 + $0x60] sm:%s3992] %v4013
                %v4015 = vld [vmem:[%s3999 + $0x38] sm:%s3992]
                %4016 = vst [vmem:[%s4000 + $0x70] sm:%s3992] %v4015
                %v4017 = vld [vmem:[%s3999 + $0x40] sm:%s3992]
                %4018 = vst [vmem:[%s4000 + $0x80] sm:%s3992] %v4017
                %v4019 = vld [vmem:[%s3999 + $0x48] sm:%s3992]
                %4020 = vst [vmem:[%s4000 + $0x90] sm:%s3992] %v4019
                %v4021 = vld [vmem:[%s3999 + $0x50] sm:%s3992]
                %4022 = vst [vmem:[%s4000 + $0xa0] sm:%s3992] %v4021
                %v4023 = vld [vmem:[%s3999 + $0x58] sm:%s3992]
                %4024 = vst [vmem:[%s4000 + $0xb0] sm:%s3992] %v4023
                %v4025 = vld [vmem:[%s3999 + $0x60] sm:%s3992]
                %4026 = vst [vmem:[%s4000 + $0xc0] sm:%s3992] %v4025
                %v4027 = vld [vmem:[%s3999 + $0x68] sm:%s3992]
                %4028 = vst [vmem:[%s4000 + $0xd0] sm:%s3992] %v4027
                %v4029 = vld [vmem:[%s3999 + $0x70] sm:%s3992]
                %4030 = vst [vmem:[%s4000 + $0xe0] sm:%s3992] %v4029
                %v4031 = vld [vmem:[%s3999 + $0x78] sm:%s3992]
                %4032 = vst [vmem:[%s4000 + $0xf0] sm:%s3992] %v4031
                %v4033 = vld [vmem:[%s3999 + $0x80] sm:%s3992]
                %4034 = vst [vmem:[%s4000 + $0x100] sm:%s3992] %v4033
                %v4035 = vld [vmem:[%s3999 + $0x88] sm:%s3992]
                %4036 = vst [vmem:[%s4000 + $0x110] sm:%s3992] %v4035
                %v4037 = vld [vmem:[%s3999 + $0x90] sm:%s3992]
                %4038 = vst [vmem:[%s4000 + $0x120] sm:%s3992] %v4037
                %v4039 = vld [vmem:[%s3999 + $0x98] sm:%s3992]
                %4040 = vst [vmem:[%s4000 + $0x130] sm:%s3992] %v4039
                %v4041 = vld [vmem:[%s3999 + $0xa0] sm:%s3992]
                %4042 = vst [vmem:[%s4000 + $0x140] sm:%s3992] %v4041
                %v4043 = vld [vmem:[%s3999 + $0xa8] sm:%s3992]
                %4044 = vst [vmem:[%s4000 + $0x150] sm:%s3992] %v4043
                %v4045 = vld [vmem:[%s3999 + $0xb0] sm:%s3992]
                %4046 = vst [vmem:[%s4000 + $0x160] sm:%s3992] %v4045
                %v4047 = vld [vmem:[%s3999 + $0xb8] sm:%s3992]
                %4048 = vst [vmem:[%s4000 + $0x170] sm:%s3992] %v4047
                %v4049 = vld [vmem:[%s3999 + $0xc0] sm:%s3992]
                %4050 = vst [vmem:[%s4000 + $0x180] sm:%s3992] %v4049
                %v4051 = vld [vmem:[%s3999 + $0xc8] sm:%s3992]
                %4052 = vst [vmem:[%s4000 + $0x190] sm:%s3992] %v4051
                %v4053 = vld [vmem:[%s3999 + $0xd0] sm:%s3992]
                %4054 = vst [vmem:[%s4000 + $0x1a0] sm:%s3992] %v4053
                %v4055 = vld [vmem:[%s3999 + $0xd8] sm:%s3992]
                %4056 = vst [vmem:[%s4000 + $0x1b0] sm:%s3992] %v4055
                %v4057 = vld [vmem:[%s3999 + $0xe0] sm:%s3992]
                %4058 = vst [vmem:[%s4000 + $0x1c0] sm:%s3992] %v4057
                %v4059 = vld [vmem:[%s3999 + $0xe8] sm:%s3992]
                %4060 = vst [vmem:[%s4000 + $0x1d0] sm:%s3992] %v4059
                %v4061 = vld [vmem:[%s3999 + $0xf0] sm:%s3992]
                %4062 = vst [vmem:[%s4000 + $0x1e0] sm:%s3992] %v4061
                %v4063 = vld [vmem:[%s3999 + $0xf8] sm:%s3992]
                %4064 = vst [vmem:[%s4000 + $0x1f0] sm:%s3992] %v4063
              $region114: #{spatial_bottleneck_block.1} parent=108 // loop_footer
                %s3998 = sadd.s32 1, %s3994
              $region115: #{spatial_bottleneck_block.1} parent=108 // loop_footer_branch
                %3993 = sbr.rel target = $region111
              $region116: #{spatial_bottleneck_block.1} parent=108 // loop_exit
                _
            $region109: #{spatial_bottleneck_block.1} parent=100 // pred_fallthru
              _
          $region101: #{spatial_bottleneck_block.1} parent=96 // pred_fallthru
            _
          %4141 = vnop
        $region97: #{spatial_bottleneck_block.1} parent=88 // pred_fallthru
          _
      $region89: #{spatial_bottleneck_block.1} parent=5 // pred_fallthru
        _
      %p4142 = scmp.le.s32.totalorder 2, %s14
      // Predicated region
      $region132: #{spatial_bottleneck_block.1} parent=5 // pred_check
        %p4143 = pneg %p4142
      $region133: #{spatial_bottleneck_block.1} parent=5 // pred_check_branch
        %4145 = sbr.rel (%p4143) target = $region135
      $region134: #{spatial_bottleneck_block.1} parent=5 // pred_region
        %s4146 = ssub.s32 %s14, 2
        // Predicated region
        $region136: #{spatial_bottleneck_block.1} parent=134 // pred_check
          %p4147 = pneg %p216
        $region137: #{spatial_bottleneck_block.1} parent=134 // pred_check_branch
          %4149 = sbr.rel (%p4147) target = $region139
        $region138: #{spatial_bottleneck_block.1} parent=134 // pred_region
          %s4150 = sand.u32 %s201, 1
          %s4151 = sand.u32 %s201, 1
          %s4152 = smul.addr %s4151, 256
          %s4153 = scalar_lea.vmem [#allocation5], %s4152
        $region139: #{spatial_bottleneck_block.1} parent=134 // pred_fallthru
          _
      $region135: #{spatial_bottleneck_block.1} parent=5 // pred_fallthru
        _
    $region6: #{spatial_bottleneck_block.1} parent=1 // loop_footer
      %s18 = sadd.s32 1, %s14
    $region7: #{spatial_bottleneck_block.1} parent=1 // loop_footer_branch
      %13 = sbr.rel target = $region3
    $region8: #{spatial_bottleneck_block.1} parent=1 // loop_exit
      _

</llo_original>
